<compile_context>
chip_gen: v5e
topology: v5e:2x2
jax: 0.10.0
libtpu: 0.0.40
codegen_flags: <defaults>
</compile_context>

<pallas_src>
import functools

import numpy as np
import jax
import jax.numpy as jnp
from jax.experimental import pallas as pl
from jax.experimental.pallas import tpu as pltpu

# Make the pure-JAX reference / wrapper matmuls use true f32 so they match the
# kernel's f32-accumulated MXU matmuls.
jax.config.update("jax_default_matmul_precision", "highest")


# ----------------------------------------------------------------------------
# in-kernel helpers
# ----------------------------------------------------------------------------
def _softmax_last(x):
    m = jnp.max(x, axis=-1, keepdims=True)
    e = jnp.exp(x - m)
    denom = jnp.sum(e, axis=-1, keepdims=True)
    # approx reciprocal runs on the EUP slot (off the VALU critical path).
    return e * pl.reciprocal(denom, approx=True)


def _output_mlp(q, ctx_o, ctx_e, w1_ref, b1_ref, w2_ref, b2_ref, H):
    # nn.Sequential(ReLU, Linear(3H->2H), ReLU, Linear(2H->O)) with the concat
    # replaced by three slab matmuls (ReLU(cat) == cat(ReLU)).
    # Slabs are loaded straight from the ref to keep peak vreg pressure low.
    h1 = (jnp.dot(jnp.maximum(q, 0.0), w1_ref[0:H, :],
                  preferred_element_type=jnp.float32)
          + jnp.dot(jnp.maximum(ctx_o, 0.0), w1_ref[H:2 * H, :],
                    preferred_element_type=jnp.float32)
          + jnp.dot(jnp.maximum(ctx_e, 0.0), w1_ref[2 * H:3 * H, :],
                    preferred_element_type=jnp.float32)
          + b1_ref[...])
    h1 = jnp.maximum(h1, 0.0)
    return jnp.dot(h1, w2_ref[...], preferred_element_type=jnp.float32) \
        + b2_ref[...]


# ----------------------------------------------------------------------------
# Pallas kernels
# ----------------------------------------------------------------------------
def _decoder_memory_kernel(hop_count, q_ref, keys_t_ref, v_ref, emb_ref,
                           emb_t_ref, w1_ref, b1_ref, w2_ref, b2_ref, out_ref):
    """memory_keys is not None: multi-hop key/value attention path.

    q_ref:      (tb, H)   query block
    keys_t_ref: (H, N)    memory keys, pre-transposed
    v_ref:      (N, H)    V = multi_hot @ emb, hoisted out of the hop loop
    emb_ref:    (M, H)    medication embeddings
    emb_t_ref:  (H, M)    same, pre-transposed (for the score matmul)
    """
    H = q_ref.shape[-1]
    q = q_ref[...]
    keys_t = keys_t_ref[...]
    v_mat = v_ref[...]

    # Static Python loop: hop_count is small, so unrolling is fine.
    # TODO(synk): switch to lax.fori_loop if hop_count is ever configured > ~8.
    ctx_o = q
    for _ in range(hop_count):
        scores = jnp.dot(ctx_o, keys_t,
                         preferred_element_type=jnp.float32)      # (tb, N)
        w_kv = _softmax_last(scores)
        ctx_o = ctx_o + jnp.dot(w_kv, v_mat,
                                preferred_element_type=jnp.float32)  # (tb, H)

    # attn_embedding 'dot' over the full medication table (raw query).
    scores_e = jnp.dot(q, emb_t_ref[...],
                       preferred_element_type=jnp.float32)         # (tb, M)
    w_e = _softmax_last(scores_e)
    ctx_e = jnp.dot(w_e, emb_ref[...],
                    preferred_element_type=jnp.float32)            # (tb, H)

    out = _output_mlp(q, ctx_o, ctx_e, w1_ref, b1_ref, w2_ref, b2_ref, H)
    out_ref[...] = out.astype(out_ref.dtype)


def _decoder_no_memory_kernel(q_ref, emb_ref, emb_t_ref, w1_ref, b1_ref,
                              w2_ref, b2_ref, out_ref):
    """memory_keys is None: attention over the embedding table only."""
    H = q_ref.shape[-1]
    q = q_ref[...]

    scores_e = jnp.dot(q, emb_t_ref[...],
                       preferred_element_type=jnp.float32)         # (tb, M)
    w_e = _softmax_last(scores_e)
    ctx_e = jnp.dot(w_e, emb_ref[...],
                    preferred_element_type=jnp.float32)            # (tb, H)

    out = _output_mlp(q, ctx_e, ctx_e, w1_ref, b1_ref, w2_ref, b2_ref, H)
    out_ref[...] = out.astype(out_ref.dtype)


# ----------------------------------------------------------------------------
# wrapper
# ----------------------------------------------------------------------------
def _resident_spec(arr):
    """Full-array block whose block index never changes (stays VMEM-resident
    across batch grid steps)."""
    nd = arr.ndim
    return pl.BlockSpec(arr.shape, lambda i, _nd=nd: (0,) * _nd)


def _batch_tile(B):
    # Big batches get 128-row tiles split across grid points (and across
    # TensorCores on v7x via the parallel semantic); small batches are a
    # single block.
    if B > 128 and B % 128 == 0:
        return 128
    return B


def decoder_forward(params, query, memory_keys=None,
                    memory_values_multi_hot=None, *, hop_count=2):
    """query: (B, H). Returns logits (B, output_size).

    B == 1 reproduces the PyTorch module exactly; B > 1 runs B independent
    queries against the same memory (throughput batching).
    """
    B, H = query.shape
    O = params["b2"].shape[-1]
    tb = _batch_tile(B)
    grid = (B // tb,)
    out_shape = jax.ShapeDtypeStruct((B, O), jnp.float32)
    q_spec = pl.BlockSpec((tb, H), lambda i: (i, 0))
    out_spec = pl.BlockSpec((tb, O), lambda i: (i, 0))
    cparams = pltpu.CompilerParams(dimension_semantics=("parallel",))

    if memory_keys is None:
        inputs = (query, params["emb"], params["emb_t"], params["w1t"],
                  params["b1"], params["w2t"], params["b2"])
        return pl.pallas_call(
            _decoder_no_memory_kernel,
            out_shape=out_shape,
            grid=grid,
            in_specs=[q_spec] + [_resident_spec(x) for x in inputs[1:]],
            out_specs=out_spec,
            compiler_params=cparams,
        )(*inputs)

    # Per-call layout / algebra prep (tiny; wrap decoder_forward in jax.jit so
    # these fuse into the step instead of running as eager HBM round-trips):
    keys_t = memory_keys.T                                           # (H, N)
    # Hoist V = multi_hot @ emb out of the hop loop (exact: dropout_rate = 0).
    v_mat = jnp.dot(memory_values_multi_hot, params["emb"],
                    preferred_element_type=jnp.float32)              # (N, H)

    inputs = (query, keys_t, v_mat, params["emb"], params["emb_t"],
              params["w1t"], params["b1"], params["w2t"], params["b2"])
    return pl.pallas_call(
        functools.partial(_decoder_memory_kernel, hop_count),
        out_shape=out_shape,
        grid=grid,
        in_specs=[q_spec] + [_resident_spec(x) for x in inputs[1:]],
        out_specs=out_spec,
        compiler_params=cparams,
    )(*inputs)


def build_multi_hot(memory_values, medication_count):
    """Python list-of-index-lists -> (N, M) float32 multi-hot (host glue,
    mirrors the NumPy loop in the PyTorch forward)."""
    mh = np.zeros((len(memory_values), medication_count), dtype=np.float32)
    for idx, admission in enumerate(memory_values):
        mh[idx, np.asarray(admission)] = 1.0
    return jnp.asarray(mh)


# ----------------------------------------------------------------------------
# parameter init (matches PyTorch defaults + initialize_weights); all layout
# prep (transposes, 2-D biases) is done ONCE here, not per decode step.
# ----------------------------------------------------------------------------
def init_decoder_params(key, hidden_size, output_size, medication_count):
    ks = jax.random.split(key, 5)
    init_range = 0.1                                # embedding ~ U(-0.1, 0.1)
    u = lambda k, shape, r: jax.random.uniform(k, shape, jnp.float32, -r, r)
    k1 = 1.0 / float(np.sqrt(3 * hidden_size))      # Linear default init
    k2 = 1.0 / float(np.sqrt(2 * hidden_size))
    emb = u(ks[0], (medication_count, hidden_size), init_range)
    w1 = u(ks[1], (2 * hidden_size, 3 * hidden_size), k1)   # torch (out, in)
    b1 = u(ks[2], (2 * hidden_size,), k1)
    w2 = u(ks[3], (output_size, 2 * hidden_size), k2)
    b2 = u(ks[4], (output_size,), k2)
    return {
        "emb": emb,                      # (M, H)
        "emb_t": emb.T,                  # (H, M)  one-time transpose
        "w1t": w1.T,                     # (3H, 2H) x @ W layout
        "b1": b1.reshape(1, -1),         # (1, 2H)
        "w2t": w2.T,                     # (2H, O)
        "b2": b2.reshape(1, -1),         # (1, O)
    }


# ----------------------------------------------------------------------------
# pure-JAX reference for correctness check (exact softmax division)
# ----------------------------------------------------------------------------
def _decoder_ref(params, query, memory_keys, mh, hop_count):
    emb = params["emb"]

    def mlp(q, co, ce):
        x = jnp.maximum(jnp.concatenate([q, co, ce], axis=-1), 0.0)
        h = jnp.maximum(x @ params["w1t"] + params["b1"], 0.0)
        return h @ params["w2t"] + params["b2"]

    if memory_keys is None:
        we = jax.nn.softmax(query @ emb.T, axis=-1)
        ce = we @ emb
        return mlp(query, ce, ce)

    ctx = query
    for _ in range(hop_count):
        wkv = jax.nn.softmax(ctx @ memory_keys.T, axis=-1)
        ctx = ctx + (wkv @ mh) @ emb
    we = jax.nn.softmax(query @ emb.T, axis=-1)
    ce = we @ emb
    return mlp(query, ctx, ce)


# ----------------------------------------------------------------------------
if __name__ == "__main__":
    hidden_size = 64
    output_size = 128            # lane-dense output
    medication_count = 150
    hop_count = 3
    n_admissions = 8
    batch = 8

    key = jax.random.PRNGKey(0)
    k_par, k_q, k_qb, k_keys = jax.random.split(key, 4)
    params = init_decoder_params(k_par, hidden_size, output_size,
                                 medication_count)

    query1 = jax.random.normal(k_q, (1, hidden_size), jnp.float32)      # module semantics (B=1)
    query_b = jax.random.normal(k_qb, (batch, hidden_size), jnp.float32)  # batched throughput path
    memory_keys = jax.random.normal(k_keys, (n_admissions, hidden_size),
                                    jnp.float32)
    # memory_values: per-admission lists of prescribed medication indices
    rng = np.random.RandomState(0)
    memory_values = [rng.choice(medication_count, size=int(rng.randint(3, 12)),
                                replace=False)
                     for _ in range(n_admissions)]
    mh = build_multi_hot(memory_values, medication_count)

    # jit the wrapper so the tiny per-call prep (keys.T, mh @ emb) is
    # XLA-scheduled right next to the pallas_call, not eager per-op dispatch.
    fwd_mem = jax.jit(functools.partial(decoder_forward, hop_count=hop_count))
    fwd_cold = jax.jit(
        lambda p, q: decoder_forward(p, q, None, None, hop_count=hop_count))

    out_mem = fwd_mem(params, query1, memory_keys, mh)
    out_cold = fwd_cold(params, query1)
    out_batch = fwd_mem(params, query_b, memory_keys, mh)
    jax.block_until_ready((out_mem, out_cold, out_batch))

    # verify against pure-JAX reference (exact softmax); tolerance accounts
    # for the EUP approx reciprocal used inside the kernel softmaxes.
    ref_mem = _decoder_ref(params, query1, memory_keys, mh, hop_count)
    ref_cold = _decoder_ref(params, query1, None, None, hop_count)
    ref_batch = _decoder_ref(params, query_b, memory_keys, mh, hop_count)

    tol = dict(atol=1e-2, rtol=1e-2)
    assert out_mem.shape == (1, output_size)
    assert out_cold.shape == (1, output_size)
    assert out_batch.shape == (batch, output_size)
    assert jnp.allclose(out_mem, ref_mem, **tol), \
        float(jnp.max(jnp.abs(out_mem - ref_mem)))
    assert jnp.allclose(out_cold, ref_cold, **tol), \
        float(jnp.max(jnp.abs(out_cold - ref_cold)))
    assert jnp.allclose(out_batch, ref_batch, **tol), \
        float(jnp.max(jnp.abs(out_batch - ref_batch)))

    print("KERNEL_OK")
</pallas_src>

<mosaic_0001>
module attributes {stable_mosaic.version = 11 : i64} {
  func.func @_decoder_memory_kernel(%arg0: i32, %arg1: memref<1x64xf32, #tpu.memory_space<vmem>>, %arg2: memref<64x8xf32, #tpu.memory_space<vmem>>, %arg3: memref<8x64xf32, #tpu.memory_space<vmem>>, %arg4: memref<150x64xf32, #tpu.memory_space<vmem>>, %arg5: memref<64x150xf32, #tpu.memory_space<vmem>>, %arg6: memref<192x128xf32, #tpu.memory_space<vmem>>, %arg7: memref<1x128xf32, #tpu.memory_space<vmem>>, %arg8: memref<128x128xf32, #tpu.memory_space<vmem>>, %arg9: memref<1x128xf32, #tpu.memory_space<vmem>>, %arg10: memref<1x128xf32, #tpu.memory_space<vmem>>) attributes {dimension_semantics = [#tpu.dimension_semantics<parallel>], iteration_bounds = array<i64: 1>, scalar_prefetch = 0 : i64, scratch_operands = 0 : i64, tpu.core_type = #tpu.core_type<tc>, window_params = [{transform_indices = @transform_0, window_bounds = array<i64: 1, 64>}, {pipeline_mode = #tpu.pipeline_mode<synchronous>, transform_indices = @transform_1, window_bounds = array<i64: 64, 8>}, {pipeline_mode = #tpu.pipeline_mode<synchronous>, transform_indices = @transform_2, window_bounds = array<i64: 8, 64>}, {pipeline_mode = #tpu.pipeline_mode<synchronous>, transform_indices = @transform_3, window_bounds = array<i64: 150, 64>}, {pipeline_mode = #tpu.pipeline_mode<synchronous>, transform_indices = @transform_4, window_bounds = array<i64: 64, 150>}, {pipeline_mode = #tpu.pipeline_mode<synchronous>, transform_indices = @transform_5, window_bounds = array<i64: 192, 128>}, {pipeline_mode = #tpu.pipeline_mode<synchronous>, transform_indices = @transform_6, window_bounds = array<i64: 1, 128>}, {pipeline_mode = #tpu.pipeline_mode<synchronous>, transform_indices = @transform_7, window_bounds = array<i64: 128, 128>}, {pipeline_mode = #tpu.pipeline_mode<synchronous>, transform_indices = @transform_8, window_bounds = array<i64: 1, 128>}, {transform_indices = @transform_9, window_bounds = array<i64: 1, 128>}]} {
    %c0 = arith.constant 0 : index
    %c0_0 = arith.constant 0 : index
    %0 = vector.load %arg1[%c0, %c0_0] : memref<1x64xf32, #tpu.memory_space<vmem>>, vector<1x64xf32>
    %c0_1 = arith.constant 0 : index
    %c0_2 = arith.constant 0 : index
    %1 = vector.load %arg2[%c0_1, %c0_2] : memref<64x8xf32, #tpu.memory_space<vmem>>, vector<64x8xf32>
    %c0_3 = arith.constant 0 : index
    %c0_4 = arith.constant 0 : index
    %2 = vector.load %arg3[%c0_3, %c0_4] : memref<8x64xf32, #tpu.memory_space<vmem>>, vector<8x64xf32>
    %cst = arith.constant dense<0.000000e+00> : vector<1x8xf32>
    %3 = tpu.matmul %0, %1, %cst {dimension_numbers = #tpu.dot_dimension_numbers<[1], [0], [0], [1], [0, 0, 1, 1], [], []>, precision = #tpu.contract_precision<fp32>} : vector<1x64xf32>, vector<64x8xf32>, vector<1x8xf32> -> vector<1x8xf32>
    %cst_5 = arith.constant dense<0xFF800000> : vector<1xf32>
    %4 = vector.multi_reduction <maximumf>, %3, %cst_5 [1] : vector<1x8xf32> to vector<1xf32>
    %5 = vector.shape_cast %4 : vector<1xf32> to vector<1x1xf32>
    %6 = vector.broadcast %5 : vector<1x1xf32> to vector<1x8xf32>
    %7 = arith.subf %3, %6 : vector<1x8xf32>
    %8 = math.exp %7 : vector<1x8xf32>
    %cst_6 = arith.constant dense<0.000000e+00> : vector<1xf32>
    %9 = vector.multi_reduction <add>, %8, %cst_6 [1] : vector<1x8xf32> to vector<1xf32>
    %10 = vector.shape_cast %9 : vector<1xf32> to vector<1x1xf32>
    %11 = tpu.reciprocal %10 {approx = true} : vector<1x1xf32> -> vector<1x1xf32>
    %12 = vector.broadcast %11 : vector<1x1xf32> to vector<1x8xf32>
    %13 = arith.mulf %8, %12 : vector<1x8xf32>
    %cst_7 = arith.constant dense<0.000000e+00> : vector<1x64xf32>
    %14 = tpu.matmul %13, %2, %cst_7 {dimension_numbers = #tpu.dot_dimension_numbers<[1], [0], [0], [1], [0, 0, 1, 1], [], []>, precision = #tpu.contract_precision<fp32>} : vector<1x8xf32>, vector<8x64xf32>, vector<1x64xf32> -> vector<1x64xf32>
    %15 = arith.addf %0, %14 : vector<1x64xf32>
    %cst_8 = arith.constant dense<0.000000e+00> : vector<1x8xf32>
    %16 = tpu.matmul %15, %1, %cst_8 {dimension_numbers = #tpu.dot_dimension_numbers<[1], [0], [0], [1], [0, 0, 1, 1], [], []>, precision = #tpu.contract_precision<fp32>} : vector<1x64xf32>, vector<64x8xf32>, vector<1x8xf32> -> vector<1x8xf32>
    %cst_9 = arith.constant dense<0xFF800000> : vector<1xf32>
    %17 = vector.multi_reduction <maximumf>, %16, %cst_9 [1] : vector<1x8xf32> to vector<1xf32>
    %18 = vector.shape_cast %17 : vector<1xf32> to vector<1x1xf32>
    %19 = vector.broadcast %18 : vector<1x1xf32> to vector<1x8xf32>
    %20 = arith.subf %16, %19 : vector<1x8xf32>
    %21 = math.exp %20 : vector<1x8xf32>
    %cst_10 = arith.constant dense<0.000000e+00> : vector<1xf32>
    %22 = vector.multi_reduction <add>, %21, %cst_10 [1] : vector<1x8xf32> to vector<1xf32>
    %23 = vector.shape_cast %22 : vector<1xf32> to vector<1x1xf32>
    %24 = tpu.reciprocal %23 {approx = true} : vector<1x1xf32> -> vector<1x1xf32>
    %25 = vector.broadcast %24 : vector<1x1xf32> to vector<1x8xf32>
    %26 = arith.mulf %21, %25 : vector<1x8xf32>
    %cst_11 = arith.constant dense<0.000000e+00> : vector<1x64xf32>
    %27 = tpu.matmul %26, %2, %cst_11 {dimension_numbers = #tpu.dot_dimension_numbers<[1], [0], [0], [1], [0, 0, 1, 1], [], []>, precision = #tpu.contract_precision<fp32>} : vector<1x8xf32>, vector<8x64xf32>, vector<1x64xf32> -> vector<1x64xf32>
    %28 = arith.addf %15, %27 : vector<1x64xf32>
    %cst_12 = arith.constant dense<0.000000e+00> : vector<1x8xf32>
    %29 = tpu.matmul %28, %1, %cst_12 {dimension_numbers = #tpu.dot_dimension_numbers<[1], [0], [0], [1], [0, 0, 1, 1], [], []>, precision = #tpu.contract_precision<fp32>} : vector<1x64xf32>, vector<64x8xf32>, vector<1x8xf32> -> vector<1x8xf32>
    %cst_13 = arith.constant dense<0xFF800000> : vector<1xf32>
    %30 = vector.multi_reduction <maximumf>, %29, %cst_13 [1] : vector<1x8xf32> to vector<1xf32>
    %31 = vector.shape_cast %30 : vector<1xf32> to vector<1x1xf32>
    %32 = vector.broadcast %31 : vector<1x1xf32> to vector<1x8xf32>
    %33 = arith.subf %29, %32 : vector<1x8xf32>
    %34 = math.exp %33 : vector<1x8xf32>
    %cst_14 = arith.constant dense<0.000000e+00> : vector<1xf32>
    %35 = vector.multi_reduction <add>, %34, %cst_14 [1] : vector<1x8xf32> to vector<1xf32>
    %36 = vector.shape_cast %35 : vector<1xf32> to vector<1x1xf32>
    %37 = tpu.reciprocal %36 {approx = true} : vector<1x1xf32> -> vector<1x1xf32>
    %38 = vector.broadcast %37 : vector<1x1xf32> to vector<1x8xf32>
    %39 = arith.mulf %34, %38 : vector<1x8xf32>
    %cst_15 = arith.constant dense<0.000000e+00> : vector<1x64xf32>
    %40 = tpu.matmul %39, %2, %cst_15 {dimension_numbers = #tpu.dot_dimension_numbers<[1], [0], [0], [1], [0, 0, 1, 1], [], []>, precision = #tpu.contract_precision<fp32>} : vector<1x8xf32>, vector<8x64xf32>, vector<1x64xf32> -> vector<1x64xf32>
    %41 = arith.addf %28, %40 : vector<1x64xf32>
    %c0_16 = arith.constant 0 : index
    %c0_17 = arith.constant 0 : index
    %42 = vector.load %arg5[%c0_16, %c0_17] : memref<64x150xf32, #tpu.memory_space<vmem>>, vector<64x150xf32>
    %cst_18 = arith.constant dense<0.000000e+00> : vector<1x150xf32>
    %43 = tpu.matmul %0, %42, %cst_18 {dimension_numbers = #tpu.dot_dimension_numbers<[1], [0], [0], [1], [0, 0, 1, 1], [], []>, precision = #tpu.contract_precision<fp32>} : vector<1x64xf32>, vector<64x150xf32>, vector<1x150xf32> -> vector<1x150xf32>
    %cst_19 = arith.constant dense<0xFF800000> : vector<1xf32>
    %44 = vector.multi_reduction <maximumf>, %43, %cst_19 [1] : vector<1x150xf32> to vector<1xf32>
    %45 = vector.shape_cast %44 : vector<1xf32> to vector<1x1xf32>
    %46 = vector.broadcast %45 : vector<1x1xf32> to vector<1x150xf32>
    %47 = arith.subf %43, %46 : vector<1x150xf32>
    %48 = math.exp %47 : vector<1x150xf32>
    %cst_20 = arith.constant dense<0.000000e+00> : vector<1xf32>
    %49 = vector.multi_reduction <add>, %48, %cst_20 [1] : vector<1x150xf32> to vector<1xf32>
    %50 = vector.shape_cast %49 : vector<1xf32> to vector<1x1xf32>
    %51 = tpu.reciprocal %50 {approx = true} : vector<1x1xf32> -> vector<1x1xf32>
    %52 = vector.broadcast %51 : vector<1x1xf32> to vector<1x150xf32>
    %53 = arith.mulf %48, %52 : vector<1x150xf32>
    %c0_21 = arith.constant 0 : index
    %c0_22 = arith.constant 0 : index
    %54 = vector.load %arg4[%c0_21, %c0_22] : memref<150x64xf32, #tpu.memory_space<vmem>>, vector<150x64xf32>
    %cst_23 = arith.constant dense<0.000000e+00> : vector<1x64xf32>
    %55 = tpu.matmul %53, %54, %cst_23 {dimension_numbers = #tpu.dot_dimension_numbers<[1], [0], [0], [1], [0, 0, 1, 1], [], []>, precision = #tpu.contract_precision<fp32>} : vector<1x150xf32>, vector<150x64xf32>, vector<1x64xf32> -> vector<1x64xf32>
    %cst_24 = arith.constant 0.000000e+00 : f32
    %56 = vector.broadcast %cst_24 : f32 to vector<1x64xf32>
    %57 = arith.maximumf %0, %56 : vector<1x64xf32>
    %c0_25 = arith.constant 0 : index
    %c0_26 = arith.constant 0 : index
    %58 = vector.load %arg6[%c0_25, %c0_26] : memref<192x128xf32, #tpu.memory_space<vmem>>, vector<64x128xf32>
    %cst_27 = arith.constant dense<0.000000e+00> : vector<1x128xf32>
    %59 = tpu.matmul %57, %58, %cst_27 {dimension_numbers = #tpu.dot_dimension_numbers<[1], [0], [0], [1], [0, 0, 1, 1], [], []>, precision = #tpu.contract_precision<fp32>} : vector<1x64xf32>, vector<64x128xf32>, vector<1x128xf32> -> vector<1x128xf32>
    %cst_28 = arith.constant 0.000000e+00 : f32
    %60 = vector.broadcast %cst_28 : f32 to vector<1x64xf32>
    %61 = arith.maximumf %41, %60 : vector<1x64xf32>
    %c64 = arith.constant 64 : index
    %c0_29 = arith.constant 0 : index
    %62 = vector.load %arg6[%c64, %c0_29] : memref<192x128xf32, #tpu.memory_space<vmem>>, vector<64x128xf32>
    %cst_30 = arith.constant dense<0.000000e+00> : vector<1x128xf32>
    %63 = tpu.matmul %61, %62, %cst_30 {dimension_numbers = #tpu.dot_dimension_numbers<[1], [0], [0], [1], [0, 0, 1, 1], [], []>, precision = #tpu.contract_precision<fp32>} : vector<1x64xf32>, vector<64x128xf32>, vector<1x128xf32> -> vector<1x128xf32>
    %64 = arith.addf %59, %63 : vector<1x128xf32>
    %cst_31 = arith.constant 0.000000e+00 : f32
    %65 = vector.broadcast %cst_31 : f32 to vector<1x64xf32>
    %66 = arith.maximumf %55, %65 : vector<1x64xf32>
    %c128 = arith.constant 128 : index
    %c0_32 = arith.constant 0 : index
    %67 = vector.load %arg6[%c128, %c0_32] : memref<192x128xf32, #tpu.memory_space<vmem>>, vector<64x128xf32>
    %cst_33 = arith.constant dense<0.000000e+00> : vector<1x128xf32>
    %68 = tpu.matmul %66, %67, %cst_33 {dimension_numbers = #tpu.dot_dimension_numbers<[1], [0], [0], [1], [0, 0, 1, 1], [], []>, precision = #tpu.contract_precision<fp32>} : vector<1x64xf32>, vector<64x128xf32>, vector<1x128xf32> -> vector<1x128xf32>
    %69 = arith.addf %64, %68 : vector<1x128xf32>
    %c0_34 = arith.constant 0 : index
    %c0_35 = arith.constant 0 : index
    %70 = vector.load %arg7[%c0_34, %c0_35] : memref<1x128xf32, #tpu.memory_space<vmem>>, vector<1x128xf32>
    %71 = arith.addf %69, %70 : vector<1x128xf32>
    %cst_36 = arith.constant 0.000000e+00 : f32
    %72 = vector.broadcast %cst_36 : f32 to vector<1x128xf32>
    %73 = arith.maximumf %71, %72 : vector<1x128xf32>
    %c0_37 = arith.constant 0 : index
    %c0_38 = arith.constant 0 : index
    %74 = vector.load %arg8[%c0_37, %c0_38] : memref<128x128xf32, #tpu.memory_space<vmem>>, vector<128x128xf32>
    %cst_39 = arith.constant dense<0.000000e+00> : vector<1x128xf32>
    %75 = tpu.matmul %73, %74, %cst_39 {dimension_numbers = #tpu.dot_dimension_numbers<[1], [0], [0], [1], [0, 0, 1, 1], [], []>, precision = #tpu.contract_precision<fp32>} : vector<1x128xf32>, vector<128x128xf32>, vector<1x128xf32> -> vector<1x128xf32>
    %c0_40 = arith.constant 0 : index
    %c0_41 = arith.constant 0 : index
    %76 = vector.load %arg9[%c0_40, %c0_41] : memref<1x128xf32, #tpu.memory_space<vmem>>, vector<1x128xf32>
    %77 = arith.addf %75, %76 : vector<1x128xf32>
    %c0_42 = arith.constant 0 : index
    %c0_43 = arith.constant 0 : index
    %78 = vector.load %arg10[%c0_42, %c0_43] : memref<1x128xf32, #tpu.memory_space<vmem>>, vector<1x128xf32>
    tpu.vector_store %arg10[%c0_42, %c0_43], %77 {strides = array<i32>} : memref<1x128xf32, #tpu.memory_space<vmem>>, vector<1x128xf32>,
    return
  }
  func.func @transform_0(%arg0: i32) -> (i32, i32) {
    %c0_i32 = arith.constant 0 : i32
    %c0_i32_0 = arith.constant 0 : i32
    return %arg0, %c0_i32 : i32, i32
  }
  func.func @transform_1(%arg0: i32) -> (i32, i32) {
    %c0_i32 = arith.constant 0 : i32
    %c0_i32_0 = arith.constant 0 : i32
    %c0_i32_1 = arith.constant 0 : i32
    return %c0_i32, %c0_i32_0 : i32, i32
  }
  func.func @transform_2(%arg0: i32) -> (i32, i32) {
    %c0_i32 = arith.constant 0 : i32
    %c0_i32_0 = arith.constant 0 : i32
    %c0_i32_1 = arith.constant 0 : i32
    return %c0_i32, %c0_i32_0 : i32, i32
  }
  func.func @transform_3(%arg0: i32) -> (i32, i32) {
    %c0_i32 = arith.constant 0 : i32
    %c0_i32_0 = arith.constant 0 : i32
    %c0_i32_1 = arith.constant 0 : i32
    return %c0_i32, %c0_i32_0 : i32, i32
  }
  func.func @transform_4(%arg0: i32) -> (i32, i32) {
    %c0_i32 = arith.constant 0 : i32
    %c0_i32_0 = arith.constant 0 : i32
    %c0_i32_1 = arith.constant 0 : i32
    return %c0_i32, %c0_i32_0 : i32, i32
  }
  func.func @transform_5(%arg0: i32) -> (i32, i32) {
    %c0_i32 = arith.constant 0 : i32
    %c0_i32_0 = arith.constant 0 : i32
    %c0_i32_1 = arith.constant 0 : i32
    return %c0_i32, %c0_i32_0 : i32, i32
  }
  func.func @transform_6(%arg0: i32) -> (i32, i32) {
    %c0_i32 = arith.constant 0 : i32
    %c0_i32_0 = arith.constant 0 : i32
    %c0_i32_1 = arith.constant 0 : i32
    return %c0_i32, %c0_i32_0 : i32, i32
  }
  func.func @transform_7(%arg0: i32) -> (i32, i32) {
    %c0_i32 = arith.constant 0 : i32
    %c0_i32_0 = arith.constant 0 : i32
    %c0_i32_1 = arith.constant 0 : i32
    return %c0_i32, %c0_i32_0 : i32, i32
  }
  func.func @transform_8(%arg0: i32) -> (i32, i32) {
    %c0_i32 = arith.constant 0 : i32
    %c0_i32_0 = arith.constant 0 : i32
    %c0_i32_1 = arith.constant 0 : i32
    return %c0_i32, %c0_i32_0 : i32, i32
  }
  func.func @transform_9(%arg0: i32) -> (i32, i32) {
    %c0_i32 = arith.constant 0 : i32
    %c0_i32_0 = arith.constant 0 : i32
    return %arg0, %c0_i32 : i32, i32
  }
}

</mosaic_0001>

<llo_original>
// kernel: decoder_forward.1
$region0: #{decoder_forward.1}
  #allocation0 [shape = 'u32[]', space=smem, size = 0x4, offset = 0x4, fixed_abs, tag = 'smem constant byte address 0x4 - core index']
  #allocation1 [shape = 'u32[72,128]{1,0:T(1,128)}', space=vmem, size = 0x9000, scoped, tag = 'internal scratch']
  %s0 = inlined_call_operand.vmem [shape: f32[1,64], index: 0, kind: input, shape index: {}]
  %s1 = inlined_call_operand.vmem [shape: f32[64,8], index: 1, kind: input, shape index: {}]
  %s2 = inlined_call_operand.vmem [shape: f32[8,64], index: 2, kind: input, shape index: {}]
  %s3 = inlined_call_operand.vmem [shape: f32[150,64], index: 3, kind: input, shape index: {}]
  %s4 = inlined_call_operand.vmem [shape: f32[64,150], index: 4, kind: input, shape index: {}]
  %s5 = inlined_call_operand.vmem [shape: f32[192,128], index: 5, kind: input, shape index: {}]
  %s6 = inlined_call_operand.vmem [shape: f32[1,128], index: 6, kind: input, shape index: {}]
  %s7 = inlined_call_operand.hbm [shape: f32[128,128], index: 7, kind: input, shape index: {}]
  %s8 = inlined_call_operand.vmem [shape: f32[1,128], index: 8, kind: input, shape index: {}]
  %s9 = inlined_call_operand.hbm [shape: f32[1,128], index: 9, kind: output, shape index: {}]
  %s10 = sld [smem:[#allocation0]]
  $region50: #{decoder_forward.1} parent=0
    _
  %s12 = ssub.s32 1, %s10
  %s13 = scalar_select 0, %s12, %s10
  $region1: #{decoder_forward.1} parent=0
    #allocation2 [shape = 'u8[65536]{0}', space=vmem, size = 0x10000, scoped, tag = 'input window, operand 7, single buffered']
    #allocation3 [shape = 's32[1]{0}', space=sflag, size = 0x4, scoped, tag = 'scoped memory for decoder_forward.1']
    #allocation4 [shape = 's32[1]{0}', space=sflag, size = 0x4, scoped, tag = 'scoped memory for decoder_forward.1']
    #allocation5 [shape = 'u8[512]{0}', space=vmem, size = 0x400, scoped, tag = 'output window, operand 0, single buffered']
    %14 = vsyncpa [#allocation3], 0
    %15 = vsyncpa [#allocation4], 0
    // Predicated region
    $region2: #{decoder_forward.1} parent=1 // pred_check
      _
    $region3: #{decoder_forward.1} parent=1 // pred_check_branch
      %17 = sbr.rel (0) target = $region5
    $region4: #{decoder_forward.1} parent=1 // pred_region
      _
    $region5: #{decoder_forward.1} parent=1 // pred_fallthru
      _
    // Predicated region
    $region6: #{decoder_forward.1} parent=1 // pred_check
      _
    $region7: #{decoder_forward.1} parent=1 // pred_check_branch
      %19 = sbr.rel (0) target = $region9
    $region8: #{decoder_forward.1} parent=1 // pred_region
      _
    $region9: #{decoder_forward.1} parent=1 // pred_fallthru
      _
    // Predicated region
    $region10: #{decoder_forward.1} parent=1 // pred_check
      _
    $region11: #{decoder_forward.1} parent=1 // pred_check_branch
      %21 = sbr.rel (0) target = $region13
    $region12: #{decoder_forward.1} parent=1 // pred_region
      _
    $region13: #{decoder_forward.1} parent=1 // pred_fallthru
      _
    // Predicated region
    $region14: #{decoder_forward.1} parent=1 // pred_check
      _
    $region15: #{decoder_forward.1} parent=1 // pred_check_branch
      %23 = sbr.rel (0) target = $region17
    $region16: #{decoder_forward.1} parent=1 // pred_region
      _
    $region17: #{decoder_forward.1} parent=1 // pred_fallthru
      _
    // Predicated region
    $region18: #{decoder_forward.1} parent=1 // pred_check
      _
    $region19: #{decoder_forward.1} parent=1 // pred_check_branch
      %25 = sbr.rel (0) target = $region21
    $region20: #{decoder_forward.1} parent=1 // pred_region
      _
    $region21: #{decoder_forward.1} parent=1 // pred_fallthru
      _
    // Predicated region
    $region22: #{decoder_forward.1} parent=1 // pred_check
      _
    $region23: #{decoder_forward.1} parent=1 // pred_check_branch
      %27 = sbr.rel (0) target = $region25
    $region24: #{decoder_forward.1} parent=1 // pred_region
      _
    $region25: #{decoder_forward.1} parent=1 // pred_fallthru
      _
    // Predicated region
    $region26: #{decoder_forward.1} parent=1 // pred_check
      _
    $region27: #{decoder_forward.1} parent=1 // pred_check_branch
      %29 = sbr.rel (0) target = $region29
    $region28: #{decoder_forward.1} parent=1 // pred_region
      _
    $region29: #{decoder_forward.1} parent=1 // pred_fallthru
      _
    // Predicated region
    $region30: #{decoder_forward.1} parent=1 // pred_check
      _
    $region31: #{decoder_forward.1} parent=1 // pred_check_branch
      %31 = sbr.rel (0) target = $region33
    $region32: #{decoder_forward.1} parent=1 // pred_region
      %33 = vsyncadd [#allocation3], 0
      %s34 = sshll.u32 %s7, 4
      %s35 = int_to_ptr.hbm [resolvable:$true] %s34
      %s36 = sshll.u32 [#allocation2], 4
      %s37 = int_to_ptr.vmem [resolvable:$true] %s36
      %42 = dma.hbm_to_vmem [thread:$0]  %s35, 2048, %s37, [#allocation3], 128, 128, 8
    $region33: #{decoder_forward.1} parent=1 // pred_fallthru
      _
    // Predicated region
    $region34: #{decoder_forward.1} parent=1 // pred_check
      _
    $region35: #{decoder_forward.1} parent=1 // pred_check_branch
      %44 = sbr.rel (0) target = $region37
    $region36: #{decoder_forward.1} parent=1 // pred_region
      _
    $region37: #{decoder_forward.1} parent=1 // pred_fallthru
      _
    // Predicated region
    $region38: #{decoder_forward.1} parent=1 // pred_check
      _
    $region39: #{decoder_forward.1} parent=1 // pred_check_branch
      %46 = sbr.rel (0) target = $region41
    $region40: #{decoder_forward.1} parent=1 // pred_region
      %48 = dma.done [#allocation3], 2048
    $region41: #{decoder_forward.1} parent=1 // pred_fallthru
      _
    %v49 = vld [vmem:[%s0] sm:$0x1]
    %v50 = vld [vmem:[%s1] sm:$0xff]
    %v51 = vld [vmem:[%s1 + $0x8] sm:$0xff]
    %v52 = vld [vmem:[%s1 + $0x10] sm:$0xff]
    %v53 = vld [vmem:[%s1 + $0x18] sm:$0xff]
    %v54 = vld [vmem:[%s1 + $0x20] sm:$0xff]
    %v55 = vld [vmem:[%s1 + $0x28] sm:$0xff]
    %v56 = vld [vmem:[%s1 + $0x30] sm:$0xff]
    %v57 = vld [vmem:[%s1 + $0x38] sm:$0xff]
    %v58 = vld [vmem:[%s2] sm:$0xff]
    %vm59 = vcmask 523264
    %v61 = vsel %vm59, %v49, 0
    %63 = vmatpush.msra.mxu0 0.0
    %64 = vmatpush.msra.mxu0 0.0
    %65 = vmatpush.msra.mxu0 0.0
    %66 = vmatpush.msra.mxu0 0.0
    %67 = vmatpush.msra.mxu0 0.0
    %68 = vmatpush.msra.mxu0 0.0
    %69 = vmatpush.msra.mxu0 0.0
    %70 = vmatpush.msra.mxu0 0.0
    %v71 = vand.u32 %v57, 4294901760
    %72 = vmatpush.msra.mxu0 %v71
    %v73 = vand.u32 %v56, 4294901760
    %74 = vmatpush.msra.mxu0 %v73
    %v75 = vand.u32 %v55, 4294901760
    %76 = vmatpush.msra.mxu0 %v75
    %v77 = vand.u32 %v54, 4294901760
    %78 = vmatpush.msra.mxu0 %v77
    %v79 = vand.u32 %v53, 4294901760
    %80 = vmatpush.msra.mxu0 %v79
    %v81 = vand.u32 %v52, 4294901760
    %82 = vmatpush.msra.mxu0 %v81
    %v83 = vand.u32 %v51, 4294901760
    %84 = vmatpush.msra.mxu0 %v83
    %v85 = vand.u32 %v50, 4294901760
    %86 = vmatpush.msra.mxu0 %v85
    %v87 = vand.u32 %v61, 4294901760
    %v88 = vsub.f32 %v61, %v87
    %v89 = vand.u32 %v88, 4294901760
    %v90 = vsub.f32 %v88, %v89
    %v91 = vand.u32 %v90, 4294901760
    %92 = vmatmul.f32.gmra.mxu0 %v91
    %v93 = vpop.f32.mrf.mxu0
    %v94 = vadd.f32 0.0, %v93
    %95 = vdwg.mxu0
    %96 = vmatpush.msra.mxu0 0.0
    %97 = vmatpush.msra.mxu0 0.0
    %98 = vmatpush.msra.mxu0 0.0
    %99 = vmatpush.msra.mxu0 0.0
    %100 = vmatpush.msra.mxu0 0.0
    %101 = vmatpush.msra.mxu0 0.0
    %102 = vmatpush.msra.mxu0 0.0
    %103 = vmatpush.msra.mxu0 0.0
    %v104 = vand.u32 %v57, 4294901760
    %v105 = vsub.f32 %v57, %v104
    %v106 = vand.u32 %v105, 4294901760
    %v107 = vsub.f32 %v105, %v106
    %v108 = vand.u32 %v107, 4294901760
    %109 = vmatpush.msra.mxu0 %v108
    %v110 = vand.u32 %v56, 4294901760
    %v111 = vsub.f32 %v56, %v110
    %v112 = vand.u32 %v111, 4294901760
    %v113 = vsub.f32 %v111, %v112
    %v114 = vand.u32 %v113, 4294901760
    %115 = vmatpush.msra.mxu0 %v114
    %v116 = vand.u32 %v55, 4294901760
    %v117 = vsub.f32 %v55, %v116
    %v118 = vand.u32 %v117, 4294901760
    %v119 = vsub.f32 %v117, %v118
    %v120 = vand.u32 %v119, 4294901760
    %121 = vmatpush.msra.mxu0 %v120
    %v122 = vand.u32 %v54, 4294901760
    %v123 = vsub.f32 %v54, %v122
    %v124 = vand.u32 %v123, 4294901760
    %v125 = vsub.f32 %v123, %v124
    %v126 = vand.u32 %v125, 4294901760
    %127 = vmatpush.msra.mxu0 %v126
    %v128 = vand.u32 %v53, 4294901760
    %v129 = vsub.f32 %v53, %v128
    %v130 = vand.u32 %v129, 4294901760
    %v131 = vsub.f32 %v129, %v130
    %v132 = vand.u32 %v131, 4294901760
    %133 = vmatpush.msra.mxu0 %v132
    %v134 = vand.u32 %v52, 4294901760
    %v135 = vsub.f32 %v52, %v134
    %v136 = vand.u32 %v135, 4294901760
    %v137 = vsub.f32 %v135, %v136
    %v138 = vand.u32 %v137, 4294901760
    %139 = vmatpush.msra.mxu0 %v138
    %v140 = vand.u32 %v51, 4294901760
    %v141 = vsub.f32 %v51, %v140
    %v142 = vand.u32 %v141, 4294901760
    %v143 = vsub.f32 %v141, %v142
    %v144 = vand.u32 %v143, 4294901760
    %145 = vmatpush.msra.mxu0 %v144
    %v146 = vand.u32 %v50, 4294901760
    %v147 = vsub.f32 %v50, %v146
    %v148 = vand.u32 %v147, 4294901760
    %v149 = vsub.f32 %v147, %v148
    %v150 = vand.u32 %v149, 4294901760
    %151 = vmatpush.msra.mxu0 %v150
    %v152 = vand.u32 %v61, 4294901760
    %153 = vmatmul.f32.gmra.mxu0 %v152
    %v154 = vpop.f32.mrf.mxu0
    %v155 = vadd.f32 %v94, %v154
    %156 = vdwg.mxu0
    %157 = vmatpush.msra.mxu0 0.0
    %158 = vmatpush.msra.mxu0 0.0
    %159 = vmatpush.msra.mxu0 0.0
    %160 = vmatpush.msra.mxu0 0.0
    %161 = vmatpush.msra.mxu0 0.0
    %162 = vmatpush.msra.mxu0 0.0
    %163 = vmatpush.msra.mxu0 0.0
    %164 = vmatpush.msra.mxu0 0.0
    %v165 = vand.u32 %v57, 4294901760
    %v166 = vsub.f32 %v57, %v165
    %167 = vmatpush.msra.mxu0 %v166
    %v168 = vand.u32 %v56, 4294901760
    %v169 = vsub.f32 %v56, %v168
    %170 = vmatpush.msra.mxu0 %v169
    %v171 = vand.u32 %v55, 4294901760
    %v172 = vsub.f32 %v55, %v171
    %173 = vmatpush.msra.mxu0 %v172
    %v174 = vand.u32 %v54, 4294901760
    %v175 = vsub.f32 %v54, %v174
    %176 = vmatpush.msra.mxu0 %v175
    %v177 = vand.u32 %v53, 4294901760
    %v178 = vsub.f32 %v53, %v177
    %179 = vmatpush.msra.mxu0 %v178
    %v180 = vand.u32 %v52, 4294901760
    %v181 = vsub.f32 %v52, %v180
    %182 = vmatpush.msra.mxu0 %v181
    %v183 = vand.u32 %v51, 4294901760
    %v184 = vsub.f32 %v51, %v183
    %185 = vmatpush.msra.mxu0 %v184
    %v186 = vand.u32 %v50, 4294901760
    %v187 = vsub.f32 %v50, %v186
    %188 = vmatpush.msra.mxu0 %v187
    %v189 = vand.u32 %v61, 4294901760
    %v190 = vsub.f32 %v61, %v189
    %191 = vmatmul.f32.gmra.mxu0 %v190
    %v192 = vpop.f32.mrf.mxu0
    %v193 = vadd.f32 %v155, %v192
    %194 = vdwg.mxu0
    %195 = vmatpush.msra.mxu0 0.0
    %196 = vmatpush.msra.mxu0 0.0
    %197 = vmatpush.msra.mxu0 0.0
    %198 = vmatpush.msra.mxu0 0.0
    %199 = vmatpush.msra.mxu0 0.0
    %200 = vmatpush.msra.mxu0 0.0
    %201 = vmatpush.msra.mxu0 0.0
    %202 = vmatpush.msra.mxu0 0.0
    %v203 = vand.u32 %v57, 4294901760
    %204 = vmatpush.msra.mxu0 %v203
    %v205 = vand.u32 %v56, 4294901760
    %206 = vmatpush.msra.mxu0 %v205
    %v207 = vand.u32 %v55, 4294901760
    %208 = vmatpush.msra.mxu0 %v207
    %v209 = vand.u32 %v54, 4294901760
    %210 = vmatpush.msra.mxu0 %v209
    %v211 = vand.u32 %v53, 4294901760
    %212 = vmatpush.msra.mxu0 %v211
    %v213 = vand.u32 %v52, 4294901760
    %214 = vmatpush.msra.mxu0 %v213
    %v215 = vand.u32 %v51, 4294901760
    %216 = vmatpush.msra.mxu0 %v215
    %v217 = vand.u32 %v50, 4294901760
    %218 = vmatpush.msra.mxu0 %v217
    %v219 = vand.u32 %v61, 4294901760
    %v220 = vsub.f32 %v61, %v219
    %v221 = vand.u32 %v220, 4294901760
    %222 = vmatmul.f32.gmra.mxu0 %v221
    %v223 = vpop.f32.mrf.mxu0
    %v224 = vadd.f32 %v193, %v223
    %225 = vdwg.mxu0
    %226 = vmatpush.msra.mxu0 0.0
    %227 = vmatpush.msra.mxu0 0.0
    %228 = vmatpush.msra.mxu0 0.0
    %229 = vmatpush.msra.mxu0 0.0
    %230 = vmatpush.msra.mxu0 0.0
    %231 = vmatpush.msra.mxu0 0.0
    %232 = vmatpush.msra.mxu0 0.0
    %233 = vmatpush.msra.mxu0 0.0
    %v234 = vand.u32 %v57, 4294901760
    %v235 = vsub.f32 %v57, %v234
    %v236 = vand.u32 %v235, 4294901760
    %237 = vmatpush.msra.mxu0 %v236
    %v238 = vand.u32 %v56, 4294901760
    %v239 = vsub.f32 %v56, %v238
    %v240 = vand.u32 %v239, 4294901760
    %241 = vmatpush.msra.mxu0 %v240
    %v242 = vand.u32 %v55, 4294901760
    %v243 = vsub.f32 %v55, %v242
    %v244 = vand.u32 %v243, 4294901760
    %245 = vmatpush.msra.mxu0 %v244
    %v246 = vand.u32 %v54, 4294901760
    %v247 = vsub.f32 %v54, %v246
    %v248 = vand.u32 %v247, 4294901760
    %249 = vmatpush.msra.mxu0 %v248
    %v250 = vand.u32 %v53, 4294901760
    %v251 = vsub.f32 %v53, %v250
    %v252 = vand.u32 %v251, 4294901760
    %253 = vmatpush.msra.mxu0 %v252
    %v254 = vand.u32 %v52, 4294901760
    %v255 = vsub.f32 %v52, %v254
    %v256 = vand.u32 %v255, 4294901760
    %257 = vmatpush.msra.mxu0 %v256
    %v258 = vand.u32 %v51, 4294901760
    %v259 = vsub.f32 %v51, %v258
    %v260 = vand.u32 %v259, 4294901760
    %261 = vmatpush.msra.mxu0 %v260
    %v262 = vand.u32 %v50, 4294901760
    %v263 = vsub.f32 %v50, %v262
    %v264 = vand.u32 %v263, 4294901760
    %265 = vmatpush.msra.mxu0 %v264
    %v266 = vand.u32 %v61, 4294901760
    %267 = vmatmul.f32.gmra.mxu0 %v266
    %v268 = vpop.f32.mrf.mxu0
    %v269 = vadd.f32 %v224, %v268
    %270 = vdwg.mxu0
    %271 = vmatpush.msra.mxu0 0.0
    %272 = vmatpush.msra.mxu0 0.0
    %273 = vmatpush.msra.mxu0 0.0
    %274 = vmatpush.msra.mxu0 0.0
    %275 = vmatpush.msra.mxu0 0.0
    %276 = vmatpush.msra.mxu0 0.0
    %277 = vmatpush.msra.mxu0 0.0
    %278 = vmatpush.msra.mxu0 0.0
    %v279 = vand.u32 %v57, 4294901760
    %280 = vmatpush.msra.mxu0 %v279
    %v281 = vand.u32 %v56, 4294901760
    %282 = vmatpush.msra.mxu0 %v281
    %v283 = vand.u32 %v55, 4294901760
    %284 = vmatpush.msra.mxu0 %v283
    %v285 = vand.u32 %v54, 4294901760
    %286 = vmatpush.msra.mxu0 %v285
    %v287 = vand.u32 %v53, 4294901760
    %288 = vmatpush.msra.mxu0 %v287
    %v289 = vand.u32 %v52, 4294901760
    %290 = vmatpush.msra.mxu0 %v289
    %v291 = vand.u32 %v51, 4294901760
    %292 = vmatpush.msra.mxu0 %v291
    %v293 = vand.u32 %v50, 4294901760
    %294 = vmatpush.msra.mxu0 %v293
    %v295 = vand.u32 %v61, 4294901760
    %296 = vmatmul.f32.gmra.mxu0 %v295
    %v297 = vpop.f32.mrf.mxu0
    %v298 = vadd.f32 %v269, %v297
    %299 = vdwg.mxu0
    %vm300 = vcmask 57344
    %v301 = vsel %vm300, %v298, -inf
    %302 = vmax.xlane.f32.xlu0 %v301
    %v303 = vpop.xlane.xlu0 %302
    %v304 = vsub.f32 %v298, %v303
    %v305 = vmul.f32 %v304, 1.442695
    %v306 = vpow.pop %v305
    %v307 = vsel %vm300, %v306, 0.0
    %308 = vadd.xlane.f32.xlu0 %v307
    %v309 = vpop.xlane.xlu0 %308
    %v310 = vrcp.pop %v309
    %v311 = vmul.f32 %v306, %v310
    %vm312 = vcmask 64512
    %v314 = vsel %vm312, %v311, 0
    %316 = vmatpush.msra.mxu0 0.0
    %317 = vmatpush.msra.mxu0 0.0
    %318 = vmatpush.msra.mxu0 0.0
    %319 = vmatpush.msra.mxu0 0.0
    %320 = vmatpush.msra.mxu0 0.0
    %321 = vmatpush.msra.mxu0 0.0
    %322 = vmatpush.msra.mxu0 0.0
    %323 = vmatpush.msra.mxu0 0.0
    %324 = vmatpush.msra.mxu0 0.0
    %325 = vmatpush.msra.mxu0 0.0
    %326 = vmatpush.msra.mxu0 0.0
    %327 = vmatpush.msra.mxu0 0.0
    %328 = vmatpush.msra.mxu0 0.0
    %329 = vmatpush.msra.mxu0 0.0
    %330 = vmatpush.msra.mxu0 0.0
    %v331 = vand.u32 %v58, 4294901760
    %332 = vmatpush.msra.mxu0 %v331
    %v333 = vand.u32 %v314, 4294901760
    %v334 = vsub.f32 %v314, %v333
    %v335 = vand.u32 %v334, 4294901760
    %v336 = vsub.f32 %v334, %v335
    %v337 = vand.u32 %v336, 4294901760
    %338 = vmatmul.f32.gmra.mxu0 %v337
    %v339 = vpop.f32.mrf.mxu0
    %v340 = vadd.f32 0.0, %v339
    %341 = vdwg.mxu0
    %342 = vmatpush.msra.mxu0 0.0
    %343 = vmatpush.msra.mxu0 0.0
    %344 = vmatpush.msra.mxu0 0.0
    %345 = vmatpush.msra.mxu0 0.0
    %346 = vmatpush.msra.mxu0 0.0
    %347 = vmatpush.msra.mxu0 0.0
    %348 = vmatpush.msra.mxu0 0.0
    %349 = vmatpush.msra.mxu0 0.0
    %350 = vmatpush.msra.mxu0 0.0
    %351 = vmatpush.msra.mxu0 0.0
    %352 = vmatpush.msra.mxu0 0.0
    %353 = vmatpush.msra.mxu0 0.0
    %354 = vmatpush.msra.mxu0 0.0
    %355 = vmatpush.msra.mxu0 0.0
    %356 = vmatpush.msra.mxu0 0.0
    %v357 = vand.u32 %v58, 4294901760
    %v358 = vsub.f32 %v58, %v357
    %v359 = vand.u32 %v358, 4294901760
    %v360 = vsub.f32 %v358, %v359
    %v361 = vand.u32 %v360, 4294901760
    %362 = vmatpush.msra.mxu0 %v361
    %v363 = vand.u32 %v314, 4294901760
    %364 = vmatmul.f32.gmra.mxu0 %v363
    %v365 = vpop.f32.mrf.mxu0
    %v366 = vadd.f32 %v340, %v365
    %367 = vdwg.mxu0
    %368 = vmatpush.msra.mxu0 0.0
    %369 = vmatpush.msra.mxu0 0.0
    %370 = vmatpush.msra.mxu0 0.0
    %371 = vmatpush.msra.mxu0 0.0
    %372 = vmatpush.msra.mxu0 0.0
    %373 = vmatpush.msra.mxu0 0.0
    %374 = vmatpush.msra.mxu0 0.0
    %375 = vmatpush.msra.mxu0 0.0
    %376 = vmatpush.msra.mxu0 0.0
    %377 = vmatpush.msra.mxu0 0.0
    %378 = vmatpush.msra.mxu0 0.0
    %379 = vmatpush.msra.mxu0 0.0
    %380 = vmatpush.msra.mxu0 0.0
    %381 = vmatpush.msra.mxu0 0.0
    %382 = vmatpush.msra.mxu0 0.0
    %v383 = vand.u32 %v58, 4294901760
    %v384 = vsub.f32 %v58, %v383
    %385 = vmatpush.msra.mxu0 %v384
    %v386 = vand.u32 %v314, 4294901760
    %v387 = vsub.f32 %v314, %v386
    %388 = vmatmul.f32.gmra.mxu0 %v387
    %v389 = vpop.f32.mrf.mxu0
    %v390 = vadd.f32 %v366, %v389
    %391 = vdwg.mxu0
    %392 = vmatpush.msra.mxu0 0.0
    %393 = vmatpush.msra.mxu0 0.0
    %394 = vmatpush.msra.mxu0 0.0
    %395 = vmatpush.msra.mxu0 0.0
    %396 = vmatpush.msra.mxu0 0.0
    %397 = vmatpush.msra.mxu0 0.0
    %398 = vmatpush.msra.mxu0 0.0
    %399 = vmatpush.msra.mxu0 0.0
    %400 = vmatpush.msra.mxu0 0.0
    %401 = vmatpush.msra.mxu0 0.0
    %402 = vmatpush.msra.mxu0 0.0
    %403 = vmatpush.msra.mxu0 0.0
    %404 = vmatpush.msra.mxu0 0.0
    %405 = vmatpush.msra.mxu0 0.0
    %406 = vmatpush.msra.mxu0 0.0
    %v407 = vand.u32 %v58, 4294901760
    %408 = vmatpush.msra.mxu0 %v407
    %v409 = vand.u32 %v314, 4294901760
    %v410 = vsub.f32 %v314, %v409
    %v411 = vand.u32 %v410, 4294901760
    %412 = vmatmul.f32.gmra.mxu0 %v411
    %v413 = vpop.f32.mrf.mxu0
    %v414 = vadd.f32 %v390, %v413
    %415 = vdwg.mxu0
    %416 = vmatpush.msra.mxu0 0.0
    %417 = vmatpush.msra.mxu0 0.0
    %418 = vmatpush.msra.mxu0 0.0
    %419 = vmatpush.msra.mxu0 0.0
    %420 = vmatpush.msra.mxu0 0.0
    %421 = vmatpush.msra.mxu0 0.0
    %422 = vmatpush.msra.mxu0 0.0
    %423 = vmatpush.msra.mxu0 0.0
    %424 = vmatpush.msra.mxu0 0.0
    %425 = vmatpush.msra.mxu0 0.0
    %426 = vmatpush.msra.mxu0 0.0
    %427 = vmatpush.msra.mxu0 0.0
    %428 = vmatpush.msra.mxu0 0.0
    %429 = vmatpush.msra.mxu0 0.0
    %430 = vmatpush.msra.mxu0 0.0
    %v431 = vand.u32 %v58, 4294901760
    %v432 = vsub.f32 %v58, %v431
    %v433 = vand.u32 %v432, 4294901760
    %434 = vmatpush.msra.mxu0 %v433
    %v435 = vand.u32 %v314, 4294901760
    %436 = vmatmul.f32.gmra.mxu0 %v435
    %v437 = vpop.f32.mrf.mxu0
    %v438 = vadd.f32 %v414, %v437
    %439 = vdwg.mxu0
    %440 = vmatpush.msra.mxu0 0.0
    %441 = vmatpush.msra.mxu0 0.0
    %442 = vmatpush.msra.mxu0 0.0
    %443 = vmatpush.msra.mxu0 0.0
    %444 = vmatpush.msra.mxu0 0.0
    %445 = vmatpush.msra.mxu0 0.0
    %446 = vmatpush.msra.mxu0 0.0
    %447 = vmatpush.msra.mxu0 0.0
    %448 = vmatpush.msra.mxu0 0.0
    %449 = vmatpush.msra.mxu0 0.0
    %450 = vmatpush.msra.mxu0 0.0
    %451 = vmatpush.msra.mxu0 0.0
    %452 = vmatpush.msra.mxu0 0.0
    %453 = vmatpush.msra.mxu0 0.0
    %454 = vmatpush.msra.mxu0 0.0
    %v455 = vand.u32 %v58, 4294901760
    %456 = vmatpush.msra.mxu0 %v455
    %v457 = vand.u32 %v314, 4294901760
    %458 = vmatmul.f32.gmra.mxu0 %v457
    %v459 = vpop.f32.mrf.mxu0
    %v460 = vadd.f32 %v438, %v459
    %461 = vdwg.mxu0
    %v462 = vadd.f32 %v49, %v460
    %v464 = vsel %vm59, %v462, 0
    %466 = vmatpush.msra.mxu0 0.0
    %467 = vmatpush.msra.mxu0 0.0
    %468 = vmatpush.msra.mxu0 0.0
    %469 = vmatpush.msra.mxu0 0.0
    %470 = vmatpush.msra.mxu0 0.0
    %471 = vmatpush.msra.mxu0 0.0
    %472 = vmatpush.msra.mxu0 0.0
    %473 = vmatpush.msra.mxu0 0.0
    %v474 = vand.u32 %v57, 4294901760
    %475 = vmatpush.msra.mxu0 %v474
    %v476 = vand.u32 %v56, 4294901760
    %477 = vmatpush.msra.mxu0 %v476
    %v478 = vand.u32 %v55, 4294901760
    %479 = vmatpush.msra.mxu0 %v478
    %v480 = vand.u32 %v54, 4294901760
    %481 = vmatpush.msra.mxu0 %v480
    %v482 = vand.u32 %v53, 4294901760
    %483 = vmatpush.msra.mxu0 %v482
    %v484 = vand.u32 %v52, 4294901760
    %485 = vmatpush.msra.mxu0 %v484
    %v486 = vand.u32 %v51, 4294901760
    %487 = vmatpush.msra.mxu0 %v486
    %v488 = vand.u32 %v50, 4294901760
    %489 = vmatpush.msra.mxu0 %v488
    %v490 = vand.u32 %v464, 4294901760
    %v491 = vsub.f32 %v464, %v490
    %v492 = vand.u32 %v491, 4294901760
    %v493 = vsub.f32 %v491, %v492
    %v494 = vand.u32 %v493, 4294901760
    %495 = vmatmul.f32.gmra.mxu0 %v494
    %v496 = vpop.f32.mrf.mxu0
    %v497 = vadd.f32 0.0, %v496
    %498 = vdwg.mxu0
    %499 = vmatpush.msra.mxu0 0.0
    %500 = vmatpush.msra.mxu0 0.0
    %501 = vmatpush.msra.mxu0 0.0
    %502 = vmatpush.msra.mxu0 0.0
    %503 = vmatpush.msra.mxu0 0.0
    %504 = vmatpush.msra.mxu0 0.0
    %505 = vmatpush.msra.mxu0 0.0
    %506 = vmatpush.msra.mxu0 0.0
    %v507 = vand.u32 %v57, 4294901760
    %v508 = vsub.f32 %v57, %v507
    %v509 = vand.u32 %v508, 4294901760
    %v510 = vsub.f32 %v508, %v509
    %v511 = vand.u32 %v510, 4294901760
    %512 = vmatpush.msra.mxu0 %v511
    %v513 = vand.u32 %v56, 4294901760
    %v514 = vsub.f32 %v56, %v513
    %v515 = vand.u32 %v514, 4294901760
    %v516 = vsub.f32 %v514, %v515
    %v517 = vand.u32 %v516, 4294901760
    %518 = vmatpush.msra.mxu0 %v517
    %v519 = vand.u32 %v55, 4294901760
    %v520 = vsub.f32 %v55, %v519
    %v521 = vand.u32 %v520, 4294901760
    %v522 = vsub.f32 %v520, %v521
    %v523 = vand.u32 %v522, 4294901760
    %524 = vmatpush.msra.mxu0 %v523
    %v525 = vand.u32 %v54, 4294901760
    %v526 = vsub.f32 %v54, %v525
    %v527 = vand.u32 %v526, 4294901760
    %v528 = vsub.f32 %v526, %v527
    %v529 = vand.u32 %v528, 4294901760
    %530 = vmatpush.msra.mxu0 %v529
    %v531 = vand.u32 %v53, 4294901760
    %v532 = vsub.f32 %v53, %v531
    %v533 = vand.u32 %v532, 4294901760
    %v534 = vsub.f32 %v532, %v533
    %v535 = vand.u32 %v534, 4294901760
    %536 = vmatpush.msra.mxu0 %v535
    %v537 = vand.u32 %v52, 4294901760
    %v538 = vsub.f32 %v52, %v537
    %v539 = vand.u32 %v538, 4294901760
    %v540 = vsub.f32 %v538, %v539
    %v541 = vand.u32 %v540, 4294901760
    %542 = vmatpush.msra.mxu0 %v541
    %v543 = vand.u32 %v51, 4294901760
    %v544 = vsub.f32 %v51, %v543
    %v545 = vand.u32 %v544, 4294901760
    %v546 = vsub.f32 %v544, %v545
    %v547 = vand.u32 %v546, 4294901760
    %548 = vmatpush.msra.mxu0 %v547
    %v549 = vand.u32 %v50, 4294901760
    %v550 = vsub.f32 %v50, %v549
    %v551 = vand.u32 %v550, 4294901760
    %v552 = vsub.f32 %v550, %v551
    %v553 = vand.u32 %v552, 4294901760
    %554 = vmatpush.msra.mxu0 %v553
    %v555 = vand.u32 %v464, 4294901760
    %556 = vmatmul.f32.gmra.mxu0 %v555
    %v557 = vpop.f32.mrf.mxu0
    %v558 = vadd.f32 %v497, %v557
    %559 = vdwg.mxu0
    %560 = vmatpush.msra.mxu0 0.0
    %561 = vmatpush.msra.mxu0 0.0
    %562 = vmatpush.msra.mxu0 0.0
    %563 = vmatpush.msra.mxu0 0.0
    %564 = vmatpush.msra.mxu0 0.0
    %565 = vmatpush.msra.mxu0 0.0
    %566 = vmatpush.msra.mxu0 0.0
    %567 = vmatpush.msra.mxu0 0.0
    %v568 = vand.u32 %v57, 4294901760
    %v569 = vsub.f32 %v57, %v568
    %570 = vmatpush.msra.mxu0 %v569
    %v571 = vand.u32 %v56, 4294901760
    %v572 = vsub.f32 %v56, %v571
    %573 = vmatpush.msra.mxu0 %v572
    %v574 = vand.u32 %v55, 4294901760
    %v575 = vsub.f32 %v55, %v574
    %576 = vmatpush.msra.mxu0 %v575
    %v577 = vand.u32 %v54, 4294901760
    %v578 = vsub.f32 %v54, %v577
    %579 = vmatpush.msra.mxu0 %v578
    %v580 = vand.u32 %v53, 4294901760
    %v581 = vsub.f32 %v53, %v580
    %582 = vmatpush.msra.mxu0 %v581
    %v583 = vand.u32 %v52, 4294901760
    %v584 = vsub.f32 %v52, %v583
    %585 = vmatpush.msra.mxu0 %v584
    %v586 = vand.u32 %v51, 4294901760
    %v587 = vsub.f32 %v51, %v586
    %588 = vmatpush.msra.mxu0 %v587
    %v589 = vand.u32 %v50, 4294901760
    %v590 = vsub.f32 %v50, %v589
    %591 = vmatpush.msra.mxu0 %v590
    %v592 = vand.u32 %v464, 4294901760
    %v593 = vsub.f32 %v464, %v592
    %594 = vmatmul.f32.gmra.mxu0 %v593
    %v595 = vpop.f32.mrf.mxu0
    %v596 = vadd.f32 %v558, %v595
    %597 = vdwg.mxu0
    %598 = vmatpush.msra.mxu0 0.0
    %599 = vmatpush.msra.mxu0 0.0
    %600 = vmatpush.msra.mxu0 0.0
    %601 = vmatpush.msra.mxu0 0.0
    %602 = vmatpush.msra.mxu0 0.0
    %603 = vmatpush.msra.mxu0 0.0
    %604 = vmatpush.msra.mxu0 0.0
    %605 = vmatpush.msra.mxu0 0.0
    %v606 = vand.u32 %v57, 4294901760
    %607 = vmatpush.msra.mxu0 %v606
    %v608 = vand.u32 %v56, 4294901760
    %609 = vmatpush.msra.mxu0 %v608
    %v610 = vand.u32 %v55, 4294901760
    %611 = vmatpush.msra.mxu0 %v610
    %v612 = vand.u32 %v54, 4294901760
    %613 = vmatpush.msra.mxu0 %v612
    %v614 = vand.u32 %v53, 4294901760
    %615 = vmatpush.msra.mxu0 %v614
    %v616 = vand.u32 %v52, 4294901760
    %617 = vmatpush.msra.mxu0 %v616
    %v618 = vand.u32 %v51, 4294901760
    %619 = vmatpush.msra.mxu0 %v618
    %v620 = vand.u32 %v50, 4294901760
    %621 = vmatpush.msra.mxu0 %v620
    %v622 = vand.u32 %v464, 4294901760
    %v623 = vsub.f32 %v464, %v622
    %v624 = vand.u32 %v623, 4294901760
    %625 = vmatmul.f32.gmra.mxu0 %v624
    %v626 = vpop.f32.mrf.mxu0
    %v627 = vadd.f32 %v596, %v626
    %628 = vdwg.mxu0
    %629 = vmatpush.msra.mxu0 0.0
    %630 = vmatpush.msra.mxu0 0.0
    %631 = vmatpush.msra.mxu0 0.0
    %632 = vmatpush.msra.mxu0 0.0
    %633 = vmatpush.msra.mxu0 0.0
    %634 = vmatpush.msra.mxu0 0.0
    %635 = vmatpush.msra.mxu0 0.0
    %636 = vmatpush.msra.mxu0 0.0
    %v637 = vand.u32 %v57, 4294901760
    %v638 = vsub.f32 %v57, %v637
    %v639 = vand.u32 %v638, 4294901760
    %640 = vmatpush.msra.mxu0 %v639
    %v641 = vand.u32 %v56, 4294901760
    %v642 = vsub.f32 %v56, %v641
    %v643 = vand.u32 %v642, 4294901760
    %644 = vmatpush.msra.mxu0 %v643
    %v645 = vand.u32 %v55, 4294901760
    %v646 = vsub.f32 %v55, %v645
    %v647 = vand.u32 %v646, 4294901760
    %648 = vmatpush.msra.mxu0 %v647
    %v649 = vand.u32 %v54, 4294901760
    %v650 = vsub.f32 %v54, %v649
    %v651 = vand.u32 %v650, 4294901760
    %652 = vmatpush.msra.mxu0 %v651
    %v653 = vand.u32 %v53, 4294901760
    %v654 = vsub.f32 %v53, %v653
    %v655 = vand.u32 %v654, 4294901760
    %656 = vmatpush.msra.mxu0 %v655
    %v657 = vand.u32 %v52, 4294901760
    %v658 = vsub.f32 %v52, %v657
    %v659 = vand.u32 %v658, 4294901760
    %660 = vmatpush.msra.mxu0 %v659
    %v661 = vand.u32 %v51, 4294901760
    %v662 = vsub.f32 %v51, %v661
    %v663 = vand.u32 %v662, 4294901760
    %664 = vmatpush.msra.mxu0 %v663
    %v665 = vand.u32 %v50, 4294901760
    %v666 = vsub.f32 %v50, %v665
    %v667 = vand.u32 %v666, 4294901760
    %668 = vmatpush.msra.mxu0 %v667
    %v669 = vand.u32 %v464, 4294901760
    %670 = vmatmul.f32.gmra.mxu0 %v669
    %v671 = vpop.f32.mrf.mxu0
    %v672 = vadd.f32 %v627, %v671
    %673 = vdwg.mxu0
    %674 = vmatpush.msra.mxu0 0.0
    %675 = vmatpush.msra.mxu0 0.0
    %676 = vmatpush.msra.mxu0 0.0
    %677 = vmatpush.msra.mxu0 0.0
    %678 = vmatpush.msra.mxu0 0.0
    %679 = vmatpush.msra.mxu0 0.0
    %680 = vmatpush.msra.mxu0 0.0
    %681 = vmatpush.msra.mxu0 0.0
    %v682 = vand.u32 %v57, 4294901760
    %683 = vmatpush.msra.mxu0 %v682
    %v684 = vand.u32 %v56, 4294901760
    %685 = vmatpush.msra.mxu0 %v684
    %v686 = vand.u32 %v55, 4294901760
    %687 = vmatpush.msra.mxu0 %v686
    %v688 = vand.u32 %v54, 4294901760
    %689 = vmatpush.msra.mxu0 %v688
    %v690 = vand.u32 %v53, 4294901760
    %691 = vmatpush.msra.mxu0 %v690
    %v692 = vand.u32 %v52, 4294901760
    %693 = vmatpush.msra.mxu0 %v692
    %v694 = vand.u32 %v51, 4294901760
    %695 = vmatpush.msra.mxu0 %v694
    %v696 = vand.u32 %v50, 4294901760
    %697 = vmatpush.msra.mxu0 %v696
    %v698 = vand.u32 %v464, 4294901760
    %699 = vmatmul.f32.gmra.mxu0 %v698
    %v700 = vpop.f32.mrf.mxu0
    %v701 = vadd.f32 %v672, %v700
    %702 = vdwg.mxu0
    %v703 = vsel %vm300, %v701, -inf
    %704 = vmax.xlane.f32.xlu0 %v703
    %v705 = vpop.xlane.xlu0 %704
    %v706 = vsub.f32 %v701, %v705
    %v707 = vmul.f32 %v706, 1.442695
    %v708 = vpow.pop %v707
    %v709 = vsel %vm300, %v708, 0.0
    %710 = vadd.xlane.f32.xlu0 %v709
    %v711 = vpop.xlane.xlu0 %710
    %v712 = vrcp.pop %v711
    %v713 = vmul.f32 %v708, %v712
    %v715 = vsel %vm312, %v713, 0
    %717 = vmatpush.msra.mxu0 0.0
    %718 = vmatpush.msra.mxu0 0.0
    %719 = vmatpush.msra.mxu0 0.0
    %720 = vmatpush.msra.mxu0 0.0
    %721 = vmatpush.msra.mxu0 0.0
    %722 = vmatpush.msra.mxu0 0.0
    %723 = vmatpush.msra.mxu0 0.0
    %724 = vmatpush.msra.mxu0 0.0
    %725 = vmatpush.msra.mxu0 0.0
    %726 = vmatpush.msra.mxu0 0.0
    %727 = vmatpush.msra.mxu0 0.0
    %728 = vmatpush.msra.mxu0 0.0
    %729 = vmatpush.msra.mxu0 0.0
    %730 = vmatpush.msra.mxu0 0.0
    %731 = vmatpush.msra.mxu0 0.0
    %v732 = vand.u32 %v58, 4294901760
    %733 = vmatpush.msra.mxu0 %v732
    %v734 = vand.u32 %v715, 4294901760
    %v735 = vsub.f32 %v715, %v734
    %v736 = vand.u32 %v735, 4294901760
    %v737 = vsub.f32 %v735, %v736
    %v738 = vand.u32 %v737, 4294901760
    %739 = vmatmul.f32.gmra.mxu0 %v738
    %v740 = vpop.f32.mrf.mxu0
    %v741 = vadd.f32 0.0, %v740
    %742 = vdwg.mxu0
    %743 = vmatpush.msra.mxu0 0.0
    %744 = vmatpush.msra.mxu0 0.0
    %745 = vmatpush.msra.mxu0 0.0
    %746 = vmatpush.msra.mxu0 0.0
    %747 = vmatpush.msra.mxu0 0.0
    %748 = vmatpush.msra.mxu0 0.0
    %749 = vmatpush.msra.mxu0 0.0
    %750 = vmatpush.msra.mxu0 0.0
    %751 = vmatpush.msra.mxu0 0.0
    %752 = vmatpush.msra.mxu0 0.0
    %753 = vmatpush.msra.mxu0 0.0
    %754 = vmatpush.msra.mxu0 0.0
    %755 = vmatpush.msra.mxu0 0.0
    %756 = vmatpush.msra.mxu0 0.0
    %757 = vmatpush.msra.mxu0 0.0
    %v758 = vand.u32 %v58, 4294901760
    %v759 = vsub.f32 %v58, %v758
    %v760 = vand.u32 %v759, 4294901760
    %v761 = vsub.f32 %v759, %v760
    %v762 = vand.u32 %v761, 4294901760
    %763 = vmatpush.msra.mxu0 %v762
    %v764 = vand.u32 %v715, 4294901760
    %765 = vmatmul.f32.gmra.mxu0 %v764
    %v766 = vpop.f32.mrf.mxu0
    %v767 = vadd.f32 %v741, %v766
    %768 = vdwg.mxu0
    %769 = vmatpush.msra.mxu0 0.0
    %770 = vmatpush.msra.mxu0 0.0
    %771 = vmatpush.msra.mxu0 0.0
    %772 = vmatpush.msra.mxu0 0.0
    %773 = vmatpush.msra.mxu0 0.0
    %774 = vmatpush.msra.mxu0 0.0
    %775 = vmatpush.msra.mxu0 0.0
    %776 = vmatpush.msra.mxu0 0.0
    %777 = vmatpush.msra.mxu0 0.0
    %778 = vmatpush.msra.mxu0 0.0
    %779 = vmatpush.msra.mxu0 0.0
    %780 = vmatpush.msra.mxu0 0.0
    %781 = vmatpush.msra.mxu0 0.0
    %782 = vmatpush.msra.mxu0 0.0
    %783 = vmatpush.msra.mxu0 0.0
    %v784 = vand.u32 %v58, 4294901760
    %v785 = vsub.f32 %v58, %v784
    %786 = vmatpush.msra.mxu0 %v785
    %v787 = vand.u32 %v715, 4294901760
    %v788 = vsub.f32 %v715, %v787
    %789 = vmatmul.f32.gmra.mxu0 %v788
    %v790 = vpop.f32.mrf.mxu0
    %v791 = vadd.f32 %v767, %v790
    %792 = vdwg.mxu0
    %793 = vmatpush.msra.mxu0 0.0
    %794 = vmatpush.msra.mxu0 0.0
    %795 = vmatpush.msra.mxu0 0.0
    %796 = vmatpush.msra.mxu0 0.0
    %797 = vmatpush.msra.mxu0 0.0
    %798 = vmatpush.msra.mxu0 0.0
    %799 = vmatpush.msra.mxu0 0.0
    %800 = vmatpush.msra.mxu0 0.0
    %801 = vmatpush.msra.mxu0 0.0
    %802 = vmatpush.msra.mxu0 0.0
    %803 = vmatpush.msra.mxu0 0.0
    %804 = vmatpush.msra.mxu0 0.0
    %805 = vmatpush.msra.mxu0 0.0
    %806 = vmatpush.msra.mxu0 0.0
    %807 = vmatpush.msra.mxu0 0.0
    %v808 = vand.u32 %v58, 4294901760
    %809 = vmatpush.msra.mxu0 %v808
    %v810 = vand.u32 %v715, 4294901760
    %v811 = vsub.f32 %v715, %v810
    %v812 = vand.u32 %v811, 4294901760
    %813 = vmatmul.f32.gmra.mxu0 %v812
    %v814 = vpop.f32.mrf.mxu0
    %v815 = vadd.f32 %v791, %v814
    %816 = vdwg.mxu0
    %817 = vmatpush.msra.mxu0 0.0
    %818 = vmatpush.msra.mxu0 0.0
    %819 = vmatpush.msra.mxu0 0.0
    %820 = vmatpush.msra.mxu0 0.0
    %821 = vmatpush.msra.mxu0 0.0
    %822 = vmatpush.msra.mxu0 0.0
    %823 = vmatpush.msra.mxu0 0.0
    %824 = vmatpush.msra.mxu0 0.0
    %825 = vmatpush.msra.mxu0 0.0
    %826 = vmatpush.msra.mxu0 0.0
    %827 = vmatpush.msra.mxu0 0.0
    %828 = vmatpush.msra.mxu0 0.0
    %829 = vmatpush.msra.mxu0 0.0
    %830 = vmatpush.msra.mxu0 0.0
    %831 = vmatpush.msra.mxu0 0.0
    %v832 = vand.u32 %v58, 4294901760
    %v833 = vsub.f32 %v58, %v832
    %v834 = vand.u32 %v833, 4294901760
    %835 = vmatpush.msra.mxu0 %v834
    %v836 = vand.u32 %v715, 4294901760
    %837 = vmatmul.f32.gmra.mxu0 %v836
    %v838 = vpop.f32.mrf.mxu0
    %v839 = vadd.f32 %v815, %v838
    %840 = vdwg.mxu0
    %841 = vmatpush.msra.mxu0 0.0
    %842 = vmatpush.msra.mxu0 0.0
    %843 = vmatpush.msra.mxu0 0.0
    %844 = vmatpush.msra.mxu0 0.0
    %845 = vmatpush.msra.mxu0 0.0
    %846 = vmatpush.msra.mxu0 0.0
    %847 = vmatpush.msra.mxu0 0.0
    %848 = vmatpush.msra.mxu0 0.0
    %849 = vmatpush.msra.mxu0 0.0
    %850 = vmatpush.msra.mxu0 0.0
    %851 = vmatpush.msra.mxu0 0.0
    %852 = vmatpush.msra.mxu0 0.0
    %853 = vmatpush.msra.mxu0 0.0
    %854 = vmatpush.msra.mxu0 0.0
    %855 = vmatpush.msra.mxu0 0.0
    %v856 = vand.u32 %v58, 4294901760
    %857 = vmatpush.msra.mxu0 %v856
    %v858 = vand.u32 %v715, 4294901760
    %859 = vmatmul.f32.gmra.mxu0 %v858
    %v860 = vpop.f32.mrf.mxu0
    %v861 = vadd.f32 %v839, %v860
    %862 = vdwg.mxu0
    %v863 = vadd.f32 %v462, %v861
    %v865 = vsel %vm59, %v863, 0
    %867 = vmatpush.msra.mxu0 0.0
    %868 = vmatpush.msra.mxu0 0.0
    %869 = vmatpush.msra.mxu0 0.0
    %870 = vmatpush.msra.mxu0 0.0
    %871 = vmatpush.msra.mxu0 0.0
    %872 = vmatpush.msra.mxu0 0.0
    %873 = vmatpush.msra.mxu0 0.0
    %874 = vmatpush.msra.mxu0 0.0
    %v875 = vand.u32 %v57, 4294901760
    %876 = vmatpush.msra.mxu0 %v875
    %v877 = vand.u32 %v56, 4294901760
    %878 = vmatpush.msra.mxu0 %v877
    %v879 = vand.u32 %v55, 4294901760
    %880 = vmatpush.msra.mxu0 %v879
    %v881 = vand.u32 %v54, 4294901760
    %882 = vmatpush.msra.mxu0 %v881
    %v883 = vand.u32 %v53, 4294901760
    %884 = vmatpush.msra.mxu0 %v883
    %v885 = vand.u32 %v52, 4294901760
    %886 = vmatpush.msra.mxu0 %v885
    %v887 = vand.u32 %v51, 4294901760
    %888 = vmatpush.msra.mxu0 %v887
    %v889 = vand.u32 %v50, 4294901760
    %890 = vmatpush.msra.mxu0 %v889
    %v891 = vand.u32 %v865, 4294901760
    %v892 = vsub.f32 %v865, %v891
    %v893 = vand.u32 %v892, 4294901760
    %v894 = vsub.f32 %v892, %v893
    %v895 = vand.u32 %v894, 4294901760
    %896 = vmatmul.f32.gmra.mxu0 %v895
    %v897 = vpop.f32.mrf.mxu0
    %v898 = vadd.f32 0.0, %v897
    %899 = vdwg.mxu0
    %900 = vmatpush.msra.mxu0 0.0
    %901 = vmatpush.msra.mxu0 0.0
    %902 = vmatpush.msra.mxu0 0.0
    %903 = vmatpush.msra.mxu0 0.0
    %904 = vmatpush.msra.mxu0 0.0
    %905 = vmatpush.msra.mxu0 0.0
    %906 = vmatpush.msra.mxu0 0.0
    %907 = vmatpush.msra.mxu0 0.0
    %v908 = vand.u32 %v57, 4294901760
    %v909 = vsub.f32 %v57, %v908
    %v910 = vand.u32 %v909, 4294901760
    %v911 = vsub.f32 %v909, %v910
    %v912 = vand.u32 %v911, 4294901760
    %913 = vmatpush.msra.mxu0 %v912
    %v914 = vand.u32 %v56, 4294901760
    %v915 = vsub.f32 %v56, %v914
    %v916 = vand.u32 %v915, 4294901760
    %v917 = vsub.f32 %v915, %v916
    %v918 = vand.u32 %v917, 4294901760
    %919 = vmatpush.msra.mxu0 %v918
    %v920 = vand.u32 %v55, 4294901760
    %v921 = vsub.f32 %v55, %v920
    %v922 = vand.u32 %v921, 4294901760
    %v923 = vsub.f32 %v921, %v922
    %v924 = vand.u32 %v923, 4294901760
    %925 = vmatpush.msra.mxu0 %v924
    %v926 = vand.u32 %v54, 4294901760
    %v927 = vsub.f32 %v54, %v926
    %v928 = vand.u32 %v927, 4294901760
    %v929 = vsub.f32 %v927, %v928
    %v930 = vand.u32 %v929, 4294901760
    %931 = vmatpush.msra.mxu0 %v930
    %v932 = vand.u32 %v53, 4294901760
    %v933 = vsub.f32 %v53, %v932
    %v934 = vand.u32 %v933, 4294901760
    %v935 = vsub.f32 %v933, %v934
    %v936 = vand.u32 %v935, 4294901760
    %937 = vmatpush.msra.mxu0 %v936
    %v938 = vand.u32 %v52, 4294901760
    %v939 = vsub.f32 %v52, %v938
    %v940 = vand.u32 %v939, 4294901760
    %v941 = vsub.f32 %v939, %v940
    %v942 = vand.u32 %v941, 4294901760
    %943 = vmatpush.msra.mxu0 %v942
    %v944 = vand.u32 %v51, 4294901760
    %v945 = vsub.f32 %v51, %v944
    %v946 = vand.u32 %v945, 4294901760
    %v947 = vsub.f32 %v945, %v946
    %v948 = vand.u32 %v947, 4294901760
    %949 = vmatpush.msra.mxu0 %v948
    %v950 = vand.u32 %v50, 4294901760
    %v951 = vsub.f32 %v50, %v950
    %v952 = vand.u32 %v951, 4294901760
    %v953 = vsub.f32 %v951, %v952
    %v954 = vand.u32 %v953, 4294901760
    %955 = vmatpush.msra.mxu0 %v954
    %v956 = vand.u32 %v865, 4294901760
    %957 = vmatmul.f32.gmra.mxu0 %v956
    %v958 = vpop.f32.mrf.mxu0
    %v959 = vadd.f32 %v898, %v958
    %960 = vdwg.mxu0
    %961 = vmatpush.msra.mxu0 0.0
    %962 = vmatpush.msra.mxu0 0.0
    %963 = vmatpush.msra.mxu0 0.0
    %964 = vmatpush.msra.mxu0 0.0
    %965 = vmatpush.msra.mxu0 0.0
    %966 = vmatpush.msra.mxu0 0.0
    %967 = vmatpush.msra.mxu0 0.0
    %968 = vmatpush.msra.mxu0 0.0
    %v969 = vand.u32 %v57, 4294901760
    %v970 = vsub.f32 %v57, %v969
    %971 = vmatpush.msra.mxu0 %v970
    %v972 = vand.u32 %v56, 4294901760
    %v973 = vsub.f32 %v56, %v972
    %974 = vmatpush.msra.mxu0 %v973
    %v975 = vand.u32 %v55, 4294901760
    %v976 = vsub.f32 %v55, %v975
    %977 = vmatpush.msra.mxu0 %v976
    %v978 = vand.u32 %v54, 4294901760
    %v979 = vsub.f32 %v54, %v978
    %980 = vmatpush.msra.mxu0 %v979
    %v981 = vand.u32 %v53, 4294901760
    %v982 = vsub.f32 %v53, %v981
    %983 = vmatpush.msra.mxu0 %v982
    %v984 = vand.u32 %v52, 4294901760
    %v985 = vsub.f32 %v52, %v984
    %986 = vmatpush.msra.mxu0 %v985
    %v987 = vand.u32 %v51, 4294901760
    %v988 = vsub.f32 %v51, %v987
    %989 = vmatpush.msra.mxu0 %v988
    %v990 = vand.u32 %v50, 4294901760
    %v991 = vsub.f32 %v50, %v990
    %992 = vmatpush.msra.mxu0 %v991
    %v993 = vand.u32 %v865, 4294901760
    %v994 = vsub.f32 %v865, %v993
    %995 = vmatmul.f32.gmra.mxu0 %v994
    %v996 = vpop.f32.mrf.mxu0
    %v997 = vadd.f32 %v959, %v996
    %998 = vdwg.mxu0
    %999 = vmatpush.msra.mxu0 0.0
    %1000 = vmatpush.msra.mxu0 0.0
    %1001 = vmatpush.msra.mxu0 0.0
    %1002 = vmatpush.msra.mxu0 0.0
    %1003 = vmatpush.msra.mxu0 0.0
    %1004 = vmatpush.msra.mxu0 0.0
    %1005 = vmatpush.msra.mxu0 0.0
    %1006 = vmatpush.msra.mxu0 0.0
    %v1007 = vand.u32 %v57, 4294901760
    %1008 = vmatpush.msra.mxu0 %v1007
    %v1009 = vand.u32 %v56, 4294901760
    %1010 = vmatpush.msra.mxu0 %v1009
    %v1011 = vand.u32 %v55, 4294901760
    %1012 = vmatpush.msra.mxu0 %v1011
    %v1013 = vand.u32 %v54, 4294901760
    %1014 = vmatpush.msra.mxu0 %v1013
    %v1015 = vand.u32 %v53, 4294901760
    %1016 = vmatpush.msra.mxu0 %v1015
    %v1017 = vand.u32 %v52, 4294901760
    %1018 = vmatpush.msra.mxu0 %v1017
    %v1019 = vand.u32 %v51, 4294901760
    %1020 = vmatpush.msra.mxu0 %v1019
    %v1021 = vand.u32 %v50, 4294901760
    %1022 = vmatpush.msra.mxu0 %v1021
    %v1023 = vand.u32 %v865, 4294901760
    %v1024 = vsub.f32 %v865, %v1023
    %v1025 = vand.u32 %v1024, 4294901760
    %1026 = vmatmul.f32.gmra.mxu0 %v1025
    %v1027 = vpop.f32.mrf.mxu0
    %v1028 = vadd.f32 %v997, %v1027
    %1029 = vdwg.mxu0
    %1030 = vmatpush.msra.mxu0 0.0
    %1031 = vmatpush.msra.mxu0 0.0
    %1032 = vmatpush.msra.mxu0 0.0
    %1033 = vmatpush.msra.mxu0 0.0
    %1034 = vmatpush.msra.mxu0 0.0
    %1035 = vmatpush.msra.mxu0 0.0
    %1036 = vmatpush.msra.mxu0 0.0
    %1037 = vmatpush.msra.mxu0 0.0
    %v1038 = vand.u32 %v57, 4294901760
    %v1039 = vsub.f32 %v57, %v1038
    %v1040 = vand.u32 %v1039, 4294901760
    %1041 = vmatpush.msra.mxu0 %v1040
    %v1042 = vand.u32 %v56, 4294901760
    %v1043 = vsub.f32 %v56, %v1042
    %v1044 = vand.u32 %v1043, 4294901760
    %1045 = vmatpush.msra.mxu0 %v1044
    %v1046 = vand.u32 %v55, 4294901760
    %v1047 = vsub.f32 %v55, %v1046
    %v1048 = vand.u32 %v1047, 4294901760
    %1049 = vmatpush.msra.mxu0 %v1048
    %v1050 = vand.u32 %v54, 4294901760
    %v1051 = vsub.f32 %v54, %v1050
    %v1052 = vand.u32 %v1051, 4294901760
    %1053 = vmatpush.msra.mxu0 %v1052
    %v1054 = vand.u32 %v53, 4294901760
    %v1055 = vsub.f32 %v53, %v1054
    %v1056 = vand.u32 %v1055, 4294901760
    %1057 = vmatpush.msra.mxu0 %v1056
    %v1058 = vand.u32 %v52, 4294901760
    %v1059 = vsub.f32 %v52, %v1058
    %v1060 = vand.u32 %v1059, 4294901760
    %1061 = vmatpush.msra.mxu0 %v1060
    %v1062 = vand.u32 %v51, 4294901760
    %v1063 = vsub.f32 %v51, %v1062
    %v1064 = vand.u32 %v1063, 4294901760
    %1065 = vmatpush.msra.mxu0 %v1064
    %v1066 = vand.u32 %v50, 4294901760
    %v1067 = vsub.f32 %v50, %v1066
    %v1068 = vand.u32 %v1067, 4294901760
    %1069 = vmatpush.msra.mxu0 %v1068
    %v1070 = vand.u32 %v865, 4294901760
    %1071 = vmatmul.f32.gmra.mxu0 %v1070
    %v1072 = vpop.f32.mrf.mxu0
    %v1073 = vadd.f32 %v1028, %v1072
    %1074 = vdwg.mxu0
    %1075 = vmatpush.msra.mxu0 0.0
    %1076 = vmatpush.msra.mxu0 0.0
    %1077 = vmatpush.msra.mxu0 0.0
    %1078 = vmatpush.msra.mxu0 0.0
    %1079 = vmatpush.msra.mxu0 0.0
    %1080 = vmatpush.msra.mxu0 0.0
    %1081 = vmatpush.msra.mxu0 0.0
    %1082 = vmatpush.msra.mxu0 0.0
    %v1083 = vand.u32 %v57, 4294901760
    %1084 = vmatpush.msra.mxu0 %v1083
    %v1085 = vand.u32 %v56, 4294901760
    %1086 = vmatpush.msra.mxu0 %v1085
    %v1087 = vand.u32 %v55, 4294901760
    %1088 = vmatpush.msra.mxu0 %v1087
    %v1089 = vand.u32 %v54, 4294901760
    %1090 = vmatpush.msra.mxu0 %v1089
    %v1091 = vand.u32 %v53, 4294901760
    %1092 = vmatpush.msra.mxu0 %v1091
    %v1093 = vand.u32 %v52, 4294901760
    %1094 = vmatpush.msra.mxu0 %v1093
    %v1095 = vand.u32 %v51, 4294901760
    %1096 = vmatpush.msra.mxu0 %v1095
    %v1097 = vand.u32 %v50, 4294901760
    %1098 = vmatpush.msra.mxu0 %v1097
    %v1099 = vand.u32 %v865, 4294901760
    %1100 = vmatmul.f32.gmra.mxu0 %v1099
    %v1101 = vpop.f32.mrf.mxu0
    %v1102 = vadd.f32 %v1073, %v1101
    %1103 = vdwg.mxu0
    %v1104 = vsel %vm300, %v1102, -inf
    %1105 = vmax.xlane.f32.xlu0 %v1104
    %v1106 = vpop.xlane.xlu0 %1105
    %v1107 = vsub.f32 %v1102, %v1106
    %v1108 = vmul.f32 %v1107, 1.442695
    %v1109 = vpow.pop %v1108
    %v1110 = vsel %vm300, %v1109, 0.0
    %1111 = vadd.xlane.f32.xlu0 %v1110
    %v1112 = vpop.xlane.xlu0 %1111
    %v1113 = vrcp.pop %v1112
    %v1114 = vmul.f32 %v1109, %v1113
    %v1116 = vsel %vm312, %v1114, 0
    %1118 = vmatpush.msra.mxu0 0.0
    %1119 = vmatpush.msra.mxu0 0.0
    %1120 = vmatpush.msra.mxu0 0.0
    %1121 = vmatpush.msra.mxu0 0.0
    %1122 = vmatpush.msra.mxu0 0.0
    %1123 = vmatpush.msra.mxu0 0.0
    %1124 = vmatpush.msra.mxu0 0.0
    %1125 = vmatpush.msra.mxu0 0.0
    %1126 = vmatpush.msra.mxu0 0.0
    %1127 = vmatpush.msra.mxu0 0.0
    %1128 = vmatpush.msra.mxu0 0.0
    %1129 = vmatpush.msra.mxu0 0.0
    %1130 = vmatpush.msra.mxu0 0.0
    %1131 = vmatpush.msra.mxu0 0.0
    %1132 = vmatpush.msra.mxu0 0.0
    %v1133 = vand.u32 %v58, 4294901760
    %1134 = vmatpush.msra.mxu0 %v1133
    %v1135 = vand.u32 %v1116, 4294901760
    %v1136 = vsub.f32 %v1116, %v1135
    %v1137 = vand.u32 %v1136, 4294901760
    %v1138 = vsub.f32 %v1136, %v1137
    %v1139 = vand.u32 %v1138, 4294901760
    %1140 = vmatmul.f32.gmra.mxu0 %v1139
    %v1141 = vpop.f32.mrf.mxu0
    %v1142 = vadd.f32 0.0, %v1141
    %1143 = vdwg.mxu0
    %1144 = vmatpush.msra.mxu0 0.0
    %1145 = vmatpush.msra.mxu0 0.0
    %1146 = vmatpush.msra.mxu0 0.0
    %1147 = vmatpush.msra.mxu0 0.0
    %1148 = vmatpush.msra.mxu0 0.0
    %1149 = vmatpush.msra.mxu0 0.0
    %1150 = vmatpush.msra.mxu0 0.0
    %1151 = vmatpush.msra.mxu0 0.0
    %1152 = vmatpush.msra.mxu0 0.0
    %1153 = vmatpush.msra.mxu0 0.0
    %1154 = vmatpush.msra.mxu0 0.0
    %1155 = vmatpush.msra.mxu0 0.0
    %1156 = vmatpush.msra.mxu0 0.0
    %1157 = vmatpush.msra.mxu0 0.0
    %1158 = vmatpush.msra.mxu0 0.0
    %v1159 = vand.u32 %v58, 4294901760
    %v1160 = vsub.f32 %v58, %v1159
    %v1161 = vand.u32 %v1160, 4294901760
    %v1162 = vsub.f32 %v1160, %v1161
    %v1163 = vand.u32 %v1162, 4294901760
    %1164 = vmatpush.msra.mxu0 %v1163
    %v1165 = vand.u32 %v1116, 4294901760
    %1166 = vmatmul.f32.gmra.mxu0 %v1165
    %v1167 = vpop.f32.mrf.mxu0
    %v1168 = vadd.f32 %v1142, %v1167
    %1169 = vdwg.mxu0
    %1170 = vmatpush.msra.mxu0 0.0
    %1171 = vmatpush.msra.mxu0 0.0
    %1172 = vmatpush.msra.mxu0 0.0
    %1173 = vmatpush.msra.mxu0 0.0
    %1174 = vmatpush.msra.mxu0 0.0
    %1175 = vmatpush.msra.mxu0 0.0
    %1176 = vmatpush.msra.mxu0 0.0
    %1177 = vmatpush.msra.mxu0 0.0
    %1178 = vmatpush.msra.mxu0 0.0
    %1179 = vmatpush.msra.mxu0 0.0
    %1180 = vmatpush.msra.mxu0 0.0
    %1181 = vmatpush.msra.mxu0 0.0
    %1182 = vmatpush.msra.mxu0 0.0
    %1183 = vmatpush.msra.mxu0 0.0
    %1184 = vmatpush.msra.mxu0 0.0
    %v1185 = vand.u32 %v58, 4294901760
    %v1186 = vsub.f32 %v58, %v1185
    %1187 = vmatpush.msra.mxu0 %v1186
    %v1188 = vand.u32 %v1116, 4294901760
    %v1189 = vsub.f32 %v1116, %v1188
    %1190 = vmatmul.f32.gmra.mxu0 %v1189
    %v1191 = vpop.f32.mrf.mxu0
    %v1192 = vadd.f32 %v1168, %v1191
    %1193 = vdwg.mxu0
    %1194 = vmatpush.msra.mxu0 0.0
    %1195 = vmatpush.msra.mxu0 0.0
    %1196 = vmatpush.msra.mxu0 0.0
    %1197 = vmatpush.msra.mxu0 0.0
    %1198 = vmatpush.msra.mxu0 0.0
    %1199 = vmatpush.msra.mxu0 0.0
    %1200 = vmatpush.msra.mxu0 0.0
    %1201 = vmatpush.msra.mxu0 0.0
    %1202 = vmatpush.msra.mxu0 0.0
    %1203 = vmatpush.msra.mxu0 0.0
    %1204 = vmatpush.msra.mxu0 0.0
    %1205 = vmatpush.msra.mxu0 0.0
    %1206 = vmatpush.msra.mxu0 0.0
    %1207 = vmatpush.msra.mxu0 0.0
    %1208 = vmatpush.msra.mxu0 0.0
    %v1209 = vand.u32 %v58, 4294901760
    %1210 = vmatpush.msra.mxu0 %v1209
    %v1211 = vand.u32 %v1116, 4294901760
    %v1212 = vsub.f32 %v1116, %v1211
    %v1213 = vand.u32 %v1212, 4294901760
    %1214 = vmatmul.f32.gmra.mxu0 %v1213
    %v1215 = vpop.f32.mrf.mxu0
    %v1216 = vadd.f32 %v1192, %v1215
    %1217 = vdwg.mxu0
    %1218 = vmatpush.msra.mxu0 0.0
    %1219 = vmatpush.msra.mxu0 0.0
    %1220 = vmatpush.msra.mxu0 0.0
    %1221 = vmatpush.msra.mxu0 0.0
    %1222 = vmatpush.msra.mxu0 0.0
    %1223 = vmatpush.msra.mxu0 0.0
    %1224 = vmatpush.msra.mxu0 0.0
    %1225 = vmatpush.msra.mxu0 0.0
    %1226 = vmatpush.msra.mxu0 0.0
    %1227 = vmatpush.msra.mxu0 0.0
    %1228 = vmatpush.msra.mxu0 0.0
    %1229 = vmatpush.msra.mxu0 0.0
    %1230 = vmatpush.msra.mxu0 0.0
    %1231 = vmatpush.msra.mxu0 0.0
    %1232 = vmatpush.msra.mxu0 0.0
    %v1233 = vand.u32 %v58, 4294901760
    %v1234 = vsub.f32 %v58, %v1233
    %v1235 = vand.u32 %v1234, 4294901760
    %1236 = vmatpush.msra.mxu0 %v1235
    %v1237 = vand.u32 %v1116, 4294901760
    %1238 = vmatmul.f32.gmra.mxu0 %v1237
    %v1239 = vpop.f32.mrf.mxu0
    %v1240 = vadd.f32 %v1216, %v1239
    %1241 = vdwg.mxu0
    %1242 = vmatpush.msra.mxu0 0.0
    %1243 = vmatpush.msra.mxu0 0.0
    %1244 = vmatpush.msra.mxu0 0.0
    %1245 = vmatpush.msra.mxu0 0.0
    %1246 = vmatpush.msra.mxu0 0.0
    %1247 = vmatpush.msra.mxu0 0.0
    %1248 = vmatpush.msra.mxu0 0.0
    %1249 = vmatpush.msra.mxu0 0.0
    %1250 = vmatpush.msra.mxu0 0.0
    %1251 = vmatpush.msra.mxu0 0.0
    %1252 = vmatpush.msra.mxu0 0.0
    %1253 = vmatpush.msra.mxu0 0.0
    %1254 = vmatpush.msra.mxu0 0.0
    %1255 = vmatpush.msra.mxu0 0.0
    %1256 = vmatpush.msra.mxu0 0.0
    %v1257 = vand.u32 %v58, 4294901760
    %1258 = vmatpush.msra.mxu0 %v1257
    %v1259 = vand.u32 %v1116, 4294901760
    %1260 = vmatmul.f32.gmra.mxu0 %v1259
    %v1261 = vpop.f32.mrf.mxu0
    %v1262 = vadd.f32 %v1240, %v1261
    %1263 = vdwg.mxu0
    %v1264 = vadd.f32 %v863, %v1262
    %v1265 = vld [vmem:[%s4] sm:$0xff]
    %v1266 = vld [vmem:[%s4 + $0x8] sm:$0xff]
    %v1267 = vld [vmem:[%s4 + $0x10] sm:$0xff]
    %v1268 = vld [vmem:[%s4 + $0x18] sm:$0xff]
    %v1269 = vld [vmem:[%s4 + $0x20] sm:$0xff]
    %v1270 = vld [vmem:[%s4 + $0x28] sm:$0xff]
    %v1271 = vld [vmem:[%s4 + $0x30] sm:$0xff]
    %v1272 = vld [vmem:[%s4 + $0x38] sm:$0xff]
    %v1273 = vld [vmem:[%s4 + $0x40] sm:$0xff]
    %v1274 = vld [vmem:[%s4 + $0x48] sm:$0xff]
    %v1275 = vld [vmem:[%s4 + $0x50] sm:$0xff]
    %v1276 = vld [vmem:[%s4 + $0x58] sm:$0xff]
    %v1277 = vld [vmem:[%s4 + $0x60] sm:$0xff]
    %v1278 = vld [vmem:[%s4 + $0x68] sm:$0xff]
    %v1279 = vld [vmem:[%s4 + $0x70] sm:$0xff]
    %v1280 = vld [vmem:[%s4 + $0x78] sm:$0xff]
    %1281 = vmatpush.msra.mxu0 0.0
    %1282 = vmatpush.msra.mxu0 0.0
    %1283 = vmatpush.msra.mxu0 0.0
    %1284 = vmatpush.msra.mxu0 0.0
    %1285 = vmatpush.msra.mxu0 0.0
    %1286 = vmatpush.msra.mxu0 0.0
    %1287 = vmatpush.msra.mxu0 0.0
    %1288 = vmatpush.msra.mxu0 0.0
    %v1289 = vand.u32 %v1279, 4294901760
    %1290 = vmatpush.msra.mxu0 %v1289
    %v1291 = vand.u32 %v1277, 4294901760
    %1292 = vmatpush.msra.mxu0 %v1291
    %v1293 = vand.u32 %v1275, 4294901760
    %1294 = vmatpush.msra.mxu0 %v1293
    %v1295 = vand.u32 %v1273, 4294901760
    %1296 = vmatpush.msra.mxu0 %v1295
    %v1297 = vand.u32 %v1271, 4294901760
    %1298 = vmatpush.msra.mxu0 %v1297
    %v1299 = vand.u32 %v1269, 4294901760
    %1300 = vmatpush.msra.mxu0 %v1299
    %v1301 = vand.u32 %v1267, 4294901760
    %1302 = vmatpush.msra.mxu0 %v1301
    %v1303 = vand.u32 %v1265, 4294901760
    %1304 = vmatpush.msra.mxu0 %v1303
    %v1305 = vand.u32 %v61, 4294901760
    %v1306 = vsub.f32 %v61, %v1305
    %v1307 = vand.u32 %v1306, 4294901760
    %v1308 = vsub.f32 %v1306, %v1307
    %v1309 = vand.u32 %v1308, 4294901760
    %1310 = vmatmul.f32.gmra.mxu0 %v1309
    %v1311 = vpop.f32.mrf.mxu0
    %v1312 = vadd.f32 0.0, %v1311
    %1313 = vdwg.mxu0
    %1314 = vmatpush.msra.mxu0 0.0
    %1315 = vmatpush.msra.mxu0 0.0
    %1316 = vmatpush.msra.mxu0 0.0
    %1317 = vmatpush.msra.mxu0 0.0
    %1318 = vmatpush.msra.mxu0 0.0
    %1319 = vmatpush.msra.mxu0 0.0
    %1320 = vmatpush.msra.mxu0 0.0
    %1321 = vmatpush.msra.mxu0 0.0
    %v1322 = vand.u32 %v1279, 4294901760
    %v1323 = vsub.f32 %v1279, %v1322
    %v1324 = vand.u32 %v1323, 4294901760
    %v1325 = vsub.f32 %v1323, %v1324
    %v1326 = vand.u32 %v1325, 4294901760
    %1327 = vmatpush.msra.mxu0 %v1326
    %v1328 = vand.u32 %v1277, 4294901760
    %v1329 = vsub.f32 %v1277, %v1328
    %v1330 = vand.u32 %v1329, 4294901760
    %v1331 = vsub.f32 %v1329, %v1330
    %v1332 = vand.u32 %v1331, 4294901760
    %1333 = vmatpush.msra.mxu0 %v1332
    %v1334 = vand.u32 %v1275, 4294901760
    %v1335 = vsub.f32 %v1275, %v1334
    %v1336 = vand.u32 %v1335, 4294901760
    %v1337 = vsub.f32 %v1335, %v1336
    %v1338 = vand.u32 %v1337, 4294901760
    %1339 = vmatpush.msra.mxu0 %v1338
    %v1340 = vand.u32 %v1273, 4294901760
    %v1341 = vsub.f32 %v1273, %v1340
    %v1342 = vand.u32 %v1341, 4294901760
    %v1343 = vsub.f32 %v1341, %v1342
    %v1344 = vand.u32 %v1343, 4294901760
    %1345 = vmatpush.msra.mxu0 %v1344
    %v1346 = vand.u32 %v1271, 4294901760
    %v1347 = vsub.f32 %v1271, %v1346
    %v1348 = vand.u32 %v1347, 4294901760
    %v1349 = vsub.f32 %v1347, %v1348
    %v1350 = vand.u32 %v1349, 4294901760
    %1351 = vmatpush.msra.mxu0 %v1350
    %v1352 = vand.u32 %v1269, 4294901760
    %v1353 = vsub.f32 %v1269, %v1352
    %v1354 = vand.u32 %v1353, 4294901760
    %v1355 = vsub.f32 %v1353, %v1354
    %v1356 = vand.u32 %v1355, 4294901760
    %1357 = vmatpush.msra.mxu0 %v1356
    %v1358 = vand.u32 %v1267, 4294901760
    %v1359 = vsub.f32 %v1267, %v1358
    %v1360 = vand.u32 %v1359, 4294901760
    %v1361 = vsub.f32 %v1359, %v1360
    %v1362 = vand.u32 %v1361, 4294901760
    %1363 = vmatpush.msra.mxu0 %v1362
    %v1364 = vand.u32 %v1265, 4294901760
    %v1365 = vsub.f32 %v1265, %v1364
    %v1366 = vand.u32 %v1365, 4294901760
    %v1367 = vsub.f32 %v1365, %v1366
    %v1368 = vand.u32 %v1367, 4294901760
    %1369 = vmatpush.msra.mxu0 %v1368
    %v1370 = vand.u32 %v61, 4294901760
    %1371 = vmatmul.f32.gmra.mxu0 %v1370
    %v1372 = vpop.f32.mrf.mxu0
    %v1373 = vadd.f32 %v1312, %v1372
    %1374 = vdwg.mxu0
    %1375 = vmatpush.msra.mxu0 0.0
    %1376 = vmatpush.msra.mxu0 0.0
    %1377 = vmatpush.msra.mxu0 0.0
    %1378 = vmatpush.msra.mxu0 0.0
    %1379 = vmatpush.msra.mxu0 0.0
    %1380 = vmatpush.msra.mxu0 0.0
    %1381 = vmatpush.msra.mxu0 0.0
    %1382 = vmatpush.msra.mxu0 0.0
    %v1383 = vand.u32 %v1279, 4294901760
    %v1384 = vsub.f32 %v1279, %v1383
    %1385 = vmatpush.msra.mxu0 %v1384
    %v1386 = vand.u32 %v1277, 4294901760
    %v1387 = vsub.f32 %v1277, %v1386
    %1388 = vmatpush.msra.mxu0 %v1387
    %v1389 = vand.u32 %v1275, 4294901760
    %v1390 = vsub.f32 %v1275, %v1389
    %1391 = vmatpush.msra.mxu0 %v1390
    %v1392 = vand.u32 %v1273, 4294901760
    %v1393 = vsub.f32 %v1273, %v1392
    %1394 = vmatpush.msra.mxu0 %v1393
    %v1395 = vand.u32 %v1271, 4294901760
    %v1396 = vsub.f32 %v1271, %v1395
    %1397 = vmatpush.msra.mxu0 %v1396
    %v1398 = vand.u32 %v1269, 4294901760
    %v1399 = vsub.f32 %v1269, %v1398
    %1400 = vmatpush.msra.mxu0 %v1399
    %v1401 = vand.u32 %v1267, 4294901760
    %v1402 = vsub.f32 %v1267, %v1401
    %1403 = vmatpush.msra.mxu0 %v1402
    %v1404 = vand.u32 %v1265, 4294901760
    %v1405 = vsub.f32 %v1265, %v1404
    %1406 = vmatpush.msra.mxu0 %v1405
    %v1407 = vand.u32 %v61, 4294901760
    %v1408 = vsub.f32 %v61, %v1407
    %1409 = vmatmul.f32.gmra.mxu0 %v1408
    %v1410 = vpop.f32.mrf.mxu0
    %v1411 = vadd.f32 %v1373, %v1410
    %1412 = vdwg.mxu0
    %1413 = vmatpush.msra.mxu0 0.0
    %1414 = vmatpush.msra.mxu0 0.0
    %1415 = vmatpush.msra.mxu0 0.0
    %1416 = vmatpush.msra.mxu0 0.0
    %1417 = vmatpush.msra.mxu0 0.0
    %1418 = vmatpush.msra.mxu0 0.0
    %1419 = vmatpush.msra.mxu0 0.0
    %1420 = vmatpush.msra.mxu0 0.0
    %v1421 = vand.u32 %v1279, 4294901760
    %1422 = vmatpush.msra.mxu0 %v1421
    %v1423 = vand.u32 %v1277, 4294901760
    %1424 = vmatpush.msra.mxu0 %v1423
    %v1425 = vand.u32 %v1275, 4294901760
    %1426 = vmatpush.msra.mxu0 %v1425
    %v1427 = vand.u32 %v1273, 4294901760
    %1428 = vmatpush.msra.mxu0 %v1427
    %v1429 = vand.u32 %v1271, 4294901760
    %1430 = vmatpush.msra.mxu0 %v1429
    %v1431 = vand.u32 %v1269, 4294901760
    %1432 = vmatpush.msra.mxu0 %v1431
    %v1433 = vand.u32 %v1267, 4294901760
    %1434 = vmatpush.msra.mxu0 %v1433
    %v1435 = vand.u32 %v1265, 4294901760
    %1436 = vmatpush.msra.mxu0 %v1435
    %v1437 = vand.u32 %v61, 4294901760
    %v1438 = vsub.f32 %v61, %v1437
    %v1439 = vand.u32 %v1438, 4294901760
    %1440 = vmatmul.f32.gmra.mxu0 %v1439
    %v1441 = vpop.f32.mrf.mxu0
    %v1442 = vadd.f32 %v1411, %v1441
    %1443 = vdwg.mxu0
    %1444 = vmatpush.msra.mxu0 0.0
    %1445 = vmatpush.msra.mxu0 0.0
    %1446 = vmatpush.msra.mxu0 0.0
    %1447 = vmatpush.msra.mxu0 0.0
    %1448 = vmatpush.msra.mxu0 0.0
    %1449 = vmatpush.msra.mxu0 0.0
    %1450 = vmatpush.msra.mxu0 0.0
    %1451 = vmatpush.msra.mxu0 0.0
    %v1452 = vand.u32 %v1279, 4294901760
    %v1453 = vsub.f32 %v1279, %v1452
    %v1454 = vand.u32 %v1453, 4294901760
    %1455 = vmatpush.msra.mxu0 %v1454
    %v1456 = vand.u32 %v1277, 4294901760
    %v1457 = vsub.f32 %v1277, %v1456
    %v1458 = vand.u32 %v1457, 4294901760
    %1459 = vmatpush.msra.mxu0 %v1458
    %v1460 = vand.u32 %v1275, 4294901760
    %v1461 = vsub.f32 %v1275, %v1460
    %v1462 = vand.u32 %v1461, 4294901760
    %1463 = vmatpush.msra.mxu0 %v1462
    %v1464 = vand.u32 %v1273, 4294901760
    %v1465 = vsub.f32 %v1273, %v1464
    %v1466 = vand.u32 %v1465, 4294901760
    %1467 = vmatpush.msra.mxu0 %v1466
    %v1468 = vand.u32 %v1271, 4294901760
    %v1469 = vsub.f32 %v1271, %v1468
    %v1470 = vand.u32 %v1469, 4294901760
    %1471 = vmatpush.msra.mxu0 %v1470
    %v1472 = vand.u32 %v1269, 4294901760
    %v1473 = vsub.f32 %v1269, %v1472
    %v1474 = vand.u32 %v1473, 4294901760
    %1475 = vmatpush.msra.mxu0 %v1474
    %v1476 = vand.u32 %v1267, 4294901760
    %v1477 = vsub.f32 %v1267, %v1476
    %v1478 = vand.u32 %v1477, 4294901760
    %1479 = vmatpush.msra.mxu0 %v1478
    %v1480 = vand.u32 %v1265, 4294901760
    %v1481 = vsub.f32 %v1265, %v1480
    %v1482 = vand.u32 %v1481, 4294901760
    %1483 = vmatpush.msra.mxu0 %v1482
    %v1484 = vand.u32 %v61, 4294901760
    %1485 = vmatmul.f32.gmra.mxu0 %v1484
    %v1486 = vpop.f32.mrf.mxu0
    %v1487 = vadd.f32 %v1442, %v1486
    %1488 = vdwg.mxu0
    %1489 = vmatpush.msra.mxu0 0.0
    %1490 = vmatpush.msra.mxu0 0.0
    %1491 = vmatpush.msra.mxu0 0.0
    %1492 = vmatpush.msra.mxu0 0.0
    %1493 = vmatpush.msra.mxu0 0.0
    %1494 = vmatpush.msra.mxu0 0.0
    %1495 = vmatpush.msra.mxu0 0.0
    %1496 = vmatpush.msra.mxu0 0.0
    %v1497 = vand.u32 %v1279, 4294901760
    %1498 = vmatpush.msra.mxu0 %v1497
    %v1499 = vand.u32 %v1277, 4294901760
    %1500 = vmatpush.msra.mxu0 %v1499
    %v1501 = vand.u32 %v1275, 4294901760
    %1502 = vmatpush.msra.mxu0 %v1501
    %v1503 = vand.u32 %v1273, 4294901760
    %1504 = vmatpush.msra.mxu0 %v1503
    %v1505 = vand.u32 %v1271, 4294901760
    %1506 = vmatpush.msra.mxu0 %v1505
    %v1507 = vand.u32 %v1269, 4294901760
    %1508 = vmatpush.msra.mxu0 %v1507
    %v1509 = vand.u32 %v1267, 4294901760
    %1510 = vmatpush.msra.mxu0 %v1509
    %v1511 = vand.u32 %v1265, 4294901760
    %1512 = vmatpush.msra.mxu0 %v1511
    %v1513 = vand.u32 %v61, 4294901760
    %1514 = vmatmul.f32.gmra.mxu0 %v1513
    %v1515 = vpop.f32.mrf.mxu0
    %v1516 = vadd.f32 %v1487, %v1515
    %1517 = vdwg.mxu0
    %1518 = vmatpush.msra.mxu0 0.0
    %1519 = vmatpush.msra.mxu0 0.0
    %1520 = vmatpush.msra.mxu0 0.0
    %1521 = vmatpush.msra.mxu0 0.0
    %1522 = vmatpush.msra.mxu0 0.0
    %1523 = vmatpush.msra.mxu0 0.0
    %1524 = vmatpush.msra.mxu0 0.0
    %1525 = vmatpush.msra.mxu0 0.0
    %v1526 = vand.u32 %v1280, 4294901760
    %1527 = vmatpush.msra.mxu0 %v1526
    %v1528 = vand.u32 %v1278, 4294901760
    %1529 = vmatpush.msra.mxu0 %v1528
    %v1530 = vand.u32 %v1276, 4294901760
    %1531 = vmatpush.msra.mxu0 %v1530
    %v1532 = vand.u32 %v1274, 4294901760
    %1533 = vmatpush.msra.mxu0 %v1532
    %v1534 = vand.u32 %v1272, 4294901760
    %1535 = vmatpush.msra.mxu0 %v1534
    %v1536 = vand.u32 %v1270, 4294901760
    %1537 = vmatpush.msra.mxu0 %v1536
    %v1538 = vand.u32 %v1268, 4294901760
    %1539 = vmatpush.msra.mxu0 %v1538
    %v1540 = vand.u32 %v1266, 4294901760
    %1541 = vmatpush.msra.mxu0 %v1540
    %v1542 = vand.u32 %v61, 4294901760
    %v1543 = vsub.f32 %v61, %v1542
    %v1544 = vand.u32 %v1543, 4294901760
    %v1545 = vsub.f32 %v1543, %v1544
    %v1546 = vand.u32 %v1545, 4294901760
    %1547 = vmatmul.f32.gmra.mxu0 %v1546
    %v1548 = vpop.f32.mrf.mxu0
    %v1549 = vadd.f32 0.0, %v1548
    %1550 = vdwg.mxu0
    %1551 = vmatpush.msra.mxu0 0.0
    %1552 = vmatpush.msra.mxu0 0.0
    %1553 = vmatpush.msra.mxu0 0.0
    %1554 = vmatpush.msra.mxu0 0.0
    %1555 = vmatpush.msra.mxu0 0.0
    %1556 = vmatpush.msra.mxu0 0.0
    %1557 = vmatpush.msra.mxu0 0.0
    %1558 = vmatpush.msra.mxu0 0.0
    %v1559 = vand.u32 %v1280, 4294901760
    %v1560 = vsub.f32 %v1280, %v1559
    %v1561 = vand.u32 %v1560, 4294901760
    %v1562 = vsub.f32 %v1560, %v1561
    %v1563 = vand.u32 %v1562, 4294901760
    %1564 = vmatpush.msra.mxu0 %v1563
    %v1565 = vand.u32 %v1278, 4294901760
    %v1566 = vsub.f32 %v1278, %v1565
    %v1567 = vand.u32 %v1566, 4294901760
    %v1568 = vsub.f32 %v1566, %v1567
    %v1569 = vand.u32 %v1568, 4294901760
    %1570 = vmatpush.msra.mxu0 %v1569
    %v1571 = vand.u32 %v1276, 4294901760
    %v1572 = vsub.f32 %v1276, %v1571
    %v1573 = vand.u32 %v1572, 4294901760
    %v1574 = vsub.f32 %v1572, %v1573
    %v1575 = vand.u32 %v1574, 4294901760
    %1576 = vmatpush.msra.mxu0 %v1575
    %v1577 = vand.u32 %v1274, 4294901760
    %v1578 = vsub.f32 %v1274, %v1577
    %v1579 = vand.u32 %v1578, 4294901760
    %v1580 = vsub.f32 %v1578, %v1579
    %v1581 = vand.u32 %v1580, 4294901760
    %1582 = vmatpush.msra.mxu0 %v1581
    %v1583 = vand.u32 %v1272, 4294901760
    %v1584 = vsub.f32 %v1272, %v1583
    %v1585 = vand.u32 %v1584, 4294901760
    %v1586 = vsub.f32 %v1584, %v1585
    %v1587 = vand.u32 %v1586, 4294901760
    %1588 = vmatpush.msra.mxu0 %v1587
    %v1589 = vand.u32 %v1270, 4294901760
    %v1590 = vsub.f32 %v1270, %v1589
    %v1591 = vand.u32 %v1590, 4294901760
    %v1592 = vsub.f32 %v1590, %v1591
    %v1593 = vand.u32 %v1592, 4294901760
    %1594 = vmatpush.msra.mxu0 %v1593
    %v1595 = vand.u32 %v1268, 4294901760
    %v1596 = vsub.f32 %v1268, %v1595
    %v1597 = vand.u32 %v1596, 4294901760
    %v1598 = vsub.f32 %v1596, %v1597
    %v1599 = vand.u32 %v1598, 4294901760
    %1600 = vmatpush.msra.mxu0 %v1599
    %v1601 = vand.u32 %v1266, 4294901760
    %v1602 = vsub.f32 %v1266, %v1601
    %v1603 = vand.u32 %v1602, 4294901760
    %v1604 = vsub.f32 %v1602, %v1603
    %v1605 = vand.u32 %v1604, 4294901760
    %1606 = vmatpush.msra.mxu0 %v1605
    %v1607 = vand.u32 %v61, 4294901760
    %1608 = vmatmul.f32.gmra.mxu0 %v1607
    %v1609 = vpop.f32.mrf.mxu0
    %v1610 = vadd.f32 %v1549, %v1609
    %1611 = vdwg.mxu0
    %1612 = vmatpush.msra.mxu0 0.0
    %1613 = vmatpush.msra.mxu0 0.0
    %1614 = vmatpush.msra.mxu0 0.0
    %1615 = vmatpush.msra.mxu0 0.0
    %1616 = vmatpush.msra.mxu0 0.0
    %1617 = vmatpush.msra.mxu0 0.0
    %1618 = vmatpush.msra.mxu0 0.0
    %1619 = vmatpush.msra.mxu0 0.0
    %v1620 = vand.u32 %v1280, 4294901760
    %v1621 = vsub.f32 %v1280, %v1620
    %1622 = vmatpush.msra.mxu0 %v1621
    %v1623 = vand.u32 %v1278, 4294901760
    %v1624 = vsub.f32 %v1278, %v1623
    %1625 = vmatpush.msra.mxu0 %v1624
    %v1626 = vand.u32 %v1276, 4294901760
    %v1627 = vsub.f32 %v1276, %v1626
    %1628 = vmatpush.msra.mxu0 %v1627
    %v1629 = vand.u32 %v1274, 4294901760
    %v1630 = vsub.f32 %v1274, %v1629
    %1631 = vmatpush.msra.mxu0 %v1630
    %v1632 = vand.u32 %v1272, 4294901760
    %v1633 = vsub.f32 %v1272, %v1632
    %1634 = vmatpush.msra.mxu0 %v1633
    %v1635 = vand.u32 %v1270, 4294901760
    %v1636 = vsub.f32 %v1270, %v1635
    %1637 = vmatpush.msra.mxu0 %v1636
    %v1638 = vand.u32 %v1268, 4294901760
    %v1639 = vsub.f32 %v1268, %v1638
    %1640 = vmatpush.msra.mxu0 %v1639
    %v1641 = vand.u32 %v1266, 4294901760
    %v1642 = vsub.f32 %v1266, %v1641
    %1643 = vmatpush.msra.mxu0 %v1642
    %v1644 = vand.u32 %v61, 4294901760
    %v1645 = vsub.f32 %v61, %v1644
    %1646 = vmatmul.f32.gmra.mxu0 %v1645
    %v1647 = vpop.f32.mrf.mxu0
    %v1648 = vadd.f32 %v1610, %v1647
    %1649 = vdwg.mxu0
    %1650 = vmatpush.msra.mxu0 0.0
    %1651 = vmatpush.msra.mxu0 0.0
    %1652 = vmatpush.msra.mxu0 0.0
    %1653 = vmatpush.msra.mxu0 0.0
    %1654 = vmatpush.msra.mxu0 0.0
    %1655 = vmatpush.msra.mxu0 0.0
    %1656 = vmatpush.msra.mxu0 0.0
    %1657 = vmatpush.msra.mxu0 0.0
    %v1658 = vand.u32 %v1280, 4294901760
    %1659 = vmatpush.msra.mxu0 %v1658
    %v1660 = vand.u32 %v1278, 4294901760
    %1661 = vmatpush.msra.mxu0 %v1660
    %v1662 = vand.u32 %v1276, 4294901760
    %1663 = vmatpush.msra.mxu0 %v1662
    %v1664 = vand.u32 %v1274, 4294901760
    %1665 = vmatpush.msra.mxu0 %v1664
    %v1666 = vand.u32 %v1272, 4294901760
    %1667 = vmatpush.msra.mxu0 %v1666
    %v1668 = vand.u32 %v1270, 4294901760
    %1669 = vmatpush.msra.mxu0 %v1668
    %v1670 = vand.u32 %v1268, 4294901760
    %1671 = vmatpush.msra.mxu0 %v1670
    %v1672 = vand.u32 %v1266, 4294901760
    %1673 = vmatpush.msra.mxu0 %v1672
    %v1674 = vand.u32 %v61, 4294901760
    %v1675 = vsub.f32 %v61, %v1674
    %v1676 = vand.u32 %v1675, 4294901760
    %1677 = vmatmul.f32.gmra.mxu0 %v1676
    %v1678 = vpop.f32.mrf.mxu0
    %v1679 = vadd.f32 %v1648, %v1678
    %1680 = vdwg.mxu0
    %1681 = vmatpush.msra.mxu0 0.0
    %1682 = vmatpush.msra.mxu0 0.0
    %1683 = vmatpush.msra.mxu0 0.0
    %1684 = vmatpush.msra.mxu0 0.0
    %1685 = vmatpush.msra.mxu0 0.0
    %1686 = vmatpush.msra.mxu0 0.0
    %1687 = vmatpush.msra.mxu0 0.0
    %1688 = vmatpush.msra.mxu0 0.0
    %v1689 = vand.u32 %v1280, 4294901760
    %v1690 = vsub.f32 %v1280, %v1689
    %v1691 = vand.u32 %v1690, 4294901760
    %1692 = vmatpush.msra.mxu0 %v1691
    %v1693 = vand.u32 %v1278, 4294901760
    %v1694 = vsub.f32 %v1278, %v1693
    %v1695 = vand.u32 %v1694, 4294901760
    %1696 = vmatpush.msra.mxu0 %v1695
    %v1697 = vand.u32 %v1276, 4294901760
    %v1698 = vsub.f32 %v1276, %v1697
    %v1699 = vand.u32 %v1698, 4294901760
    %1700 = vmatpush.msra.mxu0 %v1699
    %v1701 = vand.u32 %v1274, 4294901760
    %v1702 = vsub.f32 %v1274, %v1701
    %v1703 = vand.u32 %v1702, 4294901760
    %1704 = vmatpush.msra.mxu0 %v1703
    %v1705 = vand.u32 %v1272, 4294901760
    %v1706 = vsub.f32 %v1272, %v1705
    %v1707 = vand.u32 %v1706, 4294901760
    %1708 = vmatpush.msra.mxu0 %v1707
    %v1709 = vand.u32 %v1270, 4294901760
    %v1710 = vsub.f32 %v1270, %v1709
    %v1711 = vand.u32 %v1710, 4294901760
    %1712 = vmatpush.msra.mxu0 %v1711
    %v1713 = vand.u32 %v1268, 4294901760
    %v1714 = vsub.f32 %v1268, %v1713
    %v1715 = vand.u32 %v1714, 4294901760
    %1716 = vmatpush.msra.mxu0 %v1715
    %v1717 = vand.u32 %v1266, 4294901760
    %v1718 = vsub.f32 %v1266, %v1717
    %v1719 = vand.u32 %v1718, 4294901760
    %1720 = vmatpush.msra.mxu0 %v1719
    %v1721 = vand.u32 %v61, 4294901760
    %1722 = vmatmul.f32.gmra.mxu0 %v1721
    %v1723 = vpop.f32.mrf.mxu0
    %v1724 = vadd.f32 %v1679, %v1723
    %1725 = vdwg.mxu0
    %1726 = vmatpush.msra.mxu0 0.0
    %1727 = vmatpush.msra.mxu0 0.0
    %1728 = vmatpush.msra.mxu0 0.0
    %1729 = vmatpush.msra.mxu0 0.0
    %1730 = vmatpush.msra.mxu0 0.0
    %1731 = vmatpush.msra.mxu0 0.0
    %1732 = vmatpush.msra.mxu0 0.0
    %1733 = vmatpush.msra.mxu0 0.0
    %v1734 = vand.u32 %v1280, 4294901760
    %1735 = vmatpush.msra.mxu0 %v1734
    %v1736 = vand.u32 %v1278, 4294901760
    %1737 = vmatpush.msra.mxu0 %v1736
    %v1738 = vand.u32 %v1276, 4294901760
    %1739 = vmatpush.msra.mxu0 %v1738
    %v1740 = vand.u32 %v1274, 4294901760
    %1741 = vmatpush.msra.mxu0 %v1740
    %v1742 = vand.u32 %v1272, 4294901760
    %1743 = vmatpush.msra.mxu0 %v1742
    %v1744 = vand.u32 %v1270, 4294901760
    %1745 = vmatpush.msra.mxu0 %v1744
    %v1746 = vand.u32 %v1268, 4294901760
    %1747 = vmatpush.msra.mxu0 %v1746
    %v1748 = vand.u32 %v1266, 4294901760
    %1749 = vmatpush.msra.mxu0 %v1748
    %v1750 = vand.u32 %v61, 4294901760
    %1751 = vmatmul.f32.gmra.mxu0 %v1750
    %v1752 = vpop.f32.mrf.mxu0
    %v1753 = vadd.f32 %v1724, %v1752
    %1754 = vdwg.mxu0
    %vm1755 = vcmask 1040384
    %v1756 = vsel %vm1755, %v1516, -inf
    %vm1757 = vcmask 172032
    %v1758 = vsel %vm1757, %v1753, -inf
    %v1759 = vmax.f32 %v1756, %v1758
    %1760 = vmax.xlane.f32.xlu0 %v1759
    %v1761 = vpop.xlane.xlu0 %1760
    %v1762 = vsub.f32 %v1516, %v1761
    %v1763 = vsub.f32 %v1753, %v1761
    %v1764 = vmul.f32 %v1762, 1.442695
    %v1765 = vpow.pop %v1764
    %v1766 = vmul.f32 %v1763, 1.442695
    %v1767 = vpow.pop %v1766
    %v1768 = vsel %vm1755, %v1765, 0.0
    %v1769 = vsel %vm1757, %v1767, 0.0
    %v1770 = vadd.f32 %v1768, %v1769
    %1771 = vadd.xlane.f32.xlu0 %v1770
    %v1772 = vpop.xlane.xlu0 %1771
    %v1773 = vrcp.pop %v1772
    %v1774 = vmul.f32 %v1765, %v1773
    %v1775 = vmul.f32 %v1767, %v1773
    %v1776 = vld [vmem:[%s3] sm:$0xff]
    %v1777 = vld [vmem:[%s3 + $0x8] sm:$0xff]
    %v1778 = vld [vmem:[%s3 + $0x10] sm:$0xff]
    %v1779 = vld [vmem:[%s3 + $0x18] sm:$0xff]
    %v1780 = vld [vmem:[%s3 + $0x20] sm:$0xff]
    %v1781 = vld [vmem:[%s3 + $0x28] sm:$0xff]
    %v1782 = vld [vmem:[%s3 + $0x30] sm:$0xff]
    %v1783 = vld [vmem:[%s3 + $0x38] sm:$0xff]
    %v1784 = vld [vmem:[%s3 + $0x40] sm:$0xff]
    %v1785 = vld [vmem:[%s3 + $0x48] sm:$0xff]
    %v1786 = vld [vmem:[%s3 + $0x50] sm:$0xff]
    %v1787 = vld [vmem:[%s3 + $0x58] sm:$0xff]
    %v1788 = vld [vmem:[%s3 + $0x60] sm:$0xff]
    %v1789 = vld [vmem:[%s3 + $0x68] sm:$0xff]
    %v1790 = vld [vmem:[%s3 + $0x70] sm:$0xff]
    %v1791 = vld [vmem:[%s3 + $0x78] sm:$0xff]
    %v1792 = vld [vmem:[%s3 + $0x80] sm:$0xff]
    %v1793 = vld [vmem:[%s3 + $0x88] sm:$0xff]
    %v1794 = vld [vmem:[%s3 + $0x90] sm:$0x3f]
    %vm1795 = vcmask 179200
    %v1797 = vsel %vm1795, %v1775, 0
    %vm1799 = vcmask 1045504
    %v1801 = vsel %vm1799, %v1794, 0
    %v1803 = vand.u32 %v1791, 4294901760
    %1804 = vmatpush.msra.mxu0 %v1803
    %v1805 = vand.u32 %v1790, 4294901760
    %1806 = vmatpush.msra.mxu0 %v1805
    %v1807 = vand.u32 %v1789, 4294901760
    %1808 = vmatpush.msra.mxu0 %v1807
    %v1809 = vand.u32 %v1788, 4294901760
    %1810 = vmatpush.msra.mxu0 %v1809
    %v1811 = vand.u32 %v1787, 4294901760
    %1812 = vmatpush.msra.mxu0 %v1811
    %v1813 = vand.u32 %v1786, 4294901760
    %1814 = vmatpush.msra.mxu0 %v1813
    %v1815 = vand.u32 %v1785, 4294901760
    %1816 = vmatpush.msra.mxu0 %v1815
    %v1817 = vand.u32 %v1784, 4294901760
    %1818 = vmatpush.msra.mxu0 %v1817
    %v1819 = vand.u32 %v1783, 4294901760
    %1820 = vmatpush.msra.mxu0 %v1819
    %v1821 = vand.u32 %v1782, 4294901760
    %1822 = vmatpush.msra.mxu0 %v1821
    %v1823 = vand.u32 %v1781, 4294901760
    %1824 = vmatpush.msra.mxu0 %v1823
    %v1825 = vand.u32 %v1780, 4294901760
    %1826 = vmatpush.msra.mxu0 %v1825
    %v1827 = vand.u32 %v1779, 4294901760
    %1828 = vmatpush.msra.mxu0 %v1827
    %v1829 = vand.u32 %v1778, 4294901760
    %1830 = vmatpush.msra.mxu0 %v1829
    %v1831 = vand.u32 %v1777, 4294901760
    %1832 = vmatpush.msra.mxu0 %v1831
    %v1833 = vand.u32 %v1776, 4294901760
    %1834 = vmatpush.msra.mxu0 %v1833
    %v1835 = vand.u32 %v1774, 4294901760
    %v1836 = vsub.f32 %v1774, %v1835
    %v1837 = vand.u32 %v1836, 4294901760
    %v1838 = vsub.f32 %v1836, %v1837
    %v1839 = vand.u32 %v1838, 4294901760
    %1840 = vmatmul.f32.gmra.mxu0 %v1839
    %v1841 = vpop.f32.mrf.mxu0
    %v1842 = vadd.f32 0.0, %v1841
    %1843 = vdwg.mxu0
    %v1844 = vand.u32 %v1791, 4294901760
    %v1845 = vsub.f32 %v1791, %v1844
    %v1846 = vand.u32 %v1845, 4294901760
    %v1847 = vsub.f32 %v1845, %v1846
    %v1848 = vand.u32 %v1847, 4294901760
    %1849 = vmatpush.msra.mxu0 %v1848
    %v1850 = vand.u32 %v1790, 4294901760
    %v1851 = vsub.f32 %v1790, %v1850
    %v1852 = vand.u32 %v1851, 4294901760
    %v1853 = vsub.f32 %v1851, %v1852
    %v1854 = vand.u32 %v1853, 4294901760
    %1855 = vmatpush.msra.mxu0 %v1854
    %v1856 = vand.u32 %v1789, 4294901760
    %v1857 = vsub.f32 %v1789, %v1856
    %v1858 = vand.u32 %v1857, 4294901760
    %v1859 = vsub.f32 %v1857, %v1858
    %v1860 = vand.u32 %v1859, 4294901760
    %1861 = vmatpush.msra.mxu0 %v1860
    %v1862 = vand.u32 %v1788, 4294901760
    %v1863 = vsub.f32 %v1788, %v1862
    %v1864 = vand.u32 %v1863, 4294901760
    %v1865 = vsub.f32 %v1863, %v1864
    %v1866 = vand.u32 %v1865, 4294901760
    %1867 = vmatpush.msra.mxu0 %v1866
    %v1868 = vand.u32 %v1787, 4294901760
    %v1869 = vsub.f32 %v1787, %v1868
    %v1870 = vand.u32 %v1869, 4294901760
    %v1871 = vsub.f32 %v1869, %v1870
    %v1872 = vand.u32 %v1871, 4294901760
    %1873 = vmatpush.msra.mxu0 %v1872
    %v1874 = vand.u32 %v1786, 4294901760
    %v1875 = vsub.f32 %v1786, %v1874
    %v1876 = vand.u32 %v1875, 4294901760
    %v1877 = vsub.f32 %v1875, %v1876
    %v1878 = vand.u32 %v1877, 4294901760
    %1879 = vmatpush.msra.mxu0 %v1878
    %v1880 = vand.u32 %v1785, 4294901760
    %v1881 = vsub.f32 %v1785, %v1880
    %v1882 = vand.u32 %v1881, 4294901760
    %v1883 = vsub.f32 %v1881, %v1882
    %v1884 = vand.u32 %v1883, 4294901760
    %1885 = vmatpush.msra.mxu0 %v1884
    %v1886 = vand.u32 %v1784, 4294901760
    %v1887 = vsub.f32 %v1784, %v1886
    %v1888 = vand.u32 %v1887, 4294901760
    %v1889 = vsub.f32 %v1887, %v1888
    %v1890 = vand.u32 %v1889, 4294901760
    %1891 = vmatpush.msra.mxu0 %v1890
    %v1892 = vand.u32 %v1783, 4294901760
    %v1893 = vsub.f32 %v1783, %v1892
    %v1894 = vand.u32 %v1893, 4294901760
    %v1895 = vsub.f32 %v1893, %v1894
    %v1896 = vand.u32 %v1895, 4294901760
    %1897 = vmatpush.msra.mxu0 %v1896
    %v1898 = vand.u32 %v1782, 4294901760
    %v1899 = vsub.f32 %v1782, %v1898
    %v1900 = vand.u32 %v1899, 4294901760
    %v1901 = vsub.f32 %v1899, %v1900
    %v1902 = vand.u32 %v1901, 4294901760
    %1903 = vmatpush.msra.mxu0 %v1902
    %v1904 = vand.u32 %v1781, 4294901760
    %v1905 = vsub.f32 %v1781, %v1904
    %v1906 = vand.u32 %v1905, 4294901760
    %v1907 = vsub.f32 %v1905, %v1906
    %v1908 = vand.u32 %v1907, 4294901760
    %1909 = vmatpush.msra.mxu0 %v1908
    %v1910 = vand.u32 %v1780, 4294901760
    %v1911 = vsub.f32 %v1780, %v1910
    %v1912 = vand.u32 %v1911, 4294901760
    %v1913 = vsub.f32 %v1911, %v1912
    %v1914 = vand.u32 %v1913, 4294901760
    %1915 = vmatpush.msra.mxu0 %v1914
    %v1916 = vand.u32 %v1779, 4294901760
    %v1917 = vsub.f32 %v1779, %v1916
    %v1918 = vand.u32 %v1917, 4294901760
    %v1919 = vsub.f32 %v1917, %v1918
    %v1920 = vand.u32 %v1919, 4294901760
    %1921 = vmatpush.msra.mxu0 %v1920
    %v1922 = vand.u32 %v1778, 4294901760
    %v1923 = vsub.f32 %v1778, %v1922
    %v1924 = vand.u32 %v1923, 4294901760
    %v1925 = vsub.f32 %v1923, %v1924
    %v1926 = vand.u32 %v1925, 4294901760
    %1927 = vmatpush.msra.mxu0 %v1926
    %v1928 = vand.u32 %v1777, 4294901760
    %v1929 = vsub.f32 %v1777, %v1928
    %v1930 = vand.u32 %v1929, 4294901760
    %v1931 = vsub.f32 %v1929, %v1930
    %v1932 = vand.u32 %v1931, 4294901760
    %1933 = vmatpush.msra.mxu0 %v1932
    %v1934 = vand.u32 %v1776, 4294901760
    %v1935 = vsub.f32 %v1776, %v1934
    %v1936 = vand.u32 %v1935, 4294901760
    %v1937 = vsub.f32 %v1935, %v1936
    %v1938 = vand.u32 %v1937, 4294901760
    %1939 = vmatpush.msra.mxu0 %v1938
    %v1940 = vand.u32 %v1774, 4294901760
    %1941 = vmatmul.f32.gmra.mxu0 %v1940
    %v1942 = vpop.f32.mrf.mxu0
    %v1943 = vadd.f32 %v1842, %v1942
    %1944 = vdwg.mxu0
    %v1945 = vand.u32 %v1791, 4294901760
    %v1946 = vsub.f32 %v1791, %v1945
    %1947 = vmatpush.msra.mxu0 %v1946
    %v1948 = vand.u32 %v1790, 4294901760
    %v1949 = vsub.f32 %v1790, %v1948
    %1950 = vmatpush.msra.mxu0 %v1949
    %v1951 = vand.u32 %v1789, 4294901760
    %v1952 = vsub.f32 %v1789, %v1951
    %1953 = vmatpush.msra.mxu0 %v1952
    %v1954 = vand.u32 %v1788, 4294901760
    %v1955 = vsub.f32 %v1788, %v1954
    %1956 = vmatpush.msra.mxu0 %v1955
    %v1957 = vand.u32 %v1787, 4294901760
    %v1958 = vsub.f32 %v1787, %v1957
    %1959 = vmatpush.msra.mxu0 %v1958
    %v1960 = vand.u32 %v1786, 4294901760
    %v1961 = vsub.f32 %v1786, %v1960
    %1962 = vmatpush.msra.mxu0 %v1961
    %v1963 = vand.u32 %v1785, 4294901760
    %v1964 = vsub.f32 %v1785, %v1963
    %1965 = vmatpush.msra.mxu0 %v1964
    %v1966 = vand.u32 %v1784, 4294901760
    %v1967 = vsub.f32 %v1784, %v1966
    %1968 = vmatpush.msra.mxu0 %v1967
    %v1969 = vand.u32 %v1783, 4294901760
    %v1970 = vsub.f32 %v1783, %v1969
    %1971 = vmatpush.msra.mxu0 %v1970
    %v1972 = vand.u32 %v1782, 4294901760
    %v1973 = vsub.f32 %v1782, %v1972
    %1974 = vmatpush.msra.mxu0 %v1973
    %v1975 = vand.u32 %v1781, 4294901760
    %v1976 = vsub.f32 %v1781, %v1975
    %1977 = vmatpush.msra.mxu0 %v1976
    %v1978 = vand.u32 %v1780, 4294901760
    %v1979 = vsub.f32 %v1780, %v1978
    %1980 = vmatpush.msra.mxu0 %v1979
    %v1981 = vand.u32 %v1779, 4294901760
    %v1982 = vsub.f32 %v1779, %v1981
    %1983 = vmatpush.msra.mxu0 %v1982
    %v1984 = vand.u32 %v1778, 4294901760
    %v1985 = vsub.f32 %v1778, %v1984
    %1986 = vmatpush.msra.mxu0 %v1985
    %v1987 = vand.u32 %v1777, 4294901760
    %v1988 = vsub.f32 %v1777, %v1987
    %1989 = vmatpush.msra.mxu0 %v1988
    %v1990 = vand.u32 %v1776, 4294901760
    %v1991 = vsub.f32 %v1776, %v1990
    %1992 = vmatpush.msra.mxu0 %v1991
    %v1993 = vand.u32 %v1774, 4294901760
    %v1994 = vsub.f32 %v1774, %v1993
    %1995 = vmatmul.f32.gmra.mxu0 %v1994
    %v1996 = vpop.f32.mrf.mxu0
    %v1997 = vadd.f32 %v1943, %v1996
    %1998 = vdwg.mxu0
    %v1999 = vand.u32 %v1791, 4294901760
    %2000 = vmatpush.msra.mxu0 %v1999
    %v2001 = vand.u32 %v1790, 4294901760
    %2002 = vmatpush.msra.mxu0 %v2001
    %v2003 = vand.u32 %v1789, 4294901760
    %2004 = vmatpush.msra.mxu0 %v2003
    %v2005 = vand.u32 %v1788, 4294901760
    %2006 = vmatpush.msra.mxu0 %v2005
    %v2007 = vand.u32 %v1787, 4294901760
    %2008 = vmatpush.msra.mxu0 %v2007
    %v2009 = vand.u32 %v1786, 4294901760
    %2010 = vmatpush.msra.mxu0 %v2009
    %v2011 = vand.u32 %v1785, 4294901760
    %2012 = vmatpush.msra.mxu0 %v2011
    %v2013 = vand.u32 %v1784, 4294901760
    %2014 = vmatpush.msra.mxu0 %v2013
    %v2015 = vand.u32 %v1783, 4294901760
    %2016 = vmatpush.msra.mxu0 %v2015
    %v2017 = vand.u32 %v1782, 4294901760
    %2018 = vmatpush.msra.mxu0 %v2017
    %v2019 = vand.u32 %v1781, 4294901760
    %2020 = vmatpush.msra.mxu0 %v2019
    %v2021 = vand.u32 %v1780, 4294901760
    %2022 = vmatpush.msra.mxu0 %v2021
    %v2023 = vand.u32 %v1779, 4294901760
    %2024 = vmatpush.msra.mxu0 %v2023
    %v2025 = vand.u32 %v1778, 4294901760
    %2026 = vmatpush.msra.mxu0 %v2025
    %v2027 = vand.u32 %v1777, 4294901760
    %2028 = vmatpush.msra.mxu0 %v2027
    %v2029 = vand.u32 %v1776, 4294901760
    %2030 = vmatpush.msra.mxu0 %v2029
    %v2031 = vand.u32 %v1774, 4294901760
    %v2032 = vsub.f32 %v1774, %v2031
    %v2033 = vand.u32 %v2032, 4294901760
    %2034 = vmatmul.f32.gmra.mxu0 %v2033
    %v2035 = vpop.f32.mrf.mxu0
    %v2036 = vadd.f32 %v1997, %v2035
    %2037 = vdwg.mxu0
    %v2038 = vand.u32 %v1791, 4294901760
    %v2039 = vsub.f32 %v1791, %v2038
    %v2040 = vand.u32 %v2039, 4294901760
    %2041 = vmatpush.msra.mxu0 %v2040
    %v2042 = vand.u32 %v1790, 4294901760
    %v2043 = vsub.f32 %v1790, %v2042
    %v2044 = vand.u32 %v2043, 4294901760
    %2045 = vmatpush.msra.mxu0 %v2044
    %v2046 = vand.u32 %v1789, 4294901760
    %v2047 = vsub.f32 %v1789, %v2046
    %v2048 = vand.u32 %v2047, 4294901760
    %2049 = vmatpush.msra.mxu0 %v2048
    %v2050 = vand.u32 %v1788, 4294901760
    %v2051 = vsub.f32 %v1788, %v2050
    %v2052 = vand.u32 %v2051, 4294901760
    %2053 = vmatpush.msra.mxu0 %v2052
    %v2054 = vand.u32 %v1787, 4294901760
    %v2055 = vsub.f32 %v1787, %v2054
    %v2056 = vand.u32 %v2055, 4294901760
    %2057 = vmatpush.msra.mxu0 %v2056
    %v2058 = vand.u32 %v1786, 4294901760
    %v2059 = vsub.f32 %v1786, %v2058
    %v2060 = vand.u32 %v2059, 4294901760
    %2061 = vmatpush.msra.mxu0 %v2060
    %v2062 = vand.u32 %v1785, 4294901760
    %v2063 = vsub.f32 %v1785, %v2062
    %v2064 = vand.u32 %v2063, 4294901760
    %2065 = vmatpush.msra.mxu0 %v2064
    %v2066 = vand.u32 %v1784, 4294901760
    %v2067 = vsub.f32 %v1784, %v2066
    %v2068 = vand.u32 %v2067, 4294901760
    %2069 = vmatpush.msra.mxu0 %v2068
    %v2070 = vand.u32 %v1783, 4294901760
    %v2071 = vsub.f32 %v1783, %v2070
    %v2072 = vand.u32 %v2071, 4294901760
    %2073 = vmatpush.msra.mxu0 %v2072
    %v2074 = vand.u32 %v1782, 4294901760
    %v2075 = vsub.f32 %v1782, %v2074
    %v2076 = vand.u32 %v2075, 4294901760
    %2077 = vmatpush.msra.mxu0 %v2076
    %v2078 = vand.u32 %v1781, 4294901760
    %v2079 = vsub.f32 %v1781, %v2078
    %v2080 = vand.u32 %v2079, 4294901760
    %2081 = vmatpush.msra.mxu0 %v2080
    %v2082 = vand.u32 %v1780, 4294901760
    %v2083 = vsub.f32 %v1780, %v2082
    %v2084 = vand.u32 %v2083, 4294901760
    %2085 = vmatpush.msra.mxu0 %v2084
    %v2086 = vand.u32 %v1779, 4294901760
    %v2087 = vsub.f32 %v1779, %v2086
    %v2088 = vand.u32 %v2087, 4294901760
    %2089 = vmatpush.msra.mxu0 %v2088
    %v2090 = vand.u32 %v1778, 4294901760
    %v2091 = vsub.f32 %v1778, %v2090
    %v2092 = vand.u32 %v2091, 4294901760
    %2093 = vmatpush.msra.mxu0 %v2092
    %v2094 = vand.u32 %v1777, 4294901760
    %v2095 = vsub.f32 %v1777, %v2094
    %v2096 = vand.u32 %v2095, 4294901760
    %2097 = vmatpush.msra.mxu0 %v2096
    %v2098 = vand.u32 %v1776, 4294901760
    %v2099 = vsub.f32 %v1776, %v2098
    %v2100 = vand.u32 %v2099, 4294901760
    %2101 = vmatpush.msra.mxu0 %v2100
    %v2102 = vand.u32 %v1774, 4294901760
    %2103 = vmatmul.f32.gmra.mxu0 %v2102
    %v2104 = vpop.f32.mrf.mxu0
    %v2105 = vadd.f32 %v2036, %v2104
    %2106 = vdwg.mxu0
    %v2107 = vand.u32 %v1791, 4294901760
    %2108 = vmatpush.msra.mxu0 %v2107
    %v2109 = vand.u32 %v1790, 4294901760
    %2110 = vmatpush.msra.mxu0 %v2109
    %v2111 = vand.u32 %v1789, 4294901760
    %2112 = vmatpush.msra.mxu0 %v2111
    %v2113 = vand.u32 %v1788, 4294901760
    %2114 = vmatpush.msra.mxu0 %v2113
    %v2115 = vand.u32 %v1787, 4294901760
    %2116 = vmatpush.msra.mxu0 %v2115
    %v2117 = vand.u32 %v1786, 4294901760
    %2118 = vmatpush.msra.mxu0 %v2117
    %v2119 = vand.u32 %v1785, 4294901760
    %2120 = vmatpush.msra.mxu0 %v2119
    %v2121 = vand.u32 %v1784, 4294901760
    %2122 = vmatpush.msra.mxu0 %v2121
    %v2123 = vand.u32 %v1783, 4294901760
    %2124 = vmatpush.msra.mxu0 %v2123
    %v2125 = vand.u32 %v1782, 4294901760
    %2126 = vmatpush.msra.mxu0 %v2125
    %v2127 = vand.u32 %v1781, 4294901760
    %2128 = vmatpush.msra.mxu0 %v2127
    %v2129 = vand.u32 %v1780, 4294901760
    %2130 = vmatpush.msra.mxu0 %v2129
    %v2131 = vand.u32 %v1779, 4294901760
    %2132 = vmatpush.msra.mxu0 %v2131
    %v2133 = vand.u32 %v1778, 4294901760
    %2134 = vmatpush.msra.mxu0 %v2133
    %v2135 = vand.u32 %v1777, 4294901760
    %2136 = vmatpush.msra.mxu0 %v2135
    %v2137 = vand.u32 %v1776, 4294901760
    %2138 = vmatpush.msra.mxu0 %v2137
    %v2139 = vand.u32 %v1774, 4294901760
    %2140 = vmatmul.f32.gmra.mxu0 %v2139
    %v2141 = vpop.f32.mrf.mxu0
    %v2142 = vadd.f32 %v2105, %v2141
    %2143 = vdwg.mxu0
    %2144 = vmatpush.msra.mxu0 0.0
    %2145 = vmatpush.msra.mxu0 0.0
    %2146 = vmatpush.msra.mxu0 0.0
    %2147 = vmatpush.msra.mxu0 0.0
    %2148 = vmatpush.msra.mxu0 0.0
    %2149 = vmatpush.msra.mxu0 0.0
    %2150 = vmatpush.msra.mxu0 0.0
    %2151 = vmatpush.msra.mxu0 0.0
    %2152 = vmatpush.msra.mxu0 0.0
    %2153 = vmatpush.msra.mxu0 0.0
    %2154 = vmatpush.msra.mxu0 0.0
    %2155 = vmatpush.msra.mxu0 0.0
    %2156 = vmatpush.msra.mxu0 0.0
    %v2157 = vand.u32 %v1801, 4294901760
    %2158 = vmatpush.msra.mxu0 %v2157
    %v2159 = vand.u32 %v1793, 4294901760
    %2160 = vmatpush.msra.mxu0 %v2159
    %v2161 = vand.u32 %v1792, 4294901760
    %2162 = vmatpush.msra.mxu0 %v2161
    %v2163 = vand.u32 %v1797, 4294901760
    %v2164 = vsub.f32 %v1797, %v2163
    %v2165 = vand.u32 %v2164, 4294901760
    %v2166 = vsub.f32 %v2164, %v2165
    %v2167 = vand.u32 %v2166, 4294901760
    %2168 = vmatmul.f32.gmra.mxu0 %v2167
    %v2169 = vpop.f32.mrf.mxu0
    %v2170 = vadd.f32 %v2142, %v2169
    %2171 = vdwg.mxu0
    %2172 = vmatpush.msra.mxu0 0.0
    %2173 = vmatpush.msra.mxu0 0.0
    %2174 = vmatpush.msra.mxu0 0.0
    %2175 = vmatpush.msra.mxu0 0.0
    %2176 = vmatpush.msra.mxu0 0.0
    %2177 = vmatpush.msra.mxu0 0.0
    %2178 = vmatpush.msra.mxu0 0.0
    %2179 = vmatpush.msra.mxu0 0.0
    %2180 = vmatpush.msra.mxu0 0.0
    %2181 = vmatpush.msra.mxu0 0.0
    %2182 = vmatpush.msra.mxu0 0.0
    %2183 = vmatpush.msra.mxu0 0.0
    %2184 = vmatpush.msra.mxu0 0.0
    %v2185 = vand.u32 %v1801, 4294901760
    %v2186 = vsub.f32 %v1801, %v2185
    %v2187 = vand.u32 %v2186, 4294901760
    %v2188 = vsub.f32 %v2186, %v2187
    %v2189 = vand.u32 %v2188, 4294901760
    %2190 = vmatpush.msra.mxu0 %v2189
    %v2191 = vand.u32 %v1793, 4294901760
    %v2192 = vsub.f32 %v1793, %v2191
    %v2193 = vand.u32 %v2192, 4294901760
    %v2194 = vsub.f32 %v2192, %v2193
    %v2195 = vand.u32 %v2194, 4294901760
    %2196 = vmatpush.msra.mxu0 %v2195
    %v2197 = vand.u32 %v1792, 4294901760
    %v2198 = vsub.f32 %v1792, %v2197
    %v2199 = vand.u32 %v2198, 4294901760
    %v2200 = vsub.f32 %v2198, %v2199
    %v2201 = vand.u32 %v2200, 4294901760
    %2202 = vmatpush.msra.mxu0 %v2201
    %v2203 = vand.u32 %v1797, 4294901760
    %2204 = vmatmul.f32.gmra.mxu0 %v2203
    %v2205 = vpop.f32.mrf.mxu0
    %v2206 = vadd.f32 %v2170, %v2205
    %2207 = vdwg.mxu0
    %2208 = vmatpush.msra.mxu0 0.0
    %2209 = vmatpush.msra.mxu0 0.0
    %2210 = vmatpush.msra.mxu0 0.0
    %2211 = vmatpush.msra.mxu0 0.0
    %2212 = vmatpush.msra.mxu0 0.0
    %2213 = vmatpush.msra.mxu0 0.0
    %2214 = vmatpush.msra.mxu0 0.0
    %2215 = vmatpush.msra.mxu0 0.0
    %2216 = vmatpush.msra.mxu0 0.0
    %2217 = vmatpush.msra.mxu0 0.0
    %2218 = vmatpush.msra.mxu0 0.0
    %2219 = vmatpush.msra.mxu0 0.0
    %2220 = vmatpush.msra.mxu0 0.0
    %v2221 = vand.u32 %v1801, 4294901760
    %v2222 = vsub.f32 %v1801, %v2221
    %2223 = vmatpush.msra.mxu0 %v2222
    %v2224 = vand.u32 %v1793, 4294901760
    %v2225 = vsub.f32 %v1793, %v2224
    %2226 = vmatpush.msra.mxu0 %v2225
    %v2227 = vand.u32 %v1792, 4294901760
    %v2228 = vsub.f32 %v1792, %v2227
    %2229 = vmatpush.msra.mxu0 %v2228
    %v2230 = vand.u32 %v1797, 4294901760
    %v2231 = vsub.f32 %v1797, %v2230
    %2232 = vmatmul.f32.gmra.mxu0 %v2231
    %v2233 = vpop.f32.mrf.mxu0
    %v2234 = vadd.f32 %v2206, %v2233
    %2235 = vdwg.mxu0
    %2236 = vmatpush.msra.mxu0 0.0
    %2237 = vmatpush.msra.mxu0 0.0
    %2238 = vmatpush.msra.mxu0 0.0
    %2239 = vmatpush.msra.mxu0 0.0
    %2240 = vmatpush.msra.mxu0 0.0
    %2241 = vmatpush.msra.mxu0 0.0
    %2242 = vmatpush.msra.mxu0 0.0
    %2243 = vmatpush.msra.mxu0 0.0
    %2244 = vmatpush.msra.mxu0 0.0
    %2245 = vmatpush.msra.mxu0 0.0
    %2246 = vmatpush.msra.mxu0 0.0
    %2247 = vmatpush.msra.mxu0 0.0
    %2248 = vmatpush.msra.mxu0 0.0
    %v2249 = vand.u32 %v1801, 4294901760
    %2250 = vmatpush.msra.mxu0 %v2249
    %v2251 = vand.u32 %v1793, 4294901760
    %2252 = vmatpush.msra.mxu0 %v2251
    %v2253 = vand.u32 %v1792, 4294901760
    %2254 = vmatpush.msra.mxu0 %v2253
    %v2255 = vand.u32 %v1797, 4294901760
    %v2256 = vsub.f32 %v1797, %v2255
    %v2257 = vand.u32 %v2256, 4294901760
    %2258 = vmatmul.f32.gmra.mxu0 %v2257
    %v2259 = vpop.f32.mrf.mxu0
    %v2260 = vadd.f32 %v2234, %v2259
    %2261 = vdwg.mxu0
    %2262 = vmatpush.msra.mxu0 0.0
    %2263 = vmatpush.msra.mxu0 0.0
    %2264 = vmatpush.msra.mxu0 0.0
    %2265 = vmatpush.msra.mxu0 0.0
    %2266 = vmatpush.msra.mxu0 0.0
    %2267 = vmatpush.msra.mxu0 0.0
    %2268 = vmatpush.msra.mxu0 0.0
    %2269 = vmatpush.msra.mxu0 0.0
    %2270 = vmatpush.msra.mxu0 0.0
    %2271 = vmatpush.msra.mxu0 0.0
    %2272 = vmatpush.msra.mxu0 0.0
    %2273 = vmatpush.msra.mxu0 0.0
    %2274 = vmatpush.msra.mxu0 0.0
    %v2275 = vand.u32 %v1801, 4294901760
    %v2276 = vsub.f32 %v1801, %v2275
    %v2277 = vand.u32 %v2276, 4294901760
    %2278 = vmatpush.msra.mxu0 %v2277
    %v2279 = vand.u32 %v1793, 4294901760
    %v2280 = vsub.f32 %v1793, %v2279
    %v2281 = vand.u32 %v2280, 4294901760
    %2282 = vmatpush.msra.mxu0 %v2281
    %v2283 = vand.u32 %v1792, 4294901760
    %v2284 = vsub.f32 %v1792, %v2283
    %v2285 = vand.u32 %v2284, 4294901760
    %2286 = vmatpush.msra.mxu0 %v2285
    %v2287 = vand.u32 %v1797, 4294901760
    %2288 = vmatmul.f32.gmra.mxu0 %v2287
    %v2289 = vpop.f32.mrf.mxu0
    %v2290 = vadd.f32 %v2260, %v2289
    %2291 = vdwg.mxu0
    %2292 = vmatpush.msra.mxu0 0.0
    %2293 = vmatpush.msra.mxu0 0.0
    %2294 = vmatpush.msra.mxu0 0.0
    %2295 = vmatpush.msra.mxu0 0.0
    %2296 = vmatpush.msra.mxu0 0.0
    %2297 = vmatpush.msra.mxu0 0.0
    %2298 = vmatpush.msra.mxu0 0.0
    %2299 = vmatpush.msra.mxu0 0.0
    %2300 = vmatpush.msra.mxu0 0.0
    %2301 = vmatpush.msra.mxu0 0.0
    %2302 = vmatpush.msra.mxu0 0.0
    %2303 = vmatpush.msra.mxu0 0.0
    %2304 = vmatpush.msra.mxu0 0.0
    %v2305 = vand.u32 %v1801, 4294901760
    %2306 = vmatpush.msra.mxu0 %v2305
    %v2307 = vand.u32 %v1793, 4294901760
    %2308 = vmatpush.msra.mxu0 %v2307
    %v2309 = vand.u32 %v1792, 4294901760
    %2310 = vmatpush.msra.mxu0 %v2309
    %v2311 = vand.u32 %v1797, 4294901760
    %2312 = vmatmul.f32.gmra.mxu0 %v2311
    %v2313 = vpop.f32.mrf.mxu0
    %v2314 = vadd.f32 %v2290, %v2313
    %2315 = vdwg.mxu0
    %v2316 = vmax.f32 %v49, 0.0
    %v2317 = vld [vmem:[%s5] sm:$0xff]
    %v2318 = vld [vmem:[%s5 + $0x8] sm:$0xff]
    %v2319 = vld [vmem:[%s5 + $0x10] sm:$0xff]
    %v2320 = vld [vmem:[%s5 + $0x18] sm:$0xff]
    %v2321 = vld [vmem:[%s5 + $0x20] sm:$0xff]
    %v2322 = vld [vmem:[%s5 + $0x28] sm:$0xff]
    %v2323 = vld [vmem:[%s5 + $0x30] sm:$0xff]
    %v2324 = vld [vmem:[%s5 + $0x38] sm:$0xff]
    %v2325 = vmax.f32 %v1264, 0.0
    %v2326 = vld [vmem:[%s5 + $0x40] sm:$0xff]
    %v2327 = vld [vmem:[%s5 + $0x48] sm:$0xff]
    %v2328 = vld [vmem:[%s5 + $0x50] sm:$0xff]
    %v2329 = vld [vmem:[%s5 + $0x58] sm:$0xff]
    %v2330 = vld [vmem:[%s5 + $0x60] sm:$0xff]
    %v2331 = vld [vmem:[%s5 + $0x68] sm:$0xff]
    %v2332 = vld [vmem:[%s5 + $0x70] sm:$0xff]
    %v2333 = vld [vmem:[%s5 + $0x78] sm:$0xff]
    %v2335 = vsel %vm59, %v2325, 0
    %2337 = vmatpush.msra.mxu0 0.0
    %2338 = vmatpush.msra.mxu0 0.0
    %2339 = vmatpush.msra.mxu0 0.0
    %2340 = vmatpush.msra.mxu0 0.0
    %2341 = vmatpush.msra.mxu0 0.0
    %2342 = vmatpush.msra.mxu0 0.0
    %2343 = vmatpush.msra.mxu0 0.0
    %2344 = vmatpush.msra.mxu0 0.0
    %v2345 = vand.u32 %v2333, 4294901760
    %2346 = vmatpush.msra.mxu0 %v2345
    %v2347 = vand.u32 %v2332, 4294901760
    %2348 = vmatpush.msra.mxu0 %v2347
    %v2349 = vand.u32 %v2331, 4294901760
    %2350 = vmatpush.msra.mxu0 %v2349
    %v2351 = vand.u32 %v2330, 4294901760
    %2352 = vmatpush.msra.mxu0 %v2351
    %v2353 = vand.u32 %v2329, 4294901760
    %2354 = vmatpush.msra.mxu0 %v2353
    %v2355 = vand.u32 %v2328, 4294901760
    %2356 = vmatpush.msra.mxu0 %v2355
    %v2357 = vand.u32 %v2327, 4294901760
    %2358 = vmatpush.msra.mxu0 %v2357
    %v2359 = vand.u32 %v2326, 4294901760
    %2360 = vmatpush.msra.mxu0 %v2359
    %v2361 = vand.u32 %v2335, 4294901760
    %v2362 = vsub.f32 %v2335, %v2361
    %v2363 = vand.u32 %v2362, 4294901760
    %v2364 = vsub.f32 %v2362, %v2363
    %v2365 = vand.u32 %v2364, 4294901760
    %2366 = vmatmul.f32.gmra.mxu0 %v2365
    %v2367 = vpop.f32.mrf.mxu0
    %v2368 = vadd.f32 0.0, %v2367
    %2369 = vdwg.mxu0
    %2370 = vmatpush.msra.mxu0 0.0
    %2371 = vmatpush.msra.mxu0 0.0
    %2372 = vmatpush.msra.mxu0 0.0
    %2373 = vmatpush.msra.mxu0 0.0
    %2374 = vmatpush.msra.mxu0 0.0
    %2375 = vmatpush.msra.mxu0 0.0
    %2376 = vmatpush.msra.mxu0 0.0
    %2377 = vmatpush.msra.mxu0 0.0
    %v2378 = vand.u32 %v2333, 4294901760
    %v2379 = vsub.f32 %v2333, %v2378
    %v2380 = vand.u32 %v2379, 4294901760
    %v2381 = vsub.f32 %v2379, %v2380
    %v2382 = vand.u32 %v2381, 4294901760
    %2383 = vmatpush.msra.mxu0 %v2382
    %v2384 = vand.u32 %v2332, 4294901760
    %v2385 = vsub.f32 %v2332, %v2384
    %v2386 = vand.u32 %v2385, 4294901760
    %v2387 = vsub.f32 %v2385, %v2386
    %v2388 = vand.u32 %v2387, 4294901760
    %2389 = vmatpush.msra.mxu0 %v2388
    %v2390 = vand.u32 %v2331, 4294901760
    %v2391 = vsub.f32 %v2331, %v2390
    %v2392 = vand.u32 %v2391, 4294901760
    %v2393 = vsub.f32 %v2391, %v2392
    %v2394 = vand.u32 %v2393, 4294901760
    %2395 = vmatpush.msra.mxu0 %v2394
    %v2396 = vand.u32 %v2330, 4294901760
    %v2397 = vsub.f32 %v2330, %v2396
    %v2398 = vand.u32 %v2397, 4294901760
    %v2399 = vsub.f32 %v2397, %v2398
    %v2400 = vand.u32 %v2399, 4294901760
    %2401 = vmatpush.msra.mxu0 %v2400
    %v2402 = vand.u32 %v2329, 4294901760
    %v2403 = vsub.f32 %v2329, %v2402
    %v2404 = vand.u32 %v2403, 4294901760
    %v2405 = vsub.f32 %v2403, %v2404
    %v2406 = vand.u32 %v2405, 4294901760
    %2407 = vmatpush.msra.mxu0 %v2406
    %v2408 = vand.u32 %v2328, 4294901760
    %v2409 = vsub.f32 %v2328, %v2408
    %v2410 = vand.u32 %v2409, 4294901760
    %v2411 = vsub.f32 %v2409, %v2410
    %v2412 = vand.u32 %v2411, 4294901760
    %2413 = vmatpush.msra.mxu0 %v2412
    %v2414 = vand.u32 %v2327, 4294901760
    %v2415 = vsub.f32 %v2327, %v2414
    %v2416 = vand.u32 %v2415, 4294901760
    %v2417 = vsub.f32 %v2415, %v2416
    %v2418 = vand.u32 %v2417, 4294901760
    %2419 = vmatpush.msra.mxu0 %v2418
    %v2420 = vand.u32 %v2326, 4294901760
    %v2421 = vsub.f32 %v2326, %v2420
    %v2422 = vand.u32 %v2421, 4294901760
    %v2423 = vsub.f32 %v2421, %v2422
    %v2424 = vand.u32 %v2423, 4294901760
    %2425 = vmatpush.msra.mxu0 %v2424
    %v2426 = vand.u32 %v2335, 4294901760
    %2427 = vmatmul.f32.gmra.mxu0 %v2426
    %v2428 = vpop.f32.mrf.mxu0
    %v2429 = vadd.f32 %v2368, %v2428
    %2430 = vdwg.mxu0
    %2431 = vmatpush.msra.mxu0 0.0
    %2432 = vmatpush.msra.mxu0 0.0
    %2433 = vmatpush.msra.mxu0 0.0
    %2434 = vmatpush.msra.mxu0 0.0
    %2435 = vmatpush.msra.mxu0 0.0
    %2436 = vmatpush.msra.mxu0 0.0
    %2437 = vmatpush.msra.mxu0 0.0
    %2438 = vmatpush.msra.mxu0 0.0
    %v2439 = vand.u32 %v2333, 4294901760
    %v2440 = vsub.f32 %v2333, %v2439
    %2441 = vmatpush.msra.mxu0 %v2440
    %v2442 = vand.u32 %v2332, 4294901760
    %v2443 = vsub.f32 %v2332, %v2442
    %2444 = vmatpush.msra.mxu0 %v2443
    %v2445 = vand.u32 %v2331, 4294901760
    %v2446 = vsub.f32 %v2331, %v2445
    %2447 = vmatpush.msra.mxu0 %v2446
    %v2448 = vand.u32 %v2330, 4294901760
    %v2449 = vsub.f32 %v2330, %v2448
    %2450 = vmatpush.msra.mxu0 %v2449
    %v2451 = vand.u32 %v2329, 4294901760
    %v2452 = vsub.f32 %v2329, %v2451
    %2453 = vmatpush.msra.mxu0 %v2452
    %v2454 = vand.u32 %v2328, 4294901760
    %v2455 = vsub.f32 %v2328, %v2454
    %2456 = vmatpush.msra.mxu0 %v2455
    %v2457 = vand.u32 %v2327, 4294901760
    %v2458 = vsub.f32 %v2327, %v2457
    %2459 = vmatpush.msra.mxu0 %v2458
    %v2460 = vand.u32 %v2326, 4294901760
    %v2461 = vsub.f32 %v2326, %v2460
    %2462 = vmatpush.msra.mxu0 %v2461
    %v2463 = vand.u32 %v2335, 4294901760
    %v2464 = vsub.f32 %v2335, %v2463
    %2465 = vmatmul.f32.gmra.mxu0 %v2464
    %v2466 = vpop.f32.mrf.mxu0
    %v2467 = vadd.f32 %v2429, %v2466
    %2468 = vdwg.mxu0
    %2469 = vmatpush.msra.mxu0 0.0
    %2470 = vmatpush.msra.mxu0 0.0
    %2471 = vmatpush.msra.mxu0 0.0
    %2472 = vmatpush.msra.mxu0 0.0
    %2473 = vmatpush.msra.mxu0 0.0
    %2474 = vmatpush.msra.mxu0 0.0
    %2475 = vmatpush.msra.mxu0 0.0
    %2476 = vmatpush.msra.mxu0 0.0
    %v2477 = vand.u32 %v2333, 4294901760
    %2478 = vmatpush.msra.mxu0 %v2477
    %v2479 = vand.u32 %v2332, 4294901760
    %2480 = vmatpush.msra.mxu0 %v2479
    %v2481 = vand.u32 %v2331, 4294901760
    %2482 = vmatpush.msra.mxu0 %v2481
    %v2483 = vand.u32 %v2330, 4294901760
    %2484 = vmatpush.msra.mxu0 %v2483
    %v2485 = vand.u32 %v2329, 4294901760
    %2486 = vmatpush.msra.mxu0 %v2485
    %v2487 = vand.u32 %v2328, 4294901760
    %2488 = vmatpush.msra.mxu0 %v2487
    %v2489 = vand.u32 %v2327, 4294901760
    %2490 = vmatpush.msra.mxu0 %v2489
    %v2491 = vand.u32 %v2326, 4294901760
    %2492 = vmatpush.msra.mxu0 %v2491
    %v2493 = vand.u32 %v2335, 4294901760
    %v2494 = vsub.f32 %v2335, %v2493
    %v2495 = vand.u32 %v2494, 4294901760
    %2496 = vmatmul.f32.gmra.mxu0 %v2495
    %v2497 = vpop.f32.mrf.mxu0
    %v2498 = vadd.f32 %v2467, %v2497
    %2499 = vdwg.mxu0
    %2500 = vmatpush.msra.mxu0 0.0
    %2501 = vmatpush.msra.mxu0 0.0
    %2502 = vmatpush.msra.mxu0 0.0
    %2503 = vmatpush.msra.mxu0 0.0
    %2504 = vmatpush.msra.mxu0 0.0
    %2505 = vmatpush.msra.mxu0 0.0
    %2506 = vmatpush.msra.mxu0 0.0
    %2507 = vmatpush.msra.mxu0 0.0
    %v2508 = vand.u32 %v2333, 4294901760
    %v2509 = vsub.f32 %v2333, %v2508
    %v2510 = vand.u32 %v2509, 4294901760
    %2511 = vmatpush.msra.mxu0 %v2510
    %v2512 = vand.u32 %v2332, 4294901760
    %v2513 = vsub.f32 %v2332, %v2512
    %v2514 = vand.u32 %v2513, 4294901760
    %2515 = vmatpush.msra.mxu0 %v2514
    %v2516 = vand.u32 %v2331, 4294901760
    %v2517 = vsub.f32 %v2331, %v2516
    %v2518 = vand.u32 %v2517, 4294901760
    %2519 = vmatpush.msra.mxu0 %v2518
    %v2520 = vand.u32 %v2330, 4294901760
    %v2521 = vsub.f32 %v2330, %v2520
    %v2522 = vand.u32 %v2521, 4294901760
    %2523 = vmatpush.msra.mxu0 %v2522
    %v2524 = vand.u32 %v2329, 4294901760
    %v2525 = vsub.f32 %v2329, %v2524
    %v2526 = vand.u32 %v2525, 4294901760
    %2527 = vmatpush.msra.mxu0 %v2526
    %v2528 = vand.u32 %v2328, 4294901760
    %v2529 = vsub.f32 %v2328, %v2528
    %v2530 = vand.u32 %v2529, 4294901760
    %2531 = vmatpush.msra.mxu0 %v2530
    %v2532 = vand.u32 %v2327, 4294901760
    %v2533 = vsub.f32 %v2327, %v2532
    %v2534 = vand.u32 %v2533, 4294901760
    %2535 = vmatpush.msra.mxu0 %v2534
    %v2536 = vand.u32 %v2326, 4294901760
    %v2537 = vsub.f32 %v2326, %v2536
    %v2538 = vand.u32 %v2537, 4294901760
    %2539 = vmatpush.msra.mxu0 %v2538
    %v2540 = vand.u32 %v2335, 4294901760
    %2541 = vmatmul.f32.gmra.mxu0 %v2540
    %v2542 = vpop.f32.mrf.mxu0
    %v2543 = vadd.f32 %v2498, %v2542
    %2544 = vdwg.mxu0
    %2545 = vmatpush.msra.mxu0 0.0
    %2546 = vmatpush.msra.mxu0 0.0
    %2547 = vmatpush.msra.mxu0 0.0
    %2548 = vmatpush.msra.mxu0 0.0
    %2549 = vmatpush.msra.mxu0 0.0
    %2550 = vmatpush.msra.mxu0 0.0
    %2551 = vmatpush.msra.mxu0 0.0
    %2552 = vmatpush.msra.mxu0 0.0
    %v2553 = vand.u32 %v2333, 4294901760
    %2554 = vmatpush.msra.mxu0 %v2553
    %v2555 = vand.u32 %v2332, 4294901760
    %2556 = vmatpush.msra.mxu0 %v2555
    %v2557 = vand.u32 %v2331, 4294901760
    %2558 = vmatpush.msra.mxu0 %v2557
    %v2559 = vand.u32 %v2330, 4294901760
    %2560 = vmatpush.msra.mxu0 %v2559
    %v2561 = vand.u32 %v2329, 4294901760
    %2562 = vmatpush.msra.mxu0 %v2561
    %v2563 = vand.u32 %v2328, 4294901760
    %2564 = vmatpush.msra.mxu0 %v2563
    %v2565 = vand.u32 %v2327, 4294901760
    %2566 = vmatpush.msra.mxu0 %v2565
    %v2567 = vand.u32 %v2326, 4294901760
    %2568 = vmatpush.msra.mxu0 %v2567
    %v2569 = vand.u32 %v2335, 4294901760
    %2570 = vmatmul.f32.gmra.mxu0 %v2569
    %v2571 = vpop.f32.mrf.mxu0
    %v2572 = vadd.f32 %v2543, %v2571
    %2573 = vdwg.mxu0
    %v2575 = vsel %vm59, %v2316, 0
    %2577 = vmatpush.msra.mxu0 0.0
    %2578 = vmatpush.msra.mxu0 0.0
    %2579 = vmatpush.msra.mxu0 0.0
    %2580 = vmatpush.msra.mxu0 0.0
    %2581 = vmatpush.msra.mxu0 0.0
    %2582 = vmatpush.msra.mxu0 0.0
    %2583 = vmatpush.msra.mxu0 0.0
    %2584 = vmatpush.msra.mxu0 0.0
    %v2585 = vand.u32 %v2324, 4294901760
    %2586 = vmatpush.msra.mxu0 %v2585
    %v2587 = vand.u32 %v2323, 4294901760
    %2588 = vmatpush.msra.mxu0 %v2587
    %v2589 = vand.u32 %v2322, 4294901760
    %2590 = vmatpush.msra.mxu0 %v2589
    %v2591 = vand.u32 %v2321, 4294901760
    %2592 = vmatpush.msra.mxu0 %v2591
    %v2593 = vand.u32 %v2320, 4294901760
    %2594 = vmatpush.msra.mxu0 %v2593
    %v2595 = vand.u32 %v2319, 4294901760
    %2596 = vmatpush.msra.mxu0 %v2595
    %v2597 = vand.u32 %v2318, 4294901760
    %2598 = vmatpush.msra.mxu0 %v2597
    %v2599 = vand.u32 %v2317, 4294901760
    %2600 = vmatpush.msra.mxu0 %v2599
    %v2601 = vand.u32 %v2575, 4294901760
    %v2602 = vsub.f32 %v2575, %v2601
    %v2603 = vand.u32 %v2602, 4294901760
    %v2604 = vsub.f32 %v2602, %v2603
    %v2605 = vand.u32 %v2604, 4294901760
    %2606 = vmatmul.f32.gmra.mxu0 %v2605
    %v2607 = vpop.f32.mrf.mxu0
    %v2608 = vadd.f32 %v2572, %v2607
    %2609 = vdwg.mxu0
    %2610 = vmatpush.msra.mxu0 0.0
    %2611 = vmatpush.msra.mxu0 0.0
    %2612 = vmatpush.msra.mxu0 0.0
    %2613 = vmatpush.msra.mxu0 0.0
    %2614 = vmatpush.msra.mxu0 0.0
    %2615 = vmatpush.msra.mxu0 0.0
    %2616 = vmatpush.msra.mxu0 0.0
    %2617 = vmatpush.msra.mxu0 0.0
    %v2618 = vand.u32 %v2324, 4294901760
    %v2619 = vsub.f32 %v2324, %v2618
    %v2620 = vand.u32 %v2619, 4294901760
    %v2621 = vsub.f32 %v2619, %v2620
    %v2622 = vand.u32 %v2621, 4294901760
    %2623 = vmatpush.msra.mxu0 %v2622
    %v2624 = vand.u32 %v2323, 4294901760
    %v2625 = vsub.f32 %v2323, %v2624
    %v2626 = vand.u32 %v2625, 4294901760
    %v2627 = vsub.f32 %v2625, %v2626
    %v2628 = vand.u32 %v2627, 4294901760
    %2629 = vmatpush.msra.mxu0 %v2628
    %v2630 = vand.u32 %v2322, 4294901760
    %v2631 = vsub.f32 %v2322, %v2630
    %v2632 = vand.u32 %v2631, 4294901760
    %v2633 = vsub.f32 %v2631, %v2632
    %v2634 = vand.u32 %v2633, 4294901760
    %2635 = vmatpush.msra.mxu0 %v2634
    %v2636 = vand.u32 %v2321, 4294901760
    %v2637 = vsub.f32 %v2321, %v2636
    %v2638 = vand.u32 %v2637, 4294901760
    %v2639 = vsub.f32 %v2637, %v2638
    %v2640 = vand.u32 %v2639, 4294901760
    %2641 = vmatpush.msra.mxu0 %v2640
    %v2642 = vand.u32 %v2320, 4294901760
    %v2643 = vsub.f32 %v2320, %v2642
    %v2644 = vand.u32 %v2643, 4294901760
    %v2645 = vsub.f32 %v2643, %v2644
    %v2646 = vand.u32 %v2645, 4294901760
    %2647 = vmatpush.msra.mxu0 %v2646
    %v2648 = vand.u32 %v2319, 4294901760
    %v2649 = vsub.f32 %v2319, %v2648
    %v2650 = vand.u32 %v2649, 4294901760
    %v2651 = vsub.f32 %v2649, %v2650
    %v2652 = vand.u32 %v2651, 4294901760
    %2653 = vmatpush.msra.mxu0 %v2652
    %v2654 = vand.u32 %v2318, 4294901760
    %v2655 = vsub.f32 %v2318, %v2654
    %v2656 = vand.u32 %v2655, 4294901760
    %v2657 = vsub.f32 %v2655, %v2656
    %v2658 = vand.u32 %v2657, 4294901760
    %2659 = vmatpush.msra.mxu0 %v2658
    %v2660 = vand.u32 %v2317, 4294901760
    %v2661 = vsub.f32 %v2317, %v2660
    %v2662 = vand.u32 %v2661, 4294901760
    %v2663 = vsub.f32 %v2661, %v2662
    %v2664 = vand.u32 %v2663, 4294901760
    %2665 = vmatpush.msra.mxu0 %v2664
    %v2666 = vand.u32 %v2575, 4294901760
    %2667 = vmatmul.f32.gmra.mxu0 %v2666
    %v2668 = vpop.f32.mrf.mxu0
    %v2669 = vadd.f32 %v2608, %v2668
    %2670 = vdwg.mxu0
    %2671 = vmatpush.msra.mxu0 0.0
    %2672 = vmatpush.msra.mxu0 0.0
    %2673 = vmatpush.msra.mxu0 0.0
    %2674 = vmatpush.msra.mxu0 0.0
    %2675 = vmatpush.msra.mxu0 0.0
    %2676 = vmatpush.msra.mxu0 0.0
    %2677 = vmatpush.msra.mxu0 0.0
    %2678 = vmatpush.msra.mxu0 0.0
    %v2679 = vand.u32 %v2324, 4294901760
    %v2680 = vsub.f32 %v2324, %v2679
    %2681 = vmatpush.msra.mxu0 %v2680
    %v2682 = vand.u32 %v2323, 4294901760
    %v2683 = vsub.f32 %v2323, %v2682
    %2684 = vmatpush.msra.mxu0 %v2683
    %v2685 = vand.u32 %v2322, 4294901760
    %v2686 = vsub.f32 %v2322, %v2685
    %2687 = vmatpush.msra.mxu0 %v2686
    %v2688 = vand.u32 %v2321, 4294901760
    %v2689 = vsub.f32 %v2321, %v2688
    %2690 = vmatpush.msra.mxu0 %v2689
    %v2691 = vand.u32 %v2320, 4294901760
    %v2692 = vsub.f32 %v2320, %v2691
    %2693 = vmatpush.msra.mxu0 %v2692
    %v2694 = vand.u32 %v2319, 4294901760
    %v2695 = vsub.f32 %v2319, %v2694
    %2696 = vmatpush.msra.mxu0 %v2695
    %v2697 = vand.u32 %v2318, 4294901760
    %v2698 = vsub.f32 %v2318, %v2697
    %2699 = vmatpush.msra.mxu0 %v2698
    %v2700 = vand.u32 %v2317, 4294901760
    %v2701 = vsub.f32 %v2317, %v2700
    %2702 = vmatpush.msra.mxu0 %v2701
    %v2703 = vand.u32 %v2575, 4294901760
    %v2704 = vsub.f32 %v2575, %v2703
    %2705 = vmatmul.f32.gmra.mxu0 %v2704
    %v2706 = vpop.f32.mrf.mxu0
    %v2707 = vadd.f32 %v2669, %v2706
    %2708 = vdwg.mxu0
    %2709 = vmatpush.msra.mxu0 0.0
    %2710 = vmatpush.msra.mxu0 0.0
    %2711 = vmatpush.msra.mxu0 0.0
    %2712 = vmatpush.msra.mxu0 0.0
    %2713 = vmatpush.msra.mxu0 0.0
    %2714 = vmatpush.msra.mxu0 0.0
    %2715 = vmatpush.msra.mxu0 0.0
    %2716 = vmatpush.msra.mxu0 0.0
    %v2717 = vand.u32 %v2324, 4294901760
    %2718 = vmatpush.msra.mxu0 %v2717
    %v2719 = vand.u32 %v2323, 4294901760
    %2720 = vmatpush.msra.mxu0 %v2719
    %v2721 = vand.u32 %v2322, 4294901760
    %2722 = vmatpush.msra.mxu0 %v2721
    %v2723 = vand.u32 %v2321, 4294901760
    %2724 = vmatpush.msra.mxu0 %v2723
    %v2725 = vand.u32 %v2320, 4294901760
    %2726 = vmatpush.msra.mxu0 %v2725
    %v2727 = vand.u32 %v2319, 4294901760
    %2728 = vmatpush.msra.mxu0 %v2727
    %v2729 = vand.u32 %v2318, 4294901760
    %2730 = vmatpush.msra.mxu0 %v2729
    %v2731 = vand.u32 %v2317, 4294901760
    %2732 = vmatpush.msra.mxu0 %v2731
    %v2733 = vand.u32 %v2575, 4294901760
    %v2734 = vsub.f32 %v2575, %v2733
    %v2735 = vand.u32 %v2734, 4294901760
    %2736 = vmatmul.f32.gmra.mxu0 %v2735
    %v2737 = vpop.f32.mrf.mxu0
    %v2738 = vadd.f32 %v2707, %v2737
    %2739 = vdwg.mxu0
    %2740 = vmatpush.msra.mxu0 0.0
    %2741 = vmatpush.msra.mxu0 0.0
    %2742 = vmatpush.msra.mxu0 0.0
    %2743 = vmatpush.msra.mxu0 0.0
    %2744 = vmatpush.msra.mxu0 0.0
    %2745 = vmatpush.msra.mxu0 0.0
    %2746 = vmatpush.msra.mxu0 0.0
    %2747 = vmatpush.msra.mxu0 0.0
    %v2748 = vand.u32 %v2324, 4294901760
    %v2749 = vsub.f32 %v2324, %v2748
    %v2750 = vand.u32 %v2749, 4294901760
    %2751 = vmatpush.msra.mxu0 %v2750
    %v2752 = vand.u32 %v2323, 4294901760
    %v2753 = vsub.f32 %v2323, %v2752
    %v2754 = vand.u32 %v2753, 4294901760
    %2755 = vmatpush.msra.mxu0 %v2754
    %v2756 = vand.u32 %v2322, 4294901760
    %v2757 = vsub.f32 %v2322, %v2756
    %v2758 = vand.u32 %v2757, 4294901760
    %2759 = vmatpush.msra.mxu0 %v2758
    %v2760 = vand.u32 %v2321, 4294901760
    %v2761 = vsub.f32 %v2321, %v2760
    %v2762 = vand.u32 %v2761, 4294901760
    %2763 = vmatpush.msra.mxu0 %v2762
    %v2764 = vand.u32 %v2320, 4294901760
    %v2765 = vsub.f32 %v2320, %v2764
    %v2766 = vand.u32 %v2765, 4294901760
    %2767 = vmatpush.msra.mxu0 %v2766
    %v2768 = vand.u32 %v2319, 4294901760
    %v2769 = vsub.f32 %v2319, %v2768
    %v2770 = vand.u32 %v2769, 4294901760
    %2771 = vmatpush.msra.mxu0 %v2770
    %v2772 = vand.u32 %v2318, 4294901760
    %v2773 = vsub.f32 %v2318, %v2772
    %v2774 = vand.u32 %v2773, 4294901760
    %2775 = vmatpush.msra.mxu0 %v2774
    %v2776 = vand.u32 %v2317, 4294901760
    %v2777 = vsub.f32 %v2317, %v2776
    %v2778 = vand.u32 %v2777, 4294901760
    %2779 = vmatpush.msra.mxu0 %v2778
    %v2780 = vand.u32 %v2575, 4294901760
    %2781 = vmatmul.f32.gmra.mxu0 %v2780
    %v2782 = vpop.f32.mrf.mxu0
    %v2783 = vadd.f32 %v2738, %v2782
    %2784 = vdwg.mxu0
    %2785 = vmatpush.msra.mxu0 0.0
    %2786 = vmatpush.msra.mxu0 0.0
    %2787 = vmatpush.msra.mxu0 0.0
    %2788 = vmatpush.msra.mxu0 0.0
    %2789 = vmatpush.msra.mxu0 0.0
    %2790 = vmatpush.msra.mxu0 0.0
    %2791 = vmatpush.msra.mxu0 0.0
    %2792 = vmatpush.msra.mxu0 0.0
    %v2793 = vand.u32 %v2324, 4294901760
    %2794 = vmatpush.msra.mxu0 %v2793
    %v2795 = vand.u32 %v2323, 4294901760
    %2796 = vmatpush.msra.mxu0 %v2795
    %v2797 = vand.u32 %v2322, 4294901760
    %2798 = vmatpush.msra.mxu0 %v2797
    %v2799 = vand.u32 %v2321, 4294901760
    %2800 = vmatpush.msra.mxu0 %v2799
    %v2801 = vand.u32 %v2320, 4294901760
    %2802 = vmatpush.msra.mxu0 %v2801
    %v2803 = vand.u32 %v2319, 4294901760
    %2804 = vmatpush.msra.mxu0 %v2803
    %v2805 = vand.u32 %v2318, 4294901760
    %2806 = vmatpush.msra.mxu0 %v2805
    %v2807 = vand.u32 %v2317, 4294901760
    %2808 = vmatpush.msra.mxu0 %v2807
    %v2809 = vand.u32 %v2575, 4294901760
    %2810 = vmatmul.f32.gmra.mxu0 %v2809
    %v2811 = vpop.f32.mrf.mxu0
    %v2812 = vadd.f32 %v2783, %v2811
    %2813 = vdwg.mxu0
    %v2814 = vmax.f32 %v2314, 0.0
    %v2815 = vld [vmem:[%s5 + $0x80] sm:$0xff]
    %v2816 = vld [vmem:[%s5 + $0x88] sm:$0xff]
    %v2817 = vld [vmem:[%s5 + $0x90] sm:$0xff]
    %v2818 = vld [vmem:[%s5 + $0x98] sm:$0xff]
    %v2819 = vld [vmem:[%s5 + $0xa0] sm:$0xff]
    %v2820 = vld [vmem:[%s5 + $0xa8] sm:$0xff]
    %v2821 = vld [vmem:[%s5 + $0xb0] sm:$0xff]
    %v2822 = vld [vmem:[%s5 + $0xb8] sm:$0xff]
    %v2824 = vsel %vm59, %v2814, 0
    %2826 = vmatpush.msra.mxu0 0.0
    %2827 = vmatpush.msra.mxu0 0.0
    %2828 = vmatpush.msra.mxu0 0.0
    %2829 = vmatpush.msra.mxu0 0.0
    %2830 = vmatpush.msra.mxu0 0.0
    %2831 = vmatpush.msra.mxu0 0.0
    %2832 = vmatpush.msra.mxu0 0.0
    %2833 = vmatpush.msra.mxu0 0.0
    %v2834 = vand.u32 %v2822, 4294901760
    %2835 = vmatpush.msra.mxu0 %v2834
    %v2836 = vand.u32 %v2821, 4294901760
    %2837 = vmatpush.msra.mxu0 %v2836
    %v2838 = vand.u32 %v2820, 4294901760
    %2839 = vmatpush.msra.mxu0 %v2838
    %v2840 = vand.u32 %v2819, 4294901760
    %2841 = vmatpush.msra.mxu0 %v2840
    %v2842 = vand.u32 %v2818, 4294901760
    %2843 = vmatpush.msra.mxu0 %v2842
    %v2844 = vand.u32 %v2817, 4294901760
    %2845 = vmatpush.msra.mxu0 %v2844
    %v2846 = vand.u32 %v2816, 4294901760
    %2847 = vmatpush.msra.mxu0 %v2846
    %v2848 = vand.u32 %v2815, 4294901760
    %2849 = vmatpush.msra.mxu0 %v2848
    %v2850 = vand.u32 %v2824, 4294901760
    %v2851 = vsub.f32 %v2824, %v2850
    %v2852 = vand.u32 %v2851, 4294901760
    %v2853 = vsub.f32 %v2851, %v2852
    %v2854 = vand.u32 %v2853, 4294901760
    %2855 = vmatmul.f32.gmra.mxu0 %v2854
    %v2856 = vpop.f32.mrf.mxu0
    %v2857 = vadd.f32 0.0, %v2856
    %2858 = vdwg.mxu0
    %2859 = vmatpush.msra.mxu0 0.0
    %2860 = vmatpush.msra.mxu0 0.0
    %2861 = vmatpush.msra.mxu0 0.0
    %2862 = vmatpush.msra.mxu0 0.0
    %2863 = vmatpush.msra.mxu0 0.0
    %2864 = vmatpush.msra.mxu0 0.0
    %2865 = vmatpush.msra.mxu0 0.0
    %2866 = vmatpush.msra.mxu0 0.0
    %v2867 = vand.u32 %v2822, 4294901760
    %v2868 = vsub.f32 %v2822, %v2867
    %v2869 = vand.u32 %v2868, 4294901760
    %v2870 = vsub.f32 %v2868, %v2869
    %v2871 = vand.u32 %v2870, 4294901760
    %2872 = vmatpush.msra.mxu0 %v2871
    %v2873 = vand.u32 %v2821, 4294901760
    %v2874 = vsub.f32 %v2821, %v2873
    %v2875 = vand.u32 %v2874, 4294901760
    %v2876 = vsub.f32 %v2874, %v2875
    %v2877 = vand.u32 %v2876, 4294901760
    %2878 = vmatpush.msra.mxu0 %v2877
    %v2879 = vand.u32 %v2820, 4294901760
    %v2880 = vsub.f32 %v2820, %v2879
    %v2881 = vand.u32 %v2880, 4294901760
    %v2882 = vsub.f32 %v2880, %v2881
    %v2883 = vand.u32 %v2882, 4294901760
    %2884 = vmatpush.msra.mxu0 %v2883
    %v2885 = vand.u32 %v2819, 4294901760
    %v2886 = vsub.f32 %v2819, %v2885
    %v2887 = vand.u32 %v2886, 4294901760
    %v2888 = vsub.f32 %v2886, %v2887
    %v2889 = vand.u32 %v2888, 4294901760
    %2890 = vmatpush.msra.mxu0 %v2889
    %v2891 = vand.u32 %v2818, 4294901760
    %v2892 = vsub.f32 %v2818, %v2891
    %v2893 = vand.u32 %v2892, 4294901760
    %v2894 = vsub.f32 %v2892, %v2893
    %v2895 = vand.u32 %v2894, 4294901760
    %2896 = vmatpush.msra.mxu0 %v2895
    %v2897 = vand.u32 %v2817, 4294901760
    %v2898 = vsub.f32 %v2817, %v2897
    %v2899 = vand.u32 %v2898, 4294901760
    %v2900 = vsub.f32 %v2898, %v2899
    %v2901 = vand.u32 %v2900, 4294901760
    %2902 = vmatpush.msra.mxu0 %v2901
    %v2903 = vand.u32 %v2816, 4294901760
    %v2904 = vsub.f32 %v2816, %v2903
    %v2905 = vand.u32 %v2904, 4294901760
    %v2906 = vsub.f32 %v2904, %v2905
    %v2907 = vand.u32 %v2906, 4294901760
    %2908 = vmatpush.msra.mxu0 %v2907
    %v2909 = vand.u32 %v2815, 4294901760
    %v2910 = vsub.f32 %v2815, %v2909
    %v2911 = vand.u32 %v2910, 4294901760
    %v2912 = vsub.f32 %v2910, %v2911
    %v2913 = vand.u32 %v2912, 4294901760
    %2914 = vmatpush.msra.mxu0 %v2913
    %v2915 = vand.u32 %v2824, 4294901760
    %2916 = vmatmul.f32.gmra.mxu0 %v2915
    %v2917 = vpop.f32.mrf.mxu0
    %v2918 = vadd.f32 %v2857, %v2917
    %2919 = vdwg.mxu0
    %2920 = vmatpush.msra.mxu0 0.0
    %2921 = vmatpush.msra.mxu0 0.0
    %2922 = vmatpush.msra.mxu0 0.0
    %2923 = vmatpush.msra.mxu0 0.0
    %2924 = vmatpush.msra.mxu0 0.0
    %2925 = vmatpush.msra.mxu0 0.0
    %2926 = vmatpush.msra.mxu0 0.0
    %2927 = vmatpush.msra.mxu0 0.0
    %v2928 = vand.u32 %v2822, 4294901760
    %v2929 = vsub.f32 %v2822, %v2928
    %2930 = vmatpush.msra.mxu0 %v2929
    %v2931 = vand.u32 %v2821, 4294901760
    %v2932 = vsub.f32 %v2821, %v2931
    %2933 = vmatpush.msra.mxu0 %v2932
    %v2934 = vand.u32 %v2820, 4294901760
    %v2935 = vsub.f32 %v2820, %v2934
    %2936 = vmatpush.msra.mxu0 %v2935
    %v2937 = vand.u32 %v2819, 4294901760
    %v2938 = vsub.f32 %v2819, %v2937
    %2939 = vmatpush.msra.mxu0 %v2938
    %v2940 = vand.u32 %v2818, 4294901760
    %v2941 = vsub.f32 %v2818, %v2940
    %2942 = vmatpush.msra.mxu0 %v2941
    %v2943 = vand.u32 %v2817, 4294901760
    %v2944 = vsub.f32 %v2817, %v2943
    %2945 = vmatpush.msra.mxu0 %v2944
    %v2946 = vand.u32 %v2816, 4294901760
    %v2947 = vsub.f32 %v2816, %v2946
    %2948 = vmatpush.msra.mxu0 %v2947
    %v2949 = vand.u32 %v2815, 4294901760
    %v2950 = vsub.f32 %v2815, %v2949
    %2951 = vmatpush.msra.mxu0 %v2950
    %v2952 = vand.u32 %v2824, 4294901760
    %v2953 = vsub.f32 %v2824, %v2952
    %2954 = vmatmul.f32.gmra.mxu0 %v2953
    %v2955 = vpop.f32.mrf.mxu0
    %v2956 = vadd.f32 %v2918, %v2955
    %2957 = vdwg.mxu0
    %2958 = vmatpush.msra.mxu0 0.0
    %2959 = vmatpush.msra.mxu0 0.0
    %2960 = vmatpush.msra.mxu0 0.0
    %2961 = vmatpush.msra.mxu0 0.0
    %2962 = vmatpush.msra.mxu0 0.0
    %2963 = vmatpush.msra.mxu0 0.0
    %2964 = vmatpush.msra.mxu0 0.0
    %2965 = vmatpush.msra.mxu0 0.0
    %v2966 = vand.u32 %v2822, 4294901760
    %2967 = vmatpush.msra.mxu0 %v2966
    %v2968 = vand.u32 %v2821, 4294901760
    %2969 = vmatpush.msra.mxu0 %v2968
    %v2970 = vand.u32 %v2820, 4294901760
    %2971 = vmatpush.msra.mxu0 %v2970
    %v2972 = vand.u32 %v2819, 4294901760
    %2973 = vmatpush.msra.mxu0 %v2972
    %v2974 = vand.u32 %v2818, 4294901760
    %2975 = vmatpush.msra.mxu0 %v2974
    %v2976 = vand.u32 %v2817, 4294901760
    %2977 = vmatpush.msra.mxu0 %v2976
    %v2978 = vand.u32 %v2816, 4294901760
    %2979 = vmatpush.msra.mxu0 %v2978
    %v2980 = vand.u32 %v2815, 4294901760
    %2981 = vmatpush.msra.mxu0 %v2980
    %v2982 = vand.u32 %v2824, 4294901760
    %v2983 = vsub.f32 %v2824, %v2982
    %v2984 = vand.u32 %v2983, 4294901760
    %2985 = vmatmul.f32.gmra.mxu0 %v2984
    %v2986 = vpop.f32.mrf.mxu0
    %v2987 = vadd.f32 %v2956, %v2986
    %2988 = vdwg.mxu0
    %2989 = vmatpush.msra.mxu0 0.0
    %2990 = vmatpush.msra.mxu0 0.0
    %2991 = vmatpush.msra.mxu0 0.0
    %2992 = vmatpush.msra.mxu0 0.0
    %2993 = vmatpush.msra.mxu0 0.0
    %2994 = vmatpush.msra.mxu0 0.0
    %2995 = vmatpush.msra.mxu0 0.0
    %2996 = vmatpush.msra.mxu0 0.0
    %v2997 = vand.u32 %v2822, 4294901760
    %v2998 = vsub.f32 %v2822, %v2997
    %v2999 = vand.u32 %v2998, 4294901760
    %3000 = vmatpush.msra.mxu0 %v2999
    %v3001 = vand.u32 %v2821, 4294901760
    %v3002 = vsub.f32 %v2821, %v3001
    %v3003 = vand.u32 %v3002, 4294901760
    %3004 = vmatpush.msra.mxu0 %v3003
    %v3005 = vand.u32 %v2820, 4294901760
    %v3006 = vsub.f32 %v2820, %v3005
    %v3007 = vand.u32 %v3006, 4294901760
    %3008 = vmatpush.msra.mxu0 %v3007
    %v3009 = vand.u32 %v2819, 4294901760
    %v3010 = vsub.f32 %v2819, %v3009
    %v3011 = vand.u32 %v3010, 4294901760
    %3012 = vmatpush.msra.mxu0 %v3011
    %v3013 = vand.u32 %v2818, 4294901760
    %v3014 = vsub.f32 %v2818, %v3013
    %v3015 = vand.u32 %v3014, 4294901760
    %3016 = vmatpush.msra.mxu0 %v3015
    %v3017 = vand.u32 %v2817, 4294901760
    %v3018 = vsub.f32 %v2817, %v3017
    %v3019 = vand.u32 %v3018, 4294901760
    %3020 = vmatpush.msra.mxu0 %v3019
    %v3021 = vand.u32 %v2816, 4294901760
    %v3022 = vsub.f32 %v2816, %v3021
    %v3023 = vand.u32 %v3022, 4294901760
    %3024 = vmatpush.msra.mxu0 %v3023
    %v3025 = vand.u32 %v2815, 4294901760
    %v3026 = vsub.f32 %v2815, %v3025
    %v3027 = vand.u32 %v3026, 4294901760
    %3028 = vmatpush.msra.mxu0 %v3027
    %v3029 = vand.u32 %v2824, 4294901760
    %3030 = vmatmul.f32.gmra.mxu0 %v3029
    %v3031 = vpop.f32.mrf.mxu0
    %v3032 = vadd.f32 %v2987, %v3031
    %3033 = vdwg.mxu0
    %3034 = vmatpush.msra.mxu0 0.0
    %3035 = vmatpush.msra.mxu0 0.0
    %3036 = vmatpush.msra.mxu0 0.0
    %3037 = vmatpush.msra.mxu0 0.0
    %3038 = vmatpush.msra.mxu0 0.0
    %3039 = vmatpush.msra.mxu0 0.0
    %3040 = vmatpush.msra.mxu0 0.0
    %3041 = vmatpush.msra.mxu0 0.0
    %v3042 = vand.u32 %v2822, 4294901760
    %3043 = vmatpush.msra.mxu0 %v3042
    %v3044 = vand.u32 %v2821, 4294901760
    %3045 = vmatpush.msra.mxu0 %v3044
    %v3046 = vand.u32 %v2820, 4294901760
    %3047 = vmatpush.msra.mxu0 %v3046
    %v3048 = vand.u32 %v2819, 4294901760
    %3049 = vmatpush.msra.mxu0 %v3048
    %v3050 = vand.u32 %v2818, 4294901760
    %3051 = vmatpush.msra.mxu0 %v3050
    %v3052 = vand.u32 %v2817, 4294901760
    %3053 = vmatpush.msra.mxu0 %v3052
    %v3054 = vand.u32 %v2816, 4294901760
    %3055 = vmatpush.msra.mxu0 %v3054
    %v3056 = vand.u32 %v2815, 4294901760
    %3057 = vmatpush.msra.mxu0 %v3056
    %v3058 = vand.u32 %v2824, 4294901760
    %3059 = vmatmul.f32.gmra.mxu0 %v3058
    %v3060 = vpop.f32.mrf.mxu0
    %v3061 = vadd.f32 %v3032, %v3060
    %3062 = vdwg.mxu0
    %v3063 = vadd.f32 %v2812, %v3061
    %v3064 = vld [vmem:[%s6] sm:$0x1]
    %v3065 = vadd.f32 %v3063, %v3064
    %v3066 = vmax.f32 %v3065, 0.0
    %v3067 = vld [vmem:[#allocation2] sm:$0xff]
    %v3068 = vld [vmem:[#allocation2 + $0x8] sm:$0xff]
    %v3069 = vld [vmem:[#allocation2 + $0x10] sm:$0xff]
    %v3070 = vld [vmem:[#allocation2 + $0x18] sm:$0xff]
    %v3071 = vld [vmem:[#allocation2 + $0x20] sm:$0xff]
    %v3072 = vld [vmem:[#allocation2 + $0x28] sm:$0xff]
    %v3073 = vld [vmem:[#allocation2 + $0x30] sm:$0xff]
    %v3074 = vld [vmem:[#allocation2 + $0x38] sm:$0xff]
    %v3075 = vld [vmem:[#allocation2 + $0x40] sm:$0xff]
    %v3076 = vld [vmem:[#allocation2 + $0x48] sm:$0xff]
    %v3077 = vld [vmem:[#allocation2 + $0x50] sm:$0xff]
    %v3078 = vld [vmem:[#allocation2 + $0x58] sm:$0xff]
    %v3079 = vld [vmem:[#allocation2 + $0x60] sm:$0xff]
    %v3080 = vld [vmem:[#allocation2 + $0x68] sm:$0xff]
    %v3081 = vld [vmem:[#allocation2 + $0x70] sm:$0xff]
    %v3082 = vld [vmem:[#allocation2 + $0x78] sm:$0xff]
    %v3083 = vld [vmem:[%s8] sm:$0x1]
    %v3084 = vand.u32 %v3082, 4294901760
    %3085 = vmatpush.msra.mxu0 %v3084
    %v3086 = vand.u32 %v3081, 4294901760
    %3087 = vmatpush.msra.mxu0 %v3086
    %v3088 = vand.u32 %v3080, 4294901760
    %3089 = vmatpush.msra.mxu0 %v3088
    %v3090 = vand.u32 %v3079, 4294901760
    %3091 = vmatpush.msra.mxu0 %v3090
    %v3092 = vand.u32 %v3078, 4294901760
    %3093 = vmatpush.msra.mxu0 %v3092
    %v3094 = vand.u32 %v3077, 4294901760
    %3095 = vmatpush.msra.mxu0 %v3094
    %v3096 = vand.u32 %v3076, 4294901760
    %3097 = vmatpush.msra.mxu0 %v3096
    %v3098 = vand.u32 %v3075, 4294901760
    %3099 = vmatpush.msra.mxu0 %v3098
    %v3100 = vand.u32 %v3074, 4294901760
    %3101 = vmatpush.msra.mxu0 %v3100
    %v3102 = vand.u32 %v3073, 4294901760
    %3103 = vmatpush.msra.mxu0 %v3102
    %v3104 = vand.u32 %v3072, 4294901760
    %3105 = vmatpush.msra.mxu0 %v3104
    %v3106 = vand.u32 %v3071, 4294901760
    %3107 = vmatpush.msra.mxu0 %v3106
    %v3108 = vand.u32 %v3070, 4294901760
    %3109 = vmatpush.msra.mxu0 %v3108
    %v3110 = vand.u32 %v3069, 4294901760
    %3111 = vmatpush.msra.mxu0 %v3110
    %v3112 = vand.u32 %v3068, 4294901760
    %3113 = vmatpush.msra.mxu0 %v3112
    %v3114 = vand.u32 %v3067, 4294901760
    %3115 = vmatpush.msra.mxu0 %v3114
    %v3116 = vand.u32 %v3066, 4294901760
    %v3117 = vsub.f32 %v3066, %v3116
    %v3118 = vand.u32 %v3117, 4294901760
    %v3119 = vsub.f32 %v3117, %v3118
    %v3120 = vand.u32 %v3119, 4294901760
    %3121 = vmatmul.f32.gmra.mxu0 %v3120
    %v3122 = vpop.f32.mrf.mxu0
    %v3123 = vadd.f32 %v3083, %v3122
    %3124 = vdwg.mxu0
    %v3125 = vand.u32 %v3082, 4294901760
    %v3126 = vsub.f32 %v3082, %v3125
    %v3127 = vand.u32 %v3126, 4294901760
    %v3128 = vsub.f32 %v3126, %v3127
    %v3129 = vand.u32 %v3128, 4294901760
    %3130 = vmatpush.msra.mxu0 %v3129
    %v3131 = vand.u32 %v3081, 4294901760
    %v3132 = vsub.f32 %v3081, %v3131
    %v3133 = vand.u32 %v3132, 4294901760
    %v3134 = vsub.f32 %v3132, %v3133
    %v3135 = vand.u32 %v3134, 4294901760
    %3136 = vmatpush.msra.mxu0 %v3135
    %v3137 = vand.u32 %v3080, 4294901760
    %v3138 = vsub.f32 %v3080, %v3137
    %v3139 = vand.u32 %v3138, 4294901760
    %v3140 = vsub.f32 %v3138, %v3139
    %v3141 = vand.u32 %v3140, 4294901760
    %3142 = vmatpush.msra.mxu0 %v3141
    %v3143 = vand.u32 %v3079, 4294901760
    %v3144 = vsub.f32 %v3079, %v3143
    %v3145 = vand.u32 %v3144, 4294901760
    %v3146 = vsub.f32 %v3144, %v3145
    %v3147 = vand.u32 %v3146, 4294901760
    %3148 = vmatpush.msra.mxu0 %v3147
    %v3149 = vand.u32 %v3078, 4294901760
    %v3150 = vsub.f32 %v3078, %v3149
    %v3151 = vand.u32 %v3150, 4294901760
    %v3152 = vsub.f32 %v3150, %v3151
    %v3153 = vand.u32 %v3152, 4294901760
    %3154 = vmatpush.msra.mxu0 %v3153
    %v3155 = vand.u32 %v3077, 4294901760
    %v3156 = vsub.f32 %v3077, %v3155
    %v3157 = vand.u32 %v3156, 4294901760
    %v3158 = vsub.f32 %v3156, %v3157
    %v3159 = vand.u32 %v3158, 4294901760
    %3160 = vmatpush.msra.mxu0 %v3159
    %v3161 = vand.u32 %v3076, 4294901760
    %v3162 = vsub.f32 %v3076, %v3161
    %v3163 = vand.u32 %v3162, 4294901760
    %v3164 = vsub.f32 %v3162, %v3163
    %v3165 = vand.u32 %v3164, 4294901760
    %3166 = vmatpush.msra.mxu0 %v3165
    %v3167 = vand.u32 %v3075, 4294901760
    %v3168 = vsub.f32 %v3075, %v3167
    %v3169 = vand.u32 %v3168, 4294901760
    %v3170 = vsub.f32 %v3168, %v3169
    %v3171 = vand.u32 %v3170, 4294901760
    %3172 = vmatpush.msra.mxu0 %v3171
    %v3173 = vand.u32 %v3074, 4294901760
    %v3174 = vsub.f32 %v3074, %v3173
    %v3175 = vand.u32 %v3174, 4294901760
    %v3176 = vsub.f32 %v3174, %v3175
    %v3177 = vand.u32 %v3176, 4294901760
    %3178 = vmatpush.msra.mxu0 %v3177
    %v3179 = vand.u32 %v3073, 4294901760
    %v3180 = vsub.f32 %v3073, %v3179
    %v3181 = vand.u32 %v3180, 4294901760
    %v3182 = vsub.f32 %v3180, %v3181
    %v3183 = vand.u32 %v3182, 4294901760
    %3184 = vmatpush.msra.mxu0 %v3183
    %v3185 = vand.u32 %v3072, 4294901760
    %v3186 = vsub.f32 %v3072, %v3185
    %v3187 = vand.u32 %v3186, 4294901760
    %v3188 = vsub.f32 %v3186, %v3187
    %v3189 = vand.u32 %v3188, 4294901760
    %3190 = vmatpush.msra.mxu0 %v3189
    %v3191 = vand.u32 %v3071, 4294901760
    %v3192 = vsub.f32 %v3071, %v3191
    %v3193 = vand.u32 %v3192, 4294901760
    %v3194 = vsub.f32 %v3192, %v3193
    %v3195 = vand.u32 %v3194, 4294901760
    %3196 = vmatpush.msra.mxu0 %v3195
    %v3197 = vand.u32 %v3070, 4294901760
    %v3198 = vsub.f32 %v3070, %v3197
    %v3199 = vand.u32 %v3198, 4294901760
    %v3200 = vsub.f32 %v3198, %v3199
    %v3201 = vand.u32 %v3200, 4294901760
    %3202 = vmatpush.msra.mxu0 %v3201
    %v3203 = vand.u32 %v3069, 4294901760
    %v3204 = vsub.f32 %v3069, %v3203
    %v3205 = vand.u32 %v3204, 4294901760
    %v3206 = vsub.f32 %v3204, %v3205
    %v3207 = vand.u32 %v3206, 4294901760
    %3208 = vmatpush.msra.mxu0 %v3207
    %v3209 = vand.u32 %v3068, 4294901760
    %v3210 = vsub.f32 %v3068, %v3209
    %v3211 = vand.u32 %v3210, 4294901760
    %v3212 = vsub.f32 %v3210, %v3211
    %v3213 = vand.u32 %v3212, 4294901760
    %3214 = vmatpush.msra.mxu0 %v3213
    %v3215 = vand.u32 %v3067, 4294901760
    %v3216 = vsub.f32 %v3067, %v3215
    %v3217 = vand.u32 %v3216, 4294901760
    %v3218 = vsub.f32 %v3216, %v3217
    %v3219 = vand.u32 %v3218, 4294901760
    %3220 = vmatpush.msra.mxu0 %v3219
    %v3221 = vand.u32 %v3066, 4294901760
    %3222 = vmatmul.f32.gmra.mxu0 %v3221
    %v3223 = vpop.f32.mrf.mxu0
    %v3224 = vadd.f32 %v3123, %v3223
    %3225 = vdwg.mxu0
    %v3226 = vand.u32 %v3082, 4294901760
    %v3227 = vsub.f32 %v3082, %v3226
    %3228 = vmatpush.msra.mxu0 %v3227
    %v3229 = vand.u32 %v3081, 4294901760
    %v3230 = vsub.f32 %v3081, %v3229
    %3231 = vmatpush.msra.mxu0 %v3230
    %v3232 = vand.u32 %v3080, 4294901760
    %v3233 = vsub.f32 %v3080, %v3232
    %3234 = vmatpush.msra.mxu0 %v3233
    %v3235 = vand.u32 %v3079, 4294901760
    %v3236 = vsub.f32 %v3079, %v3235
    %3237 = vmatpush.msra.mxu0 %v3236
    %v3238 = vand.u32 %v3078, 4294901760
    %v3239 = vsub.f32 %v3078, %v3238
    %3240 = vmatpush.msra.mxu0 %v3239
    %v3241 = vand.u32 %v3077, 4294901760
    %v3242 = vsub.f32 %v3077, %v3241
    %3243 = vmatpush.msra.mxu0 %v3242
    %v3244 = vand.u32 %v3076, 4294901760
    %v3245 = vsub.f32 %v3076, %v3244
    %3246 = vmatpush.msra.mxu0 %v3245
    %v3247 = vand.u32 %v3075, 4294901760
    %v3248 = vsub.f32 %v3075, %v3247
    %3249 = vmatpush.msra.mxu0 %v3248
    %v3250 = vand.u32 %v3074, 4294901760
    %v3251 = vsub.f32 %v3074, %v3250
    %3252 = vmatpush.msra.mxu0 %v3251
    %v3253 = vand.u32 %v3073, 4294901760
    %v3254 = vsub.f32 %v3073, %v3253
    %3255 = vmatpush.msra.mxu0 %v3254
    %v3256 = vand.u32 %v3072, 4294901760
    %v3257 = vsub.f32 %v3072, %v3256
    %3258 = vmatpush.msra.mxu0 %v3257
    %v3259 = vand.u32 %v3071, 4294901760
    %v3260 = vsub.f32 %v3071, %v3259
    %3261 = vmatpush.msra.mxu0 %v3260
    %v3262 = vand.u32 %v3070, 4294901760
    %v3263 = vsub.f32 %v3070, %v3262
    %3264 = vmatpush.msra.mxu0 %v3263
    %v3265 = vand.u32 %v3069, 4294901760
    %v3266 = vsub.f32 %v3069, %v3265
    %3267 = vmatpush.msra.mxu0 %v3266
    %v3268 = vand.u32 %v3068, 4294901760
    %v3269 = vsub.f32 %v3068, %v3268
    %3270 = vmatpush.msra.mxu0 %v3269
    %v3271 = vand.u32 %v3067, 4294901760
    %v3272 = vsub.f32 %v3067, %v3271
    %3273 = vmatpush.msra.mxu0 %v3272
    %v3274 = vand.u32 %v3066, 4294901760
    %v3275 = vsub.f32 %v3066, %v3274
    %3276 = vmatmul.f32.gmra.mxu0 %v3275
    %v3277 = vpop.f32.mrf.mxu0
    %v3278 = vadd.f32 %v3224, %v3277
    %3279 = vdwg.mxu0
    %v3280 = vand.u32 %v3082, 4294901760
    %3281 = vmatpush.msra.mxu0 %v3280
    %v3282 = vand.u32 %v3081, 4294901760
    %3283 = vmatpush.msra.mxu0 %v3282
    %v3284 = vand.u32 %v3080, 4294901760
    %3285 = vmatpush.msra.mxu0 %v3284
    %v3286 = vand.u32 %v3079, 4294901760
    %3287 = vmatpush.msra.mxu0 %v3286
    %v3288 = vand.u32 %v3078, 4294901760
    %3289 = vmatpush.msra.mxu0 %v3288
    %v3290 = vand.u32 %v3077, 4294901760
    %3291 = vmatpush.msra.mxu0 %v3290
    %v3292 = vand.u32 %v3076, 4294901760
    %3293 = vmatpush.msra.mxu0 %v3292
    %v3294 = vand.u32 %v3075, 4294901760
    %3295 = vmatpush.msra.mxu0 %v3294
    %v3296 = vand.u32 %v3074, 4294901760
    %3297 = vmatpush.msra.mxu0 %v3296
    %v3298 = vand.u32 %v3073, 4294901760
    %3299 = vmatpush.msra.mxu0 %v3298
    %v3300 = vand.u32 %v3072, 4294901760
    %3301 = vmatpush.msra.mxu0 %v3300
    %v3302 = vand.u32 %v3071, 4294901760
    %3303 = vmatpush.msra.mxu0 %v3302
    %v3304 = vand.u32 %v3070, 4294901760
    %3305 = vmatpush.msra.mxu0 %v3304
    %v3306 = vand.u32 %v3069, 4294901760
    %3307 = vmatpush.msra.mxu0 %v3306
    %v3308 = vand.u32 %v3068, 4294901760
    %3309 = vmatpush.msra.mxu0 %v3308
    %v3310 = vand.u32 %v3067, 4294901760
    %3311 = vmatpush.msra.mxu0 %v3310
    %v3312 = vand.u32 %v3066, 4294901760
    %v3313 = vsub.f32 %v3066, %v3312
    %v3314 = vand.u32 %v3313, 4294901760
    %3315 = vmatmul.f32.gmra.mxu0 %v3314
    %v3316 = vpop.f32.mrf.mxu0
    %v3317 = vadd.f32 %v3278, %v3316
    %3318 = vdwg.mxu0
    %v3319 = vand.u32 %v3082, 4294901760
    %v3320 = vsub.f32 %v3082, %v3319
    %v3321 = vand.u32 %v3320, 4294901760
    %3322 = vmatpush.msra.mxu0 %v3321
    %v3323 = vand.u32 %v3081, 4294901760
    %v3324 = vsub.f32 %v3081, %v3323
    %v3325 = vand.u32 %v3324, 4294901760
    %3326 = vmatpush.msra.mxu0 %v3325
    %v3327 = vand.u32 %v3080, 4294901760
    %v3328 = vsub.f32 %v3080, %v3327
    %v3329 = vand.u32 %v3328, 4294901760
    %3330 = vmatpush.msra.mxu0 %v3329
    %v3331 = vand.u32 %v3079, 4294901760
    %v3332 = vsub.f32 %v3079, %v3331
    %v3333 = vand.u32 %v3332, 4294901760
    %3334 = vmatpush.msra.mxu0 %v3333
    %v3335 = vand.u32 %v3078, 4294901760
    %v3336 = vsub.f32 %v3078, %v3335
    %v3337 = vand.u32 %v3336, 4294901760
    %3338 = vmatpush.msra.mxu0 %v3337
    %v3339 = vand.u32 %v3077, 4294901760
    %v3340 = vsub.f32 %v3077, %v3339
    %v3341 = vand.u32 %v3340, 4294901760
    %3342 = vmatpush.msra.mxu0 %v3341
    %v3343 = vand.u32 %v3076, 4294901760
    %v3344 = vsub.f32 %v3076, %v3343
    %v3345 = vand.u32 %v3344, 4294901760
    %3346 = vmatpush.msra.mxu0 %v3345
    %v3347 = vand.u32 %v3075, 4294901760
    %v3348 = vsub.f32 %v3075, %v3347
    %v3349 = vand.u32 %v3348, 4294901760
    %3350 = vmatpush.msra.mxu0 %v3349
    %v3351 = vand.u32 %v3074, 4294901760
    %v3352 = vsub.f32 %v3074, %v3351
    %v3353 = vand.u32 %v3352, 4294901760
    %3354 = vmatpush.msra.mxu0 %v3353
    %v3355 = vand.u32 %v3073, 4294901760
    %v3356 = vsub.f32 %v3073, %v3355
    %v3357 = vand.u32 %v3356, 4294901760
    %3358 = vmatpush.msra.mxu0 %v3357
    %v3359 = vand.u32 %v3072, 4294901760
    %v3360 = vsub.f32 %v3072, %v3359
    %v3361 = vand.u32 %v3360, 4294901760
    %3362 = vmatpush.msra.mxu0 %v3361
    %v3363 = vand.u32 %v3071, 4294901760
    %v3364 = vsub.f32 %v3071, %v3363
    %v3365 = vand.u32 %v3364, 4294901760
    %3366 = vmatpush.msra.mxu0 %v3365
    %v3367 = vand.u32 %v3070, 4294901760
    %v3368 = vsub.f32 %v3070, %v3367
    %v3369 = vand.u32 %v3368, 4294901760
    %3370 = vmatpush.msra.mxu0 %v3369
    %v3371 = vand.u32 %v3069, 4294901760
    %v3372 = vsub.f32 %v3069, %v3371
    %v3373 = vand.u32 %v3372, 4294901760
    %3374 = vmatpush.msra.mxu0 %v3373
    %v3375 = vand.u32 %v3068, 4294901760
    %v3376 = vsub.f32 %v3068, %v3375
    %v3377 = vand.u32 %v3376, 4294901760
    %3378 = vmatpush.msra.mxu0 %v3377
    %v3379 = vand.u32 %v3067, 4294901760
    %v3380 = vsub.f32 %v3067, %v3379
    %v3381 = vand.u32 %v3380, 4294901760
    %3382 = vmatpush.msra.mxu0 %v3381
    %v3383 = vand.u32 %v3066, 4294901760
    %3384 = vmatmul.f32.gmra.mxu0 %v3383
    %v3385 = vpop.f32.mrf.mxu0
    %v3386 = vadd.f32 %v3317, %v3385
    %3387 = vdwg.mxu0
    %v3388 = vand.u32 %v3082, 4294901760
    %3389 = vmatpush.msra.mxu0 %v3388
    %v3390 = vand.u32 %v3081, 4294901760
    %3391 = vmatpush.msra.mxu0 %v3390
    %v3392 = vand.u32 %v3080, 4294901760
    %3393 = vmatpush.msra.mxu0 %v3392
    %v3394 = vand.u32 %v3079, 4294901760
    %3395 = vmatpush.msra.mxu0 %v3394
    %v3396 = vand.u32 %v3078, 4294901760
    %3397 = vmatpush.msra.mxu0 %v3396
    %v3398 = vand.u32 %v3077, 4294901760
    %3399 = vmatpush.msra.mxu0 %v3398
    %v3400 = vand.u32 %v3076, 4294901760
    %3401 = vmatpush.msra.mxu0 %v3400
    %v3402 = vand.u32 %v3075, 4294901760
    %3403 = vmatpush.msra.mxu0 %v3402
    %v3404 = vand.u32 %v3074, 4294901760
    %3405 = vmatpush.msra.mxu0 %v3404
    %v3406 = vand.u32 %v3073, 4294901760
    %3407 = vmatpush.msra.mxu0 %v3406
    %v3408 = vand.u32 %v3072, 4294901760
    %3409 = vmatpush.msra.mxu0 %v3408
    %v3410 = vand.u32 %v3071, 4294901760
    %3411 = vmatpush.msra.mxu0 %v3410
    %v3412 = vand.u32 %v3070, 4294901760
    %3413 = vmatpush.msra.mxu0 %v3412
    %v3414 = vand.u32 %v3069, 4294901760
    %3415 = vmatpush.msra.mxu0 %v3414
    %v3416 = vand.u32 %v3068, 4294901760
    %3417 = vmatpush.msra.mxu0 %v3416
    %v3418 = vand.u32 %v3067, 4294901760
    %3419 = vmatpush.msra.mxu0 %v3418
    %v3420 = vand.u32 %v3066, 4294901760
    %3421 = vmatmul.f32.gmra.mxu0 %v3420
    %v3422 = vpop.f32.mrf.mxu0
    %v3423 = vadd.f32 %v3386, %v3422
    %3424 = vdwg.mxu0
    %3425 = vst [vmem:[#allocation5] sm:$0x1] %v3423
    // Predicated region
    $region42: #{decoder_forward.1} parent=1 // pred_check
      _
    $region43: #{decoder_forward.1} parent=1 // pred_check_branch
      %3427 = sbr.rel (0) target = $region45
    $region44: #{decoder_forward.1} parent=1 // pred_region
      %3429 = vsyncadd [#allocation4], 0
      %s3431 = sshll.u32 [#allocation5], 4
      %s3432 = int_to_ptr.vmem [resolvable:$true] %s3431
      %s3433 = sshll.u32 %s9, 4
      %s3434 = int_to_ptr.hbm [resolvable:$true] %s3433
      %3436 = dma.vmem_to_hbm [thread:$0]  %s3432, 16, %s3434, [#allocation4]
    $region45: #{decoder_forward.1} parent=1 // pred_fallthru
      _
    // Predicated region
    $region46: #{decoder_forward.1} parent=1 // pred_check
      _
    $region47: #{decoder_forward.1} parent=1 // pred_check_branch
      %3438 = sbr.rel (0) target = $region49
    $region48: #{decoder_forward.1} parent=1 // pred_region
      %3440 = dma.done [#allocation4], 16
    $region49: #{decoder_forward.1} parent=1 // pred_fallthru
      _
    %3441 = vsyncpa [#allocation3], 1
    %3442 = vsyncpa [#allocation4], 1

</llo_original>
